<compile_context>
chip_gen: v5e
topology: v5e:2x2
jax: 0.10.0
libtpu: 0.0.40
codegen_flags: <defaults>
</compile_context>

<pallas_src>
import numpy as np
import jax
import jax.numpy as jnp
from jax.experimental import pallas as pl
from jax.experimental.pallas import tpu as pltpu

LANE = 128  # padded width of each gate group / state / head hidden / class dim


def seqtagger_kernel(tok_ref,                      # SMEM (B, S) int32 token ids
                     emb_ref,                      # VMEM (V, E)  embedding table
                     wihf_ref, wihb_ref, b_ref,    # (E, 4*LANE), (E, 4*LANE), (1, 4*LANE)
                     whh_ref,                      # (LANE, 4*LANE) fused recurrent weight
                     w1f_ref, w1b_ref, b1_ref,     # head L1: (LANE, LANE) x2, (1, LANE)
                     w2_ref, b2_ref,               # head L2: (LANE, LANE), (1, LANE)
                     out_ref,                      # (B*S, LANE) batch-major, lane-dense
                     x_ref, xr_ref,                # scratch (S*B, E): gathered embeds, fwd / reversed
                     hsf_ref, hsb_ref):            # scratch (B*S, LANE): fwd / bwd states, batch-major
    B, S = tok_ref.shape
    HS, G = whh_ref.shape
    GQ = G // 4                                    # 128 lanes per gate group

    # ---- Fused embedding gather (SMEM token ids -> VMEM table rows) -----------------------
    # x_ref holds time-major rows, xr_ref the time-reversed copy for the backward direction
    # (replaces the wrapper-side gather / transpose / reverse / concat dispatches).
    for s in range(S):
        for b in range(B):
            row = emb_ref[pl.ds(tok_ref[b, s], 1), :]                    # (1, E)
            x_ref[s * B + b: s * B + b + 1, :] = row
            xr_ref[(S - 1 - s) * B + b: (S - 1 - s) * B + b + 1, :] = row

    # ---- Hoisted input projection, kept in registers (no xg VMEM round trip) --------------
    # Forward/backward input weights occupy disjoint (zero-padded) gate columns, so one add
    # plus the fused (b_ih + b_hh, both dirs) bias gives the per-step gate inputs for both
    # directions at once.
    xg = (jnp.dot(x_ref[...], wihf_ref[...], preferred_element_type=jnp.float32)
          + jnp.dot(xr_ref[...], wihb_ref[...], preferred_element_type=jnp.float32)
          + b_ref[...])                                                  # (S*B, 4*GQ)

    whh = whh_ref[...]                                                   # read once

    # ---- Fused bidirectional recurrence ----------------------------------------------------
    # Step s advances forward time s and backward time S-1-s with one (B,128)x(128,512)
    # recurrent matmul.  State lanes: [0:H]=h_fwd, [H:2H]=h_bwd, rest zero padding.
    h = jnp.zeros((B, HS), jnp.float32)
    c = jnp.zeros((B, HS), jnp.float32)

    for s in range(S):                              # S static & small -> full unroll
        gates = jnp.dot(h, whh, preferred_element_type=jnp.float32) + xg[s * B:(s + 1) * B, :]
        i = jax.nn.sigmoid(gates[:, 0:GQ])          # 128-lane aligned gate slices
        f = jax.nn.sigmoid(gates[:, GQ:2 * GQ])
        g = jnp.tanh(gates[:, 2 * GQ:3 * GQ])
        o = jax.nn.sigmoid(gates[:, 3 * GQ:4 * GQ])
        c = f * c + i * g
        h = o * jnp.tanh(c)
        # Store the full padded state BATCH-major (row = b*S + t); the zero-padded head
        # weights select the fwd/bwd halves later, so no sub-vreg lane split of h here.
        for b in range(B):
            hsf_ref[b * S + s: b * S + s + 1, :] = h[b:b + 1, :]
            hsb_ref[b * S + (S - 1 - s): b * S + (S - s), :] = h[b:b + 1, :]

    # ---- slot_classifier head (Dropout == identity in eval), everything 128-lane padded ----
    y = (jnp.dot(hsf_ref[...], w1f_ref[...], preferred_element_type=jnp.float32)
         + jnp.dot(hsb_ref[...], w1b_ref[...], preferred_element_type=jnp.float32)
         + b1_ref[...])
    y = jnp.where(y > 0.0, y, 0.3 * y)                                   # LeakyReLU(0.3)
    out_ref[...] = (jnp.dot(y, w2_ref[...], preferred_element_type=jnp.float32)
                    + b2_ref[...])                                       # lane-dense (B*S,128) store


def prepare_kernel_params(params):
    """One-time, host-side weight fusion / zero-padding (hoisted out of the forward path).

    Column layout of the fused gate weights (4 groups of 128 lanes):
      group k (k in i,f,g,o): [0:H]=forward gate k, [H:2H]=backward gate k, [2H:128]=0.
    State / head lanes: [0:H]=h_fwd, [H:2H]=h_bwd, [2H:128]=0.
    """
    H = params['w_hh_f'].shape[1]
    E = params['w_ih_f'].shape[1]
    C = params['w2'].shape[0]
    GQ = LANE
    G = 4 * GQ
    HS = LANE

    wf_ih = np.asarray(params['w_ih_f'], np.float32)
    wb_ih = np.asarray(params['w_ih_b'], np.float32)
    wf_hh = np.asarray(params['w_hh_f'], np.float32)
    wb_hh = np.asarray(params['w_hh_b'], np.float32)
    bf = np.asarray(params['b_f'], np.float32)
    bb = np.asarray(params['b_b'], np.float32)

    wihf = np.zeros((E, G), np.float32)
    wihb = np.zeros((E, G), np.float32)
    whh = np.zeros((HS, G), np.float32)
    bias = np.zeros((1, G), np.float32)
    for k in range(4):
        wihf[:, k * GQ: k * GQ + H] = wf_ih[k * H:(k + 1) * H, :].T
        wihb[:, k * GQ + H: k * GQ + 2 * H] = wb_ih[k * H:(k + 1) * H, :].T
        whh[0:H, k * GQ: k * GQ + H] = wf_hh[k * H:(k + 1) * H, :].T
        whh[H:2 * H, k * GQ + H: k * GQ + 2 * H] = wb_hh[k * H:(k + 1) * H, :].T
        bias[0, k * GQ: k * GQ + H] = bf[0, k * H:(k + 1) * H]
        bias[0, k * GQ + H: k * GQ + 2 * H] = bb[0, k * H:(k + 1) * H]

    w1 = np.asarray(params['w1'], np.float32)       # (H, 2H)
    b1 = np.asarray(params['b1'], np.float32)       # (1, H)
    w2 = np.asarray(params['w2'], np.float32)       # (C, H)
    b2 = np.asarray(params['b2'], np.float32)       # (1, C)

    w1f = np.zeros((HS, LANE), np.float32); w1f[0:H, 0:H] = w1[:, 0:H].T
    w1b = np.zeros((HS, LANE), np.float32); w1b[H:2 * H, 0:H] = w1[:, H:2 * H].T
    b1p = np.zeros((1, LANE), np.float32);  b1p[0, 0:H] = b1[0]
    w2p = np.zeros((LANE, LANE), np.float32); w2p[0:H, 0:C] = w2.T
    b2p = np.zeros((1, LANE), np.float32);  b2p[0, 0:C] = b2[0]

    return {
        'emb':  jnp.asarray(params['embeddings'], jnp.float32),
        'wihf': jnp.asarray(wihf), 'wihb': jnp.asarray(wihb),
        'b':    jnp.asarray(bias), 'whh': jnp.asarray(whh),
        'w1f':  jnp.asarray(w1f), 'w1b': jnp.asarray(w1b), 'b1': jnp.asarray(b1p),
        'w2':   jnp.asarray(w2p), 'b2': jnp.asarray(b2p),
    }


def seq_tagger_forward(tokens, kp, num_class):
    """tokens: (B, S) int32; kp: output of prepare_kernel_params (precomputed once)."""
    B, S = tokens.shape
    E = kp['emb'].shape[1]
    HS, _ = kp['whh'].shape
    CP = kp['w2'].shape[1]

    vmem = pl.BlockSpec(memory_space=pltpu.MemorySpace.VMEM)
    smem = pl.BlockSpec(memory_space=pltpu.MemorySpace.SMEM)

    out2d = pl.pallas_call(
        seqtagger_kernel,
        out_shape=jax.ShapeDtypeStruct((B * S, CP), jnp.float32),
        in_specs=[smem] + [vmem] * 10,
        out_specs=vmem,
        scratch_shapes=[pltpu.VMEM((S * B, E), jnp.float32),
                        pltpu.VMEM((S * B, E), jnp.float32),
                        pltpu.VMEM((B * S, HS), jnp.float32),
                        pltpu.VMEM((B * S, HS), jnp.float32)],
    )(tokens, kp['emb'], kp['wihf'], kp['wihb'], kp['b'], kp['whh'],
      kp['w1f'], kp['w1b'], kp['b1'], kp['w2'], kp['b2'])

    # Kernel output is already batch-major and lane-dense; just drop the class padding.
    return out2d.reshape(B, S, CP)[:, :, :num_class]


def seq_tagger_reference(tokens, params):
    """Pure-JAX reference for validation (PyTorch-layout params)."""
    emb = params['embeddings'][tokens]                  # (B, S, E)
    H = params['w_hh_f'].shape[1]
    B = emb.shape[0]

    def run_dir(x_sbe, wih, whh, b):
        def step(carry, x_t):
            h, c = carry
            gates = x_t @ wih.T + h @ whh.T + b
            i = jax.nn.sigmoid(gates[:, 0:H])
            f = jax.nn.sigmoid(gates[:, H:2 * H])
            g = jnp.tanh(gates[:, 2 * H:3 * H])
            o = jax.nn.sigmoid(gates[:, 3 * H:4 * H])
            c = f * c + i * g
            h = o * jnp.tanh(c)
            return (h, c), h
        init = (jnp.zeros((B, H)), jnp.zeros((B, H)))
        _, hs = jax.lax.scan(step, init, x_sbe)
        return hs                                       # (S, B, H)

    x_sbe = jnp.transpose(emb, (1, 0, 2))
    hf = run_dir(x_sbe, params['w_ih_f'], params['w_hh_f'], params['b_f'])
    hb = run_dir(x_sbe[::-1], params['w_ih_b'], params['w_hh_b'], params['b_b'])[::-1]
    h = jnp.concatenate([hf, hb], axis=-1)              # (S, B, 2H)
    y = jnp.einsum('sbd,hd->sbh', h, params['w1']) + params['b1']
    y = jnp.where(y > 0, y, 0.3 * y)
    logits = jnp.einsum('sbh,ch->sbc', y, params['w2']) + params['b2']
    return jnp.transpose(logits, (1, 0, 2))


def make_params(key, vocab, emb_dim, hidden, num_class):
    ks = jax.random.split(key, 16)
    H, E = hidden, emb_dim
    dim = 2 * H            # bidirectional
    h1 = dim // 2          # == H
    s = 0.1

    def rn(k, shape):
        return jax.random.normal(k, shape, jnp.float32) * s

    # PyTorch LSTM has b_ih and b_hh; they only ever appear summed, so fold them.
    params = {
        'embeddings': rn(ks[0], (vocab, E)),
        'w_ih_f': rn(ks[1], (4 * H, E)),
        'w_hh_f': rn(ks[2], (4 * H, H)),
        'b_f': (rn(ks[3], (1, 4 * H)) + rn(ks[4], (1, 4 * H))),
        'w_ih_b': rn(ks[5], (4 * H, E)),
        'w_hh_b': rn(ks[6], (4 * H, H)),
        'b_b': (rn(ks[7], (1, 4 * H)) + rn(ks[8], (1, 4 * H))),
        'w1': rn(ks[9], (h1, dim)),
        'b1': rn(ks[10], (1, h1)),
        'w2': rn(ks[11], (num_class, h1)),
        'b2': rn(ks[12], (1, num_class)),
    }
    return params


if __name__ == "__main__":
    # Small config: vocab=50, emb_dim=32, hidden=32, bidirectional (dim=64),
    # num_layers=1, num_class=9, rnn_type='lstm'. Dropout is identity (eval mode).
    B, S = 2, 8
    VOCAB, E, H, C = 50, 32, 32, 9

    key = jax.random.PRNGKey(0)
    k_tok, k_par = jax.random.split(key)
    tokens = jax.random.randint(k_tok, (B, S), 0, VOCAB, dtype=jnp.int32)
    params = make_params(k_par, VOCAB, E, H, C)

    # Weight fusion/padding is pure plumbing: done ONCE, outside the forward path.
    kp = prepare_kernel_params(params)

    fwd = jax.jit(seq_tagger_forward, static_argnums=(2,))
    out = jax.block_until_ready(fwd(tokens, kp, C))

    ref = jax.block_until_ready(seq_tagger_reference(tokens, params))
    np.testing.assert_allclose(np.asarray(out), np.asarray(ref), rtol=1e-4, atol=1e-4)
    assert out.shape == (B, S, C)

    print("KERNEL_OK")
</pallas_src>

<mosaic_0001>
module attributes {stable_mosaic.version = 11 : i64} {
  func.func @seqtagger_kernel(%arg0: memref<2x8xi32, #tpu.memory_space<smem>>, %arg1: memref<50x32xf32, #tpu.memory_space<vmem>>, %arg2: memref<32x512xf32, #tpu.memory_space<vmem>>, %arg3: memref<32x512xf32, #tpu.memory_space<vmem>>, %arg4: memref<1x512xf32, #tpu.memory_space<vmem>>, %arg5: memref<128x512xf32, #tpu.memory_space<vmem>>, %arg6: memref<128x128xf32, #tpu.memory_space<vmem>>, %arg7: memref<128x128xf32, #tpu.memory_space<vmem>>, %arg8: memref<1x128xf32, #tpu.memory_space<vmem>>, %arg9: memref<128x128xf32, #tpu.memory_space<vmem>>, %arg10: memref<1x128xf32, #tpu.memory_space<vmem>>, %arg11: memref<16x128xf32, #tpu.memory_space<vmem>>, %arg12: memref<16x32xf32, #tpu.memory_space<vmem>>, %arg13: memref<16x32xf32, #tpu.memory_space<vmem>>, %arg14: memref<16x128xf32, #tpu.memory_space<vmem>>, %arg15: memref<16x128xf32, #tpu.memory_space<vmem>>) attributes {dimension_semantics = [], scalar_prefetch = 0 : i64, scratch_operands = 4 : i64, tpu.core_type = #tpu.core_type<tc>} {
    %c0 = arith.constant 0 : index
    %c0_0 = arith.constant 0 : index
    %0 = memref.load %arg0[%c0, %c0_0] : memref<2x8xi32, #tpu.memory_space<smem>>
    %1 = arith.index_cast %0 : i32 to index
    %c0_1 = arith.constant 0 : index
    %2 = vector.load %arg1[%1, %c0_1] : memref<50x32xf32, #tpu.memory_space<vmem>>, vector<1x32xf32>
    %c0_2 = arith.constant 0 : index
    %c0_3 = arith.constant 0 : index
    %3 = vector.load %arg12[%c0_2, %c0_3] : memref<16x32xf32, #tpu.memory_space<vmem>>, vector<1x32xf32>
    tpu.vector_store %arg12[%c0_2, %c0_3], %2 {strides = array<i32>} : memref<16x32xf32, #tpu.memory_space<vmem>>, vector<1x32xf32>,
    %c14 = arith.constant 14 : index
    %c0_4 = arith.constant 0 : index
    %4 = vector.load %arg13[%c14, %c0_4] : memref<16x32xf32, #tpu.memory_space<vmem>>, vector<1x32xf32>
    tpu.vector_store %arg13[%c14, %c0_4], %2 {strides = array<i32>} : memref<16x32xf32, #tpu.memory_space<vmem>>, vector<1x32xf32>,
    %c1 = arith.constant 1 : index
    %c0_5 = arith.constant 0 : index
    %5 = memref.load %arg0[%c1, %c0_5] : memref<2x8xi32, #tpu.memory_space<smem>>
    %6 = arith.index_cast %5 : i32 to index
    %c0_6 = arith.constant 0 : index
    %7 = vector.load %arg1[%6, %c0_6] : memref<50x32xf32, #tpu.memory_space<vmem>>, vector<1x32xf32>
    %c1_7 = arith.constant 1 : index
    %c0_8 = arith.constant 0 : index
    %8 = vector.load %arg12[%c1_7, %c0_8] : memref<16x32xf32, #tpu.memory_space<vmem>>, vector<1x32xf32>
    tpu.vector_store %arg12[%c1_7, %c0_8], %7 {strides = array<i32>} : memref<16x32xf32, #tpu.memory_space<vmem>>, vector<1x32xf32>,
    %c15 = arith.constant 15 : index
    %c0_9 = arith.constant 0 : index
    %9 = vector.load %arg13[%c15, %c0_9] : memref<16x32xf32, #tpu.memory_space<vmem>>, vector<1x32xf32>
    tpu.vector_store %arg13[%c15, %c0_9], %7 {strides = array<i32>} : memref<16x32xf32, #tpu.memory_space<vmem>>, vector<1x32xf32>,
    %c0_10 = arith.constant 0 : index
    %c1_11 = arith.constant 1 : index
    %10 = memref.load %arg0[%c0_10, %c1_11] : memref<2x8xi32, #tpu.memory_space<smem>>
    %11 = arith.index_cast %10 : i32 to index
    %c0_12 = arith.constant 0 : index
    %12 = vector.load %arg1[%11, %c0_12] : memref<50x32xf32, #tpu.memory_space<vmem>>, vector<1x32xf32>
    %c2 = arith.constant 2 : index
    %c0_13 = arith.constant 0 : index
    %13 = vector.load %arg12[%c2, %c0_13] : memref<16x32xf32, #tpu.memory_space<vmem>>, vector<1x32xf32>
    tpu.vector_store %arg12[%c2, %c0_13], %12 {strides = array<i32>} : memref<16x32xf32, #tpu.memory_space<vmem>>, vector<1x32xf32>,
    %c12 = arith.constant 12 : index
    %c0_14 = arith.constant 0 : index
    %14 = vector.load %arg13[%c12, %c0_14] : memref<16x32xf32, #tpu.memory_space<vmem>>, vector<1x32xf32>
    tpu.vector_store %arg13[%c12, %c0_14], %12 {strides = array<i32>} : memref<16x32xf32, #tpu.memory_space<vmem>>, vector<1x32xf32>,
    %c1_15 = arith.constant 1 : index
    %c1_16 = arith.constant 1 : index
    %15 = memref.load %arg0[%c1_15, %c1_16] : memref<2x8xi32, #tpu.memory_space<smem>>
    %16 = arith.index_cast %15 : i32 to index
    %c0_17 = arith.constant 0 : index
    %17 = vector.load %arg1[%16, %c0_17] : memref<50x32xf32, #tpu.memory_space<vmem>>, vector<1x32xf32>
    %c3 = arith.constant 3 : index
    %c0_18 = arith.constant 0 : index
    %18 = vector.load %arg12[%c3, %c0_18] : memref<16x32xf32, #tpu.memory_space<vmem>>, vector<1x32xf32>
    tpu.vector_store %arg12[%c3, %c0_18], %17 {strides = array<i32>} : memref<16x32xf32, #tpu.memory_space<vmem>>, vector<1x32xf32>,
    %c13 = arith.constant 13 : index
    %c0_19 = arith.constant 0 : index
    %19 = vector.load %arg13[%c13, %c0_19] : memref<16x32xf32, #tpu.memory_space<vmem>>, vector<1x32xf32>
    tpu.vector_store %arg13[%c13, %c0_19], %17 {strides = array<i32>} : memref<16x32xf32, #tpu.memory_space<vmem>>, vector<1x32xf32>,
    %c0_20 = arith.constant 0 : index
    %c2_21 = arith.constant 2 : index
    %20 = memref.load %arg0[%c0_20, %c2_21] : memref<2x8xi32, #tpu.memory_space<smem>>
    %21 = arith.index_cast %20 : i32 to index
    %c0_22 = arith.constant 0 : index
    %22 = vector.load %arg1[%21, %c0_22] : memref<50x32xf32, #tpu.memory_space<vmem>>, vector<1x32xf32>
    %c4 = arith.constant 4 : index
    %c0_23 = arith.constant 0 : index
    %23 = vector.load %arg12[%c4, %c0_23] : memref<16x32xf32, #tpu.memory_space<vmem>>, vector<1x32xf32>
    tpu.vector_store %arg12[%c4, %c0_23], %22 {strides = array<i32>} : memref<16x32xf32, #tpu.memory_space<vmem>>, vector<1x32xf32>,
    %c10 = arith.constant 10 : index
    %c0_24 = arith.constant 0 : index
    %24 = vector.load %arg13[%c10, %c0_24] : memref<16x32xf32, #tpu.memory_space<vmem>>, vector<1x32xf32>
    tpu.vector_store %arg13[%c10, %c0_24], %22 {strides = array<i32>} : memref<16x32xf32, #tpu.memory_space<vmem>>, vector<1x32xf32>,
    %c1_25 = arith.constant 1 : index
    %c2_26 = arith.constant 2 : index
    %25 = memref.load %arg0[%c1_25, %c2_26] : memref<2x8xi32, #tpu.memory_space<smem>>
    %26 = arith.index_cast %25 : i32 to index
    %c0_27 = arith.constant 0 : index
    %27 = vector.load %arg1[%26, %c0_27] : memref<50x32xf32, #tpu.memory_space<vmem>>, vector<1x32xf32>
    %c5 = arith.constant 5 : index
    %c0_28 = arith.constant 0 : index
    %28 = vector.load %arg12[%c5, %c0_28] : memref<16x32xf32, #tpu.memory_space<vmem>>, vector<1x32xf32>
    tpu.vector_store %arg12[%c5, %c0_28], %27 {strides = array<i32>} : memref<16x32xf32, #tpu.memory_space<vmem>>, vector<1x32xf32>,
    %c11 = arith.constant 11 : index
    %c0_29 = arith.constant 0 : index
    %29 = vector.load %arg13[%c11, %c0_29] : memref<16x32xf32, #tpu.memory_space<vmem>>, vector<1x32xf32>
    tpu.vector_store %arg13[%c11, %c0_29], %27 {strides = array<i32>} : memref<16x32xf32, #tpu.memory_space<vmem>>, vector<1x32xf32>,
    %c0_30 = arith.constant 0 : index
    %c3_31 = arith.constant 3 : index
    %30 = memref.load %arg0[%c0_30, %c3_31] : memref<2x8xi32, #tpu.memory_space<smem>>
    %31 = arith.index_cast %30 : i32 to index
    %c0_32 = arith.constant 0 : index
    %32 = vector.load %arg1[%31, %c0_32] : memref<50x32xf32, #tpu.memory_space<vmem>>, vector<1x32xf32>
    %c6 = arith.constant 6 : index
    %c0_33 = arith.constant 0 : index
    %33 = vector.load %arg12[%c6, %c0_33] : memref<16x32xf32, #tpu.memory_space<vmem>>, vector<1x32xf32>
    tpu.vector_store %arg12[%c6, %c0_33], %32 {strides = array<i32>} : memref<16x32xf32, #tpu.memory_space<vmem>>, vector<1x32xf32>,
    %c8 = arith.constant 8 : index
    %c0_34 = arith.constant 0 : index
    %34 = vector.load %arg13[%c8, %c0_34] : memref<16x32xf32, #tpu.memory_space<vmem>>, vector<1x32xf32>
    tpu.vector_store %arg13[%c8, %c0_34], %32 {strides = array<i32>} : memref<16x32xf32, #tpu.memory_space<vmem>>, vector<1x32xf32>,
    %c1_35 = arith.constant 1 : index
    %c3_36 = arith.constant 3 : index
    %35 = memref.load %arg0[%c1_35, %c3_36] : memref<2x8xi32, #tpu.memory_space<smem>>
    %36 = arith.index_cast %35 : i32 to index
    %c0_37 = arith.constant 0 : index
    %37 = vector.load %arg1[%36, %c0_37] : memref<50x32xf32, #tpu.memory_space<vmem>>, vector<1x32xf32>
    %c7 = arith.constant 7 : index
    %c0_38 = arith.constant 0 : index
    %38 = vector.load %arg12[%c7, %c0_38] : memref<16x32xf32, #tpu.memory_space<vmem>>, vector<1x32xf32>
    tpu.vector_store %arg12[%c7, %c0_38], %37 {strides = array<i32>} : memref<16x32xf32, #tpu.memory_space<vmem>>, vector<1x32xf32>,
    %c9 = arith.constant 9 : index
    %c0_39 = arith.constant 0 : index
    %39 = vector.load %arg13[%c9, %c0_39] : memref<16x32xf32, #tpu.memory_space<vmem>>, vector<1x32xf32>
    tpu.vector_store %arg13[%c9, %c0_39], %37 {strides = array<i32>} : memref<16x32xf32, #tpu.memory_space<vmem>>, vector<1x32xf32>,
    %c0_40 = arith.constant 0 : index
    %c4_41 = arith.constant 4 : index
    %40 = memref.load %arg0[%c0_40, %c4_41] : memref<2x8xi32, #tpu.memory_space<smem>>
    %41 = arith.index_cast %40 : i32 to index
    %c0_42 = arith.constant 0 : index
    %42 = vector.load %arg1[%41, %c0_42] : memref<50x32xf32, #tpu.memory_space<vmem>>, vector<1x32xf32>
    %c8_43 = arith.constant 8 : index
    %c0_44 = arith.constant 0 : index
    %43 = vector.load %arg12[%c8_43, %c0_44] : memref<16x32xf32, #tpu.memory_space<vmem>>, vector<1x32xf32>
    tpu.vector_store %arg12[%c8_43, %c0_44], %42 {strides = array<i32>} : memref<16x32xf32, #tpu.memory_space<vmem>>, vector<1x32xf32>,
    %c6_45 = arith.constant 6 : index
    %c0_46 = arith.constant 0 : index
    %44 = vector.load %arg13[%c6_45, %c0_46] : memref<16x32xf32, #tpu.memory_space<vmem>>, vector<1x32xf32>
    tpu.vector_store %arg13[%c6_45, %c0_46], %42 {strides = array<i32>} : memref<16x32xf32, #tpu.memory_space<vmem>>, vector<1x32xf32>,
    %c1_47 = arith.constant 1 : index
    %c4_48 = arith.constant 4 : index
    %45 = memref.load %arg0[%c1_47, %c4_48] : memref<2x8xi32, #tpu.memory_space<smem>>
    %46 = arith.index_cast %45 : i32 to index
    %c0_49 = arith.constant 0 : index
    %47 = vector.load %arg1[%46, %c0_49] : memref<50x32xf32, #tpu.memory_space<vmem>>, vector<1x32xf32>
    %c9_50 = arith.constant 9 : index
    %c0_51 = arith.constant 0 : index
    %48 = vector.load %arg12[%c9_50, %c0_51] : memref<16x32xf32, #tpu.memory_space<vmem>>, vector<1x32xf32>
    tpu.vector_store %arg12[%c9_50, %c0_51], %47 {strides = array<i32>} : memref<16x32xf32, #tpu.memory_space<vmem>>, vector<1x32xf32>,
    %c7_52 = arith.constant 7 : index
    %c0_53 = arith.constant 0 : index
    %49 = vector.load %arg13[%c7_52, %c0_53] : memref<16x32xf32, #tpu.memory_space<vmem>>, vector<1x32xf32>
    tpu.vector_store %arg13[%c7_52, %c0_53], %47 {strides = array<i32>} : memref<16x32xf32, #tpu.memory_space<vmem>>, vector<1x32xf32>,
    %c0_54 = arith.constant 0 : index
    %c5_55 = arith.constant 5 : index
    %50 = memref.load %arg0[%c0_54, %c5_55] : memref<2x8xi32, #tpu.memory_space<smem>>
    %51 = arith.index_cast %50 : i32 to index
    %c0_56 = arith.constant 0 : index
    %52 = vector.load %arg1[%51, %c0_56] : memref<50x32xf32, #tpu.memory_space<vmem>>, vector<1x32xf32>
    %c10_57 = arith.constant 10 : index
    %c0_58 = arith.constant 0 : index
    %53 = vector.load %arg12[%c10_57, %c0_58] : memref<16x32xf32, #tpu.memory_space<vmem>>, vector<1x32xf32>
    tpu.vector_store %arg12[%c10_57, %c0_58], %52 {strides = array<i32>} : memref<16x32xf32, #tpu.memory_space<vmem>>, vector<1x32xf32>,
    %c4_59 = arith.constant 4 : index
    %c0_60 = arith.constant 0 : index
    %54 = vector.load %arg13[%c4_59, %c0_60] : memref<16x32xf32, #tpu.memory_space<vmem>>, vector<1x32xf32>
    tpu.vector_store %arg13[%c4_59, %c0_60], %52 {strides = array<i32>} : memref<16x32xf32, #tpu.memory_space<vmem>>, vector<1x32xf32>,
    %c1_61 = arith.constant 1 : index
    %c5_62 = arith.constant 5 : index
    %55 = memref.load %arg0[%c1_61, %c5_62] : memref<2x8xi32, #tpu.memory_space<smem>>
    %56 = arith.index_cast %55 : i32 to index
    %c0_63 = arith.constant 0 : index
    %57 = vector.load %arg1[%56, %c0_63] : memref<50x32xf32, #tpu.memory_space<vmem>>, vector<1x32xf32>
    %c11_64 = arith.constant 11 : index
    %c0_65 = arith.constant 0 : index
    %58 = vector.load %arg12[%c11_64, %c0_65] : memref<16x32xf32, #tpu.memory_space<vmem>>, vector<1x32xf32>
    tpu.vector_store %arg12[%c11_64, %c0_65], %57 {strides = array<i32>} : memref<16x32xf32, #tpu.memory_space<vmem>>, vector<1x32xf32>,
    %c5_66 = arith.constant 5 : index
    %c0_67 = arith.constant 0 : index
    %59 = vector.load %arg13[%c5_66, %c0_67] : memref<16x32xf32, #tpu.memory_space<vmem>>, vector<1x32xf32>
    tpu.vector_store %arg13[%c5_66, %c0_67], %57 {strides = array<i32>} : memref<16x32xf32, #tpu.memory_space<vmem>>, vector<1x32xf32>,
    %c0_68 = arith.constant 0 : index
    %c6_69 = arith.constant 6 : index
    %60 = memref.load %arg0[%c0_68, %c6_69] : memref<2x8xi32, #tpu.memory_space<smem>>
    %61 = arith.index_cast %60 : i32 to index
    %c0_70 = arith.constant 0 : index
    %62 = vector.load %arg1[%61, %c0_70] : memref<50x32xf32, #tpu.memory_space<vmem>>, vector<1x32xf32>
    %c12_71 = arith.constant 12 : index
    %c0_72 = arith.constant 0 : index
    %63 = vector.load %arg12[%c12_71, %c0_72] : memref<16x32xf32, #tpu.memory_space<vmem>>, vector<1x32xf32>
    tpu.vector_store %arg12[%c12_71, %c0_72], %62 {strides = array<i32>} : memref<16x32xf32, #tpu.memory_space<vmem>>, vector<1x32xf32>,
    %c2_73 = arith.constant 2 : index
    %c0_74 = arith.constant 0 : index
    %64 = vector.load %arg13[%c2_73, %c0_74] : memref<16x32xf32, #tpu.memory_space<vmem>>, vector<1x32xf32>
    tpu.vector_store %arg13[%c2_73, %c0_74], %62 {strides = array<i32>} : memref<16x32xf32, #tpu.memory_space<vmem>>, vector<1x32xf32>,
    %c1_75 = arith.constant 1 : index
    %c6_76 = arith.constant 6 : index
    %65 = memref.load %arg0[%c1_75, %c6_76] : memref<2x8xi32, #tpu.memory_space<smem>>
    %66 = arith.index_cast %65 : i32 to index
    %c0_77 = arith.constant 0 : index
    %67 = vector.load %arg1[%66, %c0_77] : memref<50x32xf32, #tpu.memory_space<vmem>>, vector<1x32xf32>
    %c13_78 = arith.constant 13 : index
    %c0_79 = arith.constant 0 : index
    %68 = vector.load %arg12[%c13_78, %c0_79] : memref<16x32xf32, #tpu.memory_space<vmem>>, vector<1x32xf32>
    tpu.vector_store %arg12[%c13_78, %c0_79], %67 {strides = array<i32>} : memref<16x32xf32, #tpu.memory_space<vmem>>, vector<1x32xf32>,
    %c3_80 = arith.constant 3 : index
    %c0_81 = arith.constant 0 : index
    %69 = vector.load %arg13[%c3_80, %c0_81] : memref<16x32xf32, #tpu.memory_space<vmem>>, vector<1x32xf32>
    tpu.vector_store %arg13[%c3_80, %c0_81], %67 {strides = array<i32>} : memref<16x32xf32, #tpu.memory_space<vmem>>, vector<1x32xf32>,
    %c0_82 = arith.constant 0 : index
    %c7_83 = arith.constant 7 : index
    %70 = memref.load %arg0[%c0_82, %c7_83] : memref<2x8xi32, #tpu.memory_space<smem>>
    %71 = arith.index_cast %70 : i32 to index
    %c0_84 = arith.constant 0 : index
    %72 = vector.load %arg1[%71, %c0_84] : memref<50x32xf32, #tpu.memory_space<vmem>>, vector<1x32xf32>
    %c14_85 = arith.constant 14 : index
    %c0_86 = arith.constant 0 : index
    %73 = vector.load %arg12[%c14_85, %c0_86] : memref<16x32xf32, #tpu.memory_space<vmem>>, vector<1x32xf32>
    tpu.vector_store %arg12[%c14_85, %c0_86], %72 {strides = array<i32>} : memref<16x32xf32, #tpu.memory_space<vmem>>, vector<1x32xf32>,
    %c0_87 = arith.constant 0 : index
    %c0_88 = arith.constant 0 : index
    %74 = vector.load %arg13[%c0_87, %c0_88] : memref<16x32xf32, #tpu.memory_space<vmem>>, vector<1x32xf32>
    tpu.vector_store %arg13[%c0_87, %c0_88], %72 {strides = array<i32>} : memref<16x32xf32, #tpu.memory_space<vmem>>, vector<1x32xf32>,
    %c1_89 = arith.constant 1 : index
    %c7_90 = arith.constant 7 : index
    %75 = memref.load %arg0[%c1_89, %c7_90] : memref<2x8xi32, #tpu.memory_space<smem>>
    %76 = arith.index_cast %75 : i32 to index
    %c0_91 = arith.constant 0 : index
    %77 = vector.load %arg1[%76, %c0_91] : memref<50x32xf32, #tpu.memory_space<vmem>>, vector<1x32xf32>
    %c15_92 = arith.constant 15 : index
    %c0_93 = arith.constant 0 : index
    %78 = vector.load %arg12[%c15_92, %c0_93] : memref<16x32xf32, #tpu.memory_space<vmem>>, vector<1x32xf32>
    tpu.vector_store %arg12[%c15_92, %c0_93], %77 {strides = array<i32>} : memref<16x32xf32, #tpu.memory_space<vmem>>, vector<1x32xf32>,
    %c1_94 = arith.constant 1 : index
    %c0_95 = arith.constant 0 : index
    %79 = vector.load %arg13[%c1_94, %c0_95] : memref<16x32xf32, #tpu.memory_space<vmem>>, vector<1x32xf32>
    tpu.vector_store %arg13[%c1_94, %c0_95], %77 {strides = array<i32>} : memref<16x32xf32, #tpu.memory_space<vmem>>, vector<1x32xf32>,
    %c0_96 = arith.constant 0 : index
    %c0_97 = arith.constant 0 : index
    %80 = vector.load %arg12[%c0_96, %c0_97] : memref<16x32xf32, #tpu.memory_space<vmem>>, vector<16x32xf32>
    %c0_98 = arith.constant 0 : index
    %c0_99 = arith.constant 0 : index
    %81 = vector.load %arg2[%c0_98, %c0_99] : memref<32x512xf32, #tpu.memory_space<vmem>>, vector<32x512xf32>
    %cst = arith.constant dense<0.000000e+00> : vector<16x512xf32>
    %82 = tpu.matmul %80, %81, %cst {dimension_numbers = #tpu.dot_dimension_numbers<[1], [0], [0], [1], [0, 0, 1, 1], [], []>} : vector<16x32xf32>, vector<32x512xf32>, vector<16x512xf32> -> vector<16x512xf32>
    %c0_100 = arith.constant 0 : index
    %c0_101 = arith.constant 0 : index
    %83 = vector.load %arg13[%c0_100, %c0_101] : memref<16x32xf32, #tpu.memory_space<vmem>>, vector<16x32xf32>
    %c0_102 = arith.constant 0 : index
    %c0_103 = arith.constant 0 : index
    %84 = vector.load %arg3[%c0_102, %c0_103] : memref<32x512xf32, #tpu.memory_space<vmem>>, vector<32x512xf32>
    %cst_104 = arith.constant dense<0.000000e+00> : vector<16x512xf32>
    %85 = tpu.matmul %83, %84, %cst_104 {dimension_numbers = #tpu.dot_dimension_numbers<[1], [0], [0], [1], [0, 0, 1, 1], [], []>} : vector<16x32xf32>, vector<32x512xf32>, vector<16x512xf32> -> vector<16x512xf32>
    %86 = arith.addf %82, %85 : vector<16x512xf32>
    %c0_105 = arith.constant 0 : index
    %c0_106 = arith.constant 0 : index
    %87 = vector.load %arg4[%c0_105, %c0_106] : memref<1x512xf32, #tpu.memory_space<vmem>>, vector<1x512xf32>
    %88 = vector.broadcast %87 : vector<1x512xf32> to vector<16x512xf32>
    %89 = arith.addf %86, %88 : vector<16x512xf32>
    %c0_107 = arith.constant 0 : index
    %c0_108 = arith.constant 0 : index
    %90 = vector.load %arg5[%c0_107, %c0_108] : memref<128x512xf32, #tpu.memory_space<vmem>>, vector<128x512xf32>
    %cst_109 = arith.constant 0.000000e+00 : f32
    %91 = vector.broadcast %cst_109 : f32 to vector<2x128xf32>
    %cst_110 = arith.constant 0.000000e+00 : f32
    %92 = vector.broadcast %cst_110 : f32 to vector<2x128xf32>
    %cst_111 = arith.constant dense<0.000000e+00> : vector<2x512xf32>
    %93 = tpu.matmul %91, %90, %cst_111 {dimension_numbers = #tpu.dot_dimension_numbers<[1], [0], [0], [1], [0, 0, 1, 1], [], []>} : vector<2x128xf32>, vector<128x512xf32>, vector<2x512xf32> -> vector<2x512xf32>
    %94 = vector.extract_strided_slice %89 {offsets = [0, 0], sizes = [2, 512], strides = [1, 1]} : vector<16x512xf32> to vector<2x512xf32>
    %95 = arith.addf %93, %94 : vector<2x512xf32>
    %96 = vector.extract_strided_slice %95 {offsets = [0, 0], sizes = [2, 128], strides = [1, 1]} : vector<2x512xf32> to vector<2x128xf32>
    %97 = arith.negf %96 : vector<2x128xf32>
    %98 = math.exp %97 : vector<2x128xf32>
    %cst_112 = arith.constant 1.000000e+00 : f32
    %99 = vector.broadcast %cst_112 : f32 to vector<2x128xf32>
    %100 = arith.addf %99, %98 : vector<2x128xf32>
    %101 = arith.divf %99, %100 : vector<2x128xf32>
    %102 = vector.extract_strided_slice %95 {offsets = [0, 128], sizes = [2, 128], strides = [1, 1]} : vector<2x512xf32> to vector<2x128xf32>
    %103 = arith.negf %102 : vector<2x128xf32>
    %104 = math.exp %103 : vector<2x128xf32>
    %cst_113 = arith.constant 1.000000e+00 : f32
    %105 = vector.broadcast %cst_113 : f32 to vector<2x128xf32>
    %106 = arith.addf %105, %104 : vector<2x128xf32>
    %107 = arith.divf %105, %106 : vector<2x128xf32>
    %108 = vector.extract_strided_slice %95 {offsets = [0, 256], sizes = [2, 128], strides = [1, 1]} : vector<2x512xf32> to vector<2x128xf32>
    %109 = math.tanh %108 : vector<2x128xf32>
    %110 = vector.extract_strided_slice %95 {offsets = [0, 384], sizes = [2, 128], strides = [1, 1]} : vector<2x512xf32> to vector<2x128xf32>
    %111 = arith.negf %110 : vector<2x128xf32>
    %112 = math.exp %111 : vector<2x128xf32>
    %cst_114 = arith.constant 1.000000e+00 : f32
    %113 = vector.broadcast %cst_114 : f32 to vector<2x128xf32>
    %114 = arith.addf %113, %112 : vector<2x128xf32>
    %115 = arith.divf %113, %114 : vector<2x128xf32>
    %116 = arith.mulf %107, %92 : vector<2x128xf32>
    %117 = arith.mulf %101, %109 : vector<2x128xf32>
    %118 = arith.addf %116, %117 : vector<2x128xf32>
    %119 = math.tanh %118 : vector<2x128xf32>
    %120 = arith.mulf %115, %119 : vector<2x128xf32>
    %121 = vector.extract_strided_slice %120 {offsets = [0, 0], sizes = [1, 128], strides = [1, 1]} : vector<2x128xf32> to vector<1x128xf32>
    %c0_115 = arith.constant 0 : index
    %c0_116 = arith.constant 0 : index
    %122 = vector.load %arg14[%c0_115, %c0_116] : memref<16x128xf32, #tpu.memory_space<vmem>>, vector<1x128xf32>
    tpu.vector_store %arg14[%c0_115, %c0_116], %121 {strides = array<i32>} : memref<16x128xf32, #tpu.memory_space<vmem>>, vector<1x128xf32>,
    %123 = vector.extract_strided_slice %120 {offsets = [0, 0], sizes = [1, 128], strides = [1, 1]} : vector<2x128xf32> to vector<1x128xf32>
    %c7_117 = arith.constant 7 : index
    %c0_118 = arith.constant 0 : index
    %124 = vector.load %arg15[%c7_117, %c0_118] : memref<16x128xf32, #tpu.memory_space<vmem>>, vector<1x128xf32>
    tpu.vector_store %arg15[%c7_117, %c0_118], %123 {strides = array<i32>} : memref<16x128xf32, #tpu.memory_space<vmem>>, vector<1x128xf32>,
    %125 = vector.extract_strided_slice %120 {offsets = [1, 0], sizes = [1, 128], strides = [1, 1]} : vector<2x128xf32> to vector<1x128xf32>
    %c8_119 = arith.constant 8 : index
    %c0_120 = arith.constant 0 : index
    %126 = vector.load %arg14[%c8_119, %c0_120] : memref<16x128xf32, #tpu.memory_space<vmem>>, vector<1x128xf32>
    tpu.vector_store %arg14[%c8_119, %c0_120], %125 {strides = array<i32>} : memref<16x128xf32, #tpu.memory_space<vmem>>, vector<1x128xf32>,
    %127 = vector.extract_strided_slice %120 {offsets = [1, 0], sizes = [1, 128], strides = [1, 1]} : vector<2x128xf32> to vector<1x128xf32>
    %c15_121 = arith.constant 15 : index
    %c0_122 = arith.constant 0 : index
    %128 = vector.load %arg15[%c15_121, %c0_122] : memref<16x128xf32, #tpu.memory_space<vmem>>, vector<1x128xf32>
    tpu.vector_store %arg15[%c15_121, %c0_122], %127 {strides = array<i32>} : memref<16x128xf32, #tpu.memory_space<vmem>>, vector<1x128xf32>,
    %cst_123 = arith.constant dense<0.000000e+00> : vector<2x512xf32>
    %129 = tpu.matmul %120, %90, %cst_123 {dimension_numbers = #tpu.dot_dimension_numbers<[1], [0], [0], [1], [0, 0, 1, 1], [], []>} : vector<2x128xf32>, vector<128x512xf32>, vector<2x512xf32> -> vector<2x512xf32>
    %130 = vector.extract_strided_slice %89 {offsets = [2, 0], sizes = [2, 512], strides = [1, 1]} : vector<16x512xf32> to vector<2x512xf32>
    %131 = arith.addf %129, %130 : vector<2x512xf32>
    %132 = vector.extract_strided_slice %131 {offsets = [0, 0], sizes = [2, 128], strides = [1, 1]} : vector<2x512xf32> to vector<2x128xf32>
    %133 = arith.negf %132 : vector<2x128xf32>
    %134 = math.exp %133 : vector<2x128xf32>
    %cst_124 = arith.constant 1.000000e+00 : f32
    %135 = vector.broadcast %cst_124 : f32 to vector<2x128xf32>
    %136 = arith.addf %135, %134 : vector<2x128xf32>
    %137 = arith.divf %135, %136 : vector<2x128xf32>
    %138 = vector.extract_strided_slice %131 {offsets = [0, 128], sizes = [2, 128], strides = [1, 1]} : vector<2x512xf32> to vector<2x128xf32>
    %139 = arith.negf %138 : vector<2x128xf32>
    %140 = math.exp %139 : vector<2x128xf32>
    %cst_125 = arith.constant 1.000000e+00 : f32
    %141 = vector.broadcast %cst_125 : f32 to vector<2x128xf32>
    %142 = arith.addf %141, %140 : vector<2x128xf32>
    %143 = arith.divf %141, %142 : vector<2x128xf32>
    %144 = vector.extract_strided_slice %131 {offsets = [0, 256], sizes = [2, 128], strides = [1, 1]} : vector<2x512xf32> to vector<2x128xf32>
    %145 = math.tanh %144 : vector<2x128xf32>
    %146 = vector.extract_strided_slice %131 {offsets = [0, 384], sizes = [2, 128], strides = [1, 1]} : vector<2x512xf32> to vector<2x128xf32>
    %147 = arith.negf %146 : vector<2x128xf32>
    %148 = math.exp %147 : vector<2x128xf32>
    %cst_126 = arith.constant 1.000000e+00 : f32
    %149 = vector.broadcast %cst_126 : f32 to vector<2x128xf32>
    %150 = arith.addf %149, %148 : vector<2x128xf32>
    %151 = arith.divf %149, %150 : vector<2x128xf32>
    %152 = arith.mulf %143, %118 : vector<2x128xf32>
    %153 = arith.mulf %137, %145 : vector<2x128xf32>
    %154 = arith.addf %152, %153 : vector<2x128xf32>
    %155 = math.tanh %154 : vector<2x128xf32>
    %156 = arith.mulf %151, %155 : vector<2x128xf32>
    %157 = vector.extract_strided_slice %156 {offsets = [0, 0], sizes = [1, 128], strides = [1, 1]} : vector<2x128xf32> to vector<1x128xf32>
    %c1_127 = arith.constant 1 : index
    %c0_128 = arith.constant 0 : index
    %158 = vector.load %arg14[%c1_127, %c0_128] : memref<16x128xf32, #tpu.memory_space<vmem>>, vector<1x128xf32>
    tpu.vector_store %arg14[%c1_127, %c0_128], %157 {strides = array<i32>} : memref<16x128xf32, #tpu.memory_space<vmem>>, vector<1x128xf32>,
    %159 = vector.extract_strided_slice %156 {offsets = [0, 0], sizes = [1, 128], strides = [1, 1]} : vector<2x128xf32> to vector<1x128xf32>
    %c6_129 = arith.constant 6 : index
    %c0_130 = arith.constant 0 : index
    %160 = vector.load %arg15[%c6_129, %c0_130] : memref<16x128xf32, #tpu.memory_space<vmem>>, vector<1x128xf32>
    tpu.vector_store %arg15[%c6_129, %c0_130], %159 {strides = array<i32>} : memref<16x128xf32, #tpu.memory_space<vmem>>, vector<1x128xf32>,
    %161 = vector.extract_strided_slice %156 {offsets = [1, 0], sizes = [1, 128], strides = [1, 1]} : vector<2x128xf32> to vector<1x128xf32>
    %c9_131 = arith.constant 9 : index
    %c0_132 = arith.constant 0 : index
    %162 = vector.load %arg14[%c9_131, %c0_132] : memref<16x128xf32, #tpu.memory_space<vmem>>, vector<1x128xf32>
    tpu.vector_store %arg14[%c9_131, %c0_132], %161 {strides = array<i32>} : memref<16x128xf32, #tpu.memory_space<vmem>>, vector<1x128xf32>,
    %163 = vector.extract_strided_slice %156 {offsets = [1, 0], sizes = [1, 128], strides = [1, 1]} : vector<2x128xf32> to vector<1x128xf32>
    %c14_133 = arith.constant 14 : index
    %c0_134 = arith.constant 0 : index
    %164 = vector.load %arg15[%c14_133, %c0_134] : memref<16x128xf32, #tpu.memory_space<vmem>>, vector<1x128xf32>
    tpu.vector_store %arg15[%c14_133, %c0_134], %163 {strides = array<i32>} : memref<16x128xf32, #tpu.memory_space<vmem>>, vector<1x128xf32>,
    %cst_135 = arith.constant dense<0.000000e+00> : vector<2x512xf32>
    %165 = tpu.matmul %156, %90, %cst_135 {dimension_numbers = #tpu.dot_dimension_numbers<[1], [0], [0], [1], [0, 0, 1, 1], [], []>} : vector<2x128xf32>, vector<128x512xf32>, vector<2x512xf32> -> vector<2x512xf32>
    %166 = vector.extract_strided_slice %89 {offsets = [4, 0], sizes = [2, 512], strides = [1, 1]} : vector<16x512xf32> to vector<2x512xf32>
    %167 = arith.addf %165, %166 : vector<2x512xf32>
    %168 = vector.extract_strided_slice %167 {offsets = [0, 0], sizes = [2, 128], strides = [1, 1]} : vector<2x512xf32> to vector<2x128xf32>
    %169 = arith.negf %168 : vector<2x128xf32>
    %170 = math.exp %169 : vector<2x128xf32>
    %cst_136 = arith.constant 1.000000e+00 : f32
    %171 = vector.broadcast %cst_136 : f32 to vector<2x128xf32>
    %172 = arith.addf %171, %170 : vector<2x128xf32>
    %173 = arith.divf %171, %172 : vector<2x128xf32>
    %174 = vector.extract_strided_slice %167 {offsets = [0, 128], sizes = [2, 128], strides = [1, 1]} : vector<2x512xf32> to vector<2x128xf32>
    %175 = arith.negf %174 : vector<2x128xf32>
    %176 = math.exp %175 : vector<2x128xf32>
    %cst_137 = arith.constant 1.000000e+00 : f32
    %177 = vector.broadcast %cst_137 : f32 to vector<2x128xf32>
    %178 = arith.addf %177, %176 : vector<2x128xf32>
    %179 = arith.divf %177, %178 : vector<2x128xf32>
    %180 = vector.extract_strided_slice %167 {offsets = [0, 256], sizes = [2, 128], strides = [1, 1]} : vector<2x512xf32> to vector<2x128xf32>
    %181 = math.tanh %180 : vector<2x128xf32>
    %182 = vector.extract_strided_slice %167 {offsets = [0, 384], sizes = [2, 128], strides = [1, 1]} : vector<2x512xf32> to vector<2x128xf32>
    %183 = arith.negf %182 : vector<2x128xf32>
    %184 = math.exp %183 : vector<2x128xf32>
    %cst_138 = arith.constant 1.000000e+00 : f32
    %185 = vector.broadcast %cst_138 : f32 to vector<2x128xf32>
    %186 = arith.addf %185, %184 : vector<2x128xf32>
    %187 = arith.divf %185, %186 : vector<2x128xf32>
    %188 = arith.mulf %179, %154 : vector<2x128xf32>
    %189 = arith.mulf %173, %181 : vector<2x128xf32>
    %190 = arith.addf %188, %189 : vector<2x128xf32>
    %191 = math.tanh %190 : vector<2x128xf32>
    %192 = arith.mulf %187, %191 : vector<2x128xf32>
    %193 = vector.extract_strided_slice %192 {offsets = [0, 0], sizes = [1, 128], strides = [1, 1]} : vector<2x128xf32> to vector<1x128xf32>
    %c2_139 = arith.constant 2 : index
    %c0_140 = arith.constant 0 : index
    %194 = vector.load %arg14[%c2_139, %c0_140] : memref<16x128xf32, #tpu.memory_space<vmem>>, vector<1x128xf32>
    tpu.vector_store %arg14[%c2_139, %c0_140], %193 {strides = array<i32>} : memref<16x128xf32, #tpu.memory_space<vmem>>, vector<1x128xf32>,
    %195 = vector.extract_strided_slice %192 {offsets = [0, 0], sizes = [1, 128], strides = [1, 1]} : vector<2x128xf32> to vector<1x128xf32>
    %c5_141 = arith.constant 5 : index
    %c0_142 = arith.constant 0 : index
    %196 = vector.load %arg15[%c5_141, %c0_142] : memref<16x128xf32, #tpu.memory_space<vmem>>, vector<1x128xf32>
    tpu.vector_store %arg15[%c5_141, %c0_142], %195 {strides = array<i32>} : memref<16x128xf32, #tpu.memory_space<vmem>>, vector<1x128xf32>,
    %197 = vector.extract_strided_slice %192 {offsets = [1, 0], sizes = [1, 128], strides = [1, 1]} : vector<2x128xf32> to vector<1x128xf32>
    %c10_143 = arith.constant 10 : index
    %c0_144 = arith.constant 0 : index
    %198 = vector.load %arg14[%c10_143, %c0_144] : memref<16x128xf32, #tpu.memory_space<vmem>>, vector<1x128xf32>
    tpu.vector_store %arg14[%c10_143, %c0_144], %197 {strides = array<i32>} : memref<16x128xf32, #tpu.memory_space<vmem>>, vector<1x128xf32>,
    %199 = vector.extract_strided_slice %192 {offsets = [1, 0], sizes = [1, 128], strides = [1, 1]} : vector<2x128xf32> to vector<1x128xf32>
    %c13_145 = arith.constant 13 : index
    %c0_146 = arith.constant 0 : index
    %200 = vector.load %arg15[%c13_145, %c0_146] : memref<16x128xf32, #tpu.memory_space<vmem>>, vector<1x128xf32>
    tpu.vector_store %arg15[%c13_145, %c0_146], %199 {strides = array<i32>} : memref<16x128xf32, #tpu.memory_space<vmem>>, vector<1x128xf32>,
    %cst_147 = arith.constant dense<0.000000e+00> : vector<2x512xf32>
    %201 = tpu.matmul %192, %90, %cst_147 {dimension_numbers = #tpu.dot_dimension_numbers<[1], [0], [0], [1], [0, 0, 1, 1], [], []>} : vector<2x128xf32>, vector<128x512xf32>, vector<2x512xf32> -> vector<2x512xf32>
    %202 = vector.extract_strided_slice %89 {offsets = [6, 0], sizes = [2, 512], strides = [1, 1]} : vector<16x512xf32> to vector<2x512xf32>
    %203 = arith.addf %201, %202 : vector<2x512xf32>
    %204 = vector.extract_strided_slice %203 {offsets = [0, 0], sizes = [2, 128], strides = [1, 1]} : vector<2x512xf32> to vector<2x128xf32>
    %205 = arith.negf %204 : vector<2x128xf32>
    %206 = math.exp %205 : vector<2x128xf32>
    %cst_148 = arith.constant 1.000000e+00 : f32
    %207 = vector.broadcast %cst_148 : f32 to vector<2x128xf32>
    %208 = arith.addf %207, %206 : vector<2x128xf32>
    %209 = arith.divf %207, %208 : vector<2x128xf32>
    %210 = vector.extract_strided_slice %203 {offsets = [0, 128], sizes = [2, 128], strides = [1, 1]} : vector<2x512xf32> to vector<2x128xf32>
    %211 = arith.negf %210 : vector<2x128xf32>
    %212 = math.exp %211 : vector<2x128xf32>
    %cst_149 = arith.constant 1.000000e+00 : f32
    %213 = vector.broadcast %cst_149 : f32 to vector<2x128xf32>
    %214 = arith.addf %213, %212 : vector<2x128xf32>
    %215 = arith.divf %213, %214 : vector<2x128xf32>
    %216 = vector.extract_strided_slice %203 {offsets = [0, 256], sizes = [2, 128], strides = [1, 1]} : vector<2x512xf32> to vector<2x128xf32>
    %217 = math.tanh %216 : vector<2x128xf32>
    %218 = vector.extract_strided_slice %203 {offsets = [0, 384], sizes = [2, 128], strides = [1, 1]} : vector<2x512xf32> to vector<2x128xf32>
    %219 = arith.negf %218 : vector<2x128xf32>
    %220 = math.exp %219 : vector<2x128xf32>
    %cst_150 = arith.constant 1.000000e+00 : f32
    %221 = vector.broadcast %cst_150 : f32 to vector<2x128xf32>
    %222 = arith.addf %221, %220 : vector<2x128xf32>
    %223 = arith.divf %221, %222 : vector<2x128xf32>
    %224 = arith.mulf %215, %190 : vector<2x128xf32>
    %225 = arith.mulf %209, %217 : vector<2x128xf32>
    %226 = arith.addf %224, %225 : vector<2x128xf32>
    %227 = math.tanh %226 : vector<2x128xf32>
    %228 = arith.mulf %223, %227 : vector<2x128xf32>
    %229 = vector.extract_strided_slice %228 {offsets = [0, 0], sizes = [1, 128], strides = [1, 1]} : vector<2x128xf32> to vector<1x128xf32>
    %c3_151 = arith.constant 3 : index
    %c0_152 = arith.constant 0 : index
    %230 = vector.load %arg14[%c3_151, %c0_152] : memref<16x128xf32, #tpu.memory_space<vmem>>, vector<1x128xf32>
    tpu.vector_store %arg14[%c3_151, %c0_152], %229 {strides = array<i32>} : memref<16x128xf32, #tpu.memory_space<vmem>>, vector<1x128xf32>,
    %231 = vector.extract_strided_slice %228 {offsets = [0, 0], sizes = [1, 128], strides = [1, 1]} : vector<2x128xf32> to vector<1x128xf32>
    %c4_153 = arith.constant 4 : index
    %c0_154 = arith.constant 0 : index
    %232 = vector.load %arg15[%c4_153, %c0_154] : memref<16x128xf32, #tpu.memory_space<vmem>>, vector<1x128xf32>
    tpu.vector_store %arg15[%c4_153, %c0_154], %231 {strides = array<i32>} : memref<16x128xf32, #tpu.memory_space<vmem>>, vector<1x128xf32>,
    %233 = vector.extract_strided_slice %228 {offsets = [1, 0], sizes = [1, 128], strides = [1, 1]} : vector<2x128xf32> to vector<1x128xf32>
    %c11_155 = arith.constant 11 : index
    %c0_156 = arith.constant 0 : index
    %234 = vector.load %arg14[%c11_155, %c0_156] : memref<16x128xf32, #tpu.memory_space<vmem>>, vector<1x128xf32>
    tpu.vector_store %arg14[%c11_155, %c0_156], %233 {strides = array<i32>} : memref<16x128xf32, #tpu.memory_space<vmem>>, vector<1x128xf32>,
    %235 = vector.extract_strided_slice %228 {offsets = [1, 0], sizes = [1, 128], strides = [1, 1]} : vector<2x128xf32> to vector<1x128xf32>
    %c12_157 = arith.constant 12 : index
    %c0_158 = arith.constant 0 : index
    %236 = vector.load %arg15[%c12_157, %c0_158] : memref<16x128xf32, #tpu.memory_space<vmem>>, vector<1x128xf32>
    tpu.vector_store %arg15[%c12_157, %c0_158], %235 {strides = array<i32>} : memref<16x128xf32, #tpu.memory_space<vmem>>, vector<1x128xf32>,
    %cst_159 = arith.constant dense<0.000000e+00> : vector<2x512xf32>
    %237 = tpu.matmul %228, %90, %cst_159 {dimension_numbers = #tpu.dot_dimension_numbers<[1], [0], [0], [1], [0, 0, 1, 1], [], []>} : vector<2x128xf32>, vector<128x512xf32>, vector<2x512xf32> -> vector<2x512xf32>
    %238 = vector.extract_strided_slice %89 {offsets = [8, 0], sizes = [2, 512], strides = [1, 1]} : vector<16x512xf32> to vector<2x512xf32>
    %239 = arith.addf %237, %238 : vector<2x512xf32>
    %240 = vector.extract_strided_slice %239 {offsets = [0, 0], sizes = [2, 128], strides = [1, 1]} : vector<2x512xf32> to vector<2x128xf32>
    %241 = arith.negf %240 : vector<2x128xf32>
    %242 = math.exp %241 : vector<2x128xf32>
    %cst_160 = arith.constant 1.000000e+00 : f32
    %243 = vector.broadcast %cst_160 : f32 to vector<2x128xf32>
    %244 = arith.addf %243, %242 : vector<2x128xf32>
    %245 = arith.divf %243, %244 : vector<2x128xf32>
    %246 = vector.extract_strided_slice %239 {offsets = [0, 128], sizes = [2, 128], strides = [1, 1]} : vector<2x512xf32> to vector<2x128xf32>
    %247 = arith.negf %246 : vector<2x128xf32>
    %248 = math.exp %247 : vector<2x128xf32>
    %cst_161 = arith.constant 1.000000e+00 : f32
    %249 = vector.broadcast %cst_161 : f32 to vector<2x128xf32>
    %250 = arith.addf %249, %248 : vector<2x128xf32>
    %251 = arith.divf %249, %250 : vector<2x128xf32>
    %252 = vector.extract_strided_slice %239 {offsets = [0, 256], sizes = [2, 128], strides = [1, 1]} : vector<2x512xf32> to vector<2x128xf32>
    %253 = math.tanh %252 : vector<2x128xf32>
    %254 = vector.extract_strided_slice %239 {offsets = [0, 384], sizes = [2, 128], strides = [1, 1]} : vector<2x512xf32> to vector<2x128xf32>
    %255 = arith.negf %254 : vector<2x128xf32>
    %256 = math.exp %255 : vector<2x128xf32>
    %cst_162 = arith.constant 1.000000e+00 : f32
    %257 = vector.broadcast %cst_162 : f32 to vector<2x128xf32>
    %258 = arith.addf %257, %256 : vector<2x128xf32>
    %259 = arith.divf %257, %258 : vector<2x128xf32>
    %260 = arith.mulf %251, %226 : vector<2x128xf32>
    %261 = arith.mulf %245, %253 : vector<2x128xf32>
    %262 = arith.addf %260, %261 : vector<2x128xf32>
    %263 = math.tanh %262 : vector<2x128xf32>
    %264 = arith.mulf %259, %263 : vector<2x128xf32>
    %265 = vector.extract_strided_slice %264 {offsets = [0, 0], sizes = [1, 128], strides = [1, 1]} : vector<2x128xf32> to vector<1x128xf32>
    %c4_163 = arith.constant 4 : index
    %c0_164 = arith.constant 0 : index
    %266 = vector.load %arg14[%c4_163, %c0_164] : memref<16x128xf32, #tpu.memory_space<vmem>>, vector<1x128xf32>
    tpu.vector_store %arg14[%c4_163, %c0_164], %265 {strides = array<i32>} : memref<16x128xf32, #tpu.memory_space<vmem>>, vector<1x128xf32>,
    %267 = vector.extract_strided_slice %264 {offsets = [0, 0], sizes = [1, 128], strides = [1, 1]} : vector<2x128xf32> to vector<1x128xf32>
    %c3_165 = arith.constant 3 : index
    %c0_166 = arith.constant 0 : index
    %268 = vector.load %arg15[%c3_165, %c0_166] : memref<16x128xf32, #tpu.memory_space<vmem>>, vector<1x128xf32>
    tpu.vector_store %arg15[%c3_165, %c0_166], %267 {strides = array<i32>} : memref<16x128xf32, #tpu.memory_space<vmem>>, vector<1x128xf32>,
    %269 = vector.extract_strided_slice %264 {offsets = [1, 0], sizes = [1, 128], strides = [1, 1]} : vector<2x128xf32> to vector<1x128xf32>
    %c12_167 = arith.constant 12 : index
    %c0_168 = arith.constant 0 : index
    %270 = vector.load %arg14[%c12_167, %c0_168] : memref<16x128xf32, #tpu.memory_space<vmem>>, vector<1x128xf32>
    tpu.vector_store %arg14[%c12_167, %c0_168], %269 {strides = array<i32>} : memref<16x128xf32, #tpu.memory_space<vmem>>, vector<1x128xf32>,
    %271 = vector.extract_strided_slice %264 {offsets = [1, 0], sizes = [1, 128], strides = [1, 1]} : vector<2x128xf32> to vector<1x128xf32>
    %c11_169 = arith.constant 11 : index
    %c0_170 = arith.constant 0 : index
    %272 = vector.load %arg15[%c11_169, %c0_170] : memref<16x128xf32, #tpu.memory_space<vmem>>, vector<1x128xf32>
    tpu.vector_store %arg15[%c11_169, %c0_170], %271 {strides = array<i32>} : memref<16x128xf32, #tpu.memory_space<vmem>>, vector<1x128xf32>,
    %cst_171 = arith.constant dense<0.000000e+00> : vector<2x512xf32>
    %273 = tpu.matmul %264, %90, %cst_171 {dimension_numbers = #tpu.dot_dimension_numbers<[1], [0], [0], [1], [0, 0, 1, 1], [], []>} : vector<2x128xf32>, vector<128x512xf32>, vector<2x512xf32> -> vector<2x512xf32>
    %274 = vector.extract_strided_slice %89 {offsets = [10, 0], sizes = [2, 512], strides = [1, 1]} : vector<16x512xf32> to vector<2x512xf32>
    %275 = arith.addf %273, %274 : vector<2x512xf32>
    %276 = vector.extract_strided_slice %275 {offsets = [0, 0], sizes = [2, 128], strides = [1, 1]} : vector<2x512xf32> to vector<2x128xf32>
    %277 = arith.negf %276 : vector<2x128xf32>
    %278 = math.exp %277 : vector<2x128xf32>
    %cst_172 = arith.constant 1.000000e+00 : f32
    %279 = vector.broadcast %cst_172 : f32 to vector<2x128xf32>
    %280 = arith.addf %279, %278 : vector<2x128xf32>
    %281 = arith.divf %279, %280 : vector<2x128xf32>
    %282 = vector.extract_strided_slice %275 {offsets = [0, 128], sizes = [2, 128], strides = [1, 1]} : vector<2x512xf32> to vector<2x128xf32>
    %283 = arith.negf %282 : vector<2x128xf32>
    %284 = math.exp %283 : vector<2x128xf32>
    %cst_173 = arith.constant 1.000000e+00 : f32
    %285 = vector.broadcast %cst_173 : f32 to vector<2x128xf32>
    %286 = arith.addf %285, %284 : vector<2x128xf32>
    %287 = arith.divf %285, %286 : vector<2x128xf32>
    %288 = vector.extract_strided_slice %275 {offsets = [0, 256], sizes = [2, 128], strides = [1, 1]} : vector<2x512xf32> to vector<2x128xf32>
    %289 = math.tanh %288 : vector<2x128xf32>
    %290 = vector.extract_strided_slice %275 {offsets = [0, 384], sizes = [2, 128], strides = [1, 1]} : vector<2x512xf32> to vector<2x128xf32>
    %291 = arith.negf %290 : vector<2x128xf32>
    %292 = math.exp %291 : vector<2x128xf32>
    %cst_174 = arith.constant 1.000000e+00 : f32
    %293 = vector.broadcast %cst_174 : f32 to vector<2x128xf32>
    %294 = arith.addf %293, %292 : vector<2x128xf32>
    %295 = arith.divf %293, %294 : vector<2x128xf32>
    %296 = arith.mulf %287, %262 : vector<2x128xf32>
    %297 = arith.mulf %281, %289 : vector<2x128xf32>
    %298 = arith.addf %296, %297 : vector<2x128xf32>
    %299 = math.tanh %298 : vector<2x128xf32>
    %300 = arith.mulf %295, %299 : vector<2x128xf32>
    %301 = vector.extract_strided_slice %300 {offsets = [0, 0], sizes = [1, 128], strides = [1, 1]} : vector<2x128xf32> to vector<1x128xf32>
    %c5_175 = arith.constant 5 : index
    %c0_176 = arith.constant 0 : index
    %302 = vector.load %arg14[%c5_175, %c0_176] : memref<16x128xf32, #tpu.memory_space<vmem>>, vector<1x128xf32>
    tpu.vector_store %arg14[%c5_175, %c0_176], %301 {strides = array<i32>} : memref<16x128xf32, #tpu.memory_space<vmem>>, vector<1x128xf32>,
    %303 = vector.extract_strided_slice %300 {offsets = [0, 0], sizes = [1, 128], strides = [1, 1]} : vector<2x128xf32> to vector<1x128xf32>
    %c2_177 = arith.constant 2 : index
    %c0_178 = arith.constant 0 : index
    %304 = vector.load %arg15[%c2_177, %c0_178] : memref<16x128xf32, #tpu.memory_space<vmem>>, vector<1x128xf32>
    tpu.vector_store %arg15[%c2_177, %c0_178], %303 {strides = array<i32>} : memref<16x128xf32, #tpu.memory_space<vmem>>, vector<1x128xf32>,
    %305 = vector.extract_strided_slice %300 {offsets = [1, 0], sizes = [1, 128], strides = [1, 1]} : vector<2x128xf32> to vector<1x128xf32>
    %c13_179 = arith.constant 13 : index
    %c0_180 = arith.constant 0 : index
    %306 = vector.load %arg14[%c13_179, %c0_180] : memref<16x128xf32, #tpu.memory_space<vmem>>, vector<1x128xf32>
    tpu.vector_store %arg14[%c13_179, %c0_180], %305 {strides = array<i32>} : memref<16x128xf32, #tpu.memory_space<vmem>>, vector<1x128xf32>,
    %307 = vector.extract_strided_slice %300 {offsets = [1, 0], sizes = [1, 128], strides = [1, 1]} : vector<2x128xf32> to vector<1x128xf32>
    %c10_181 = arith.constant 10 : index
    %c0_182 = arith.constant 0 : index
    %308 = vector.load %arg15[%c10_181, %c0_182] : memref<16x128xf32, #tpu.memory_space<vmem>>, vector<1x128xf32>
    tpu.vector_store %arg15[%c10_181, %c0_182], %307 {strides = array<i32>} : memref<16x128xf32, #tpu.memory_space<vmem>>, vector<1x128xf32>,
    %cst_183 = arith.constant dense<0.000000e+00> : vector<2x512xf32>
    %309 = tpu.matmul %300, %90, %cst_183 {dimension_numbers = #tpu.dot_dimension_numbers<[1], [0], [0], [1], [0, 0, 1, 1], [], []>} : vector<2x128xf32>, vector<128x512xf32>, vector<2x512xf32> -> vector<2x512xf32>
    %310 = vector.extract_strided_slice %89 {offsets = [12, 0], sizes = [2, 512], strides = [1, 1]} : vector<16x512xf32> to vector<2x512xf32>
    %311 = arith.addf %309, %310 : vector<2x512xf32>
    %312 = vector.extract_strided_slice %311 {offsets = [0, 0], sizes = [2, 128], strides = [1, 1]} : vector<2x512xf32> to vector<2x128xf32>
    %313 = arith.negf %312 : vector<2x128xf32>
    %314 = math.exp %313 : vector<2x128xf32>
    %cst_184 = arith.constant 1.000000e+00 : f32
    %315 = vector.broadcast %cst_184 : f32 to vector<2x128xf32>
    %316 = arith.addf %315, %314 : vector<2x128xf32>
    %317 = arith.divf %315, %316 : vector<2x128xf32>
    %318 = vector.extract_strided_slice %311 {offsets = [0, 128], sizes = [2, 128], strides = [1, 1]} : vector<2x512xf32> to vector<2x128xf32>
    %319 = arith.negf %318 : vector<2x128xf32>
    %320 = math.exp %319 : vector<2x128xf32>
    %cst_185 = arith.constant 1.000000e+00 : f32
    %321 = vector.broadcast %cst_185 : f32 to vector<2x128xf32>
    %322 = arith.addf %321, %320 : vector<2x128xf32>
    %323 = arith.divf %321, %322 : vector<2x128xf32>
    %324 = vector.extract_strided_slice %311 {offsets = [0, 256], sizes = [2, 128], strides = [1, 1]} : vector<2x512xf32> to vector<2x128xf32>
    %325 = math.tanh %324 : vector<2x128xf32>
    %326 = vector.extract_strided_slice %311 {offsets = [0, 384], sizes = [2, 128], strides = [1, 1]} : vector<2x512xf32> to vector<2x128xf32>
    %327 = arith.negf %326 : vector<2x128xf32>
    %328 = math.exp %327 : vector<2x128xf32>
    %cst_186 = arith.constant 1.000000e+00 : f32
    %329 = vector.broadcast %cst_186 : f32 to vector<2x128xf32>
    %330 = arith.addf %329, %328 : vector<2x128xf32>
    %331 = arith.divf %329, %330 : vector<2x128xf32>
    %332 = arith.mulf %323, %298 : vector<2x128xf32>
    %333 = arith.mulf %317, %325 : vector<2x128xf32>
    %334 = arith.addf %332, %333 : vector<2x128xf32>
    %335 = math.tanh %334 : vector<2x128xf32>
    %336 = arith.mulf %331, %335 : vector<2x128xf32>
    %337 = vector.extract_strided_slice %336 {offsets = [0, 0], sizes = [1, 128], strides = [1, 1]} : vector<2x128xf32> to vector<1x128xf32>
    %c6_187 = arith.constant 6 : index
    %c0_188 = arith.constant 0 : index
    %338 = vector.load %arg14[%c6_187, %c0_188] : memref<16x128xf32, #tpu.memory_space<vmem>>, vector<1x128xf32>
    tpu.vector_store %arg14[%c6_187, %c0_188], %337 {strides = array<i32>} : memref<16x128xf32, #tpu.memory_space<vmem>>, vector<1x128xf32>,
    %339 = vector.extract_strided_slice %336 {offsets = [0, 0], sizes = [1, 128], strides = [1, 1]} : vector<2x128xf32> to vector<1x128xf32>
    %c1_189 = arith.constant 1 : index
    %c0_190 = arith.constant 0 : index
    %340 = vector.load %arg15[%c1_189, %c0_190] : memref<16x128xf32, #tpu.memory_space<vmem>>, vector<1x128xf32>
    tpu.vector_store %arg15[%c1_189, %c0_190], %339 {strides = array<i32>} : memref<16x128xf32, #tpu.memory_space<vmem>>, vector<1x128xf32>,
    %341 = vector.extract_strided_slice %336 {offsets = [1, 0], sizes = [1, 128], strides = [1, 1]} : vector<2x128xf32> to vector<1x128xf32>
    %c14_191 = arith.constant 14 : index
    %c0_192 = arith.constant 0 : index
    %342 = vector.load %arg14[%c14_191, %c0_192] : memref<16x128xf32, #tpu.memory_space<vmem>>, vector<1x128xf32>
    tpu.vector_store %arg14[%c14_191, %c0_192], %341 {strides = array<i32>} : memref<16x128xf32, #tpu.memory_space<vmem>>, vector<1x128xf32>,
    %343 = vector.extract_strided_slice %336 {offsets = [1, 0], sizes = [1, 128], strides = [1, 1]} : vector<2x128xf32> to vector<1x128xf32>
    %c9_193 = arith.constant 9 : index
    %c0_194 = arith.constant 0 : index
    %344 = vector.load %arg15[%c9_193, %c0_194] : memref<16x128xf32, #tpu.memory_space<vmem>>, vector<1x128xf32>
    tpu.vector_store %arg15[%c9_193, %c0_194], %343 {strides = array<i32>} : memref<16x128xf32, #tpu.memory_space<vmem>>, vector<1x128xf32>,
    %cst_195 = arith.constant dense<0.000000e+00> : vector<2x512xf32>
    %345 = tpu.matmul %336, %90, %cst_195 {dimension_numbers = #tpu.dot_dimension_numbers<[1], [0], [0], [1], [0, 0, 1, 1], [], []>} : vector<2x128xf32>, vector<128x512xf32>, vector<2x512xf32> -> vector<2x512xf32>
    %346 = vector.extract_strided_slice %89 {offsets = [14, 0], sizes = [2, 512], strides = [1, 1]} : vector<16x512xf32> to vector<2x512xf32>
    %347 = arith.addf %345, %346 : vector<2x512xf32>
    %348 = vector.extract_strided_slice %347 {offsets = [0, 0], sizes = [2, 128], strides = [1, 1]} : vector<2x512xf32> to vector<2x128xf32>
    %349 = arith.negf %348 : vector<2x128xf32>
    %350 = math.exp %349 : vector<2x128xf32>
    %cst_196 = arith.constant 1.000000e+00 : f32
    %351 = vector.broadcast %cst_196 : f32 to vector<2x128xf32>
    %352 = arith.addf %351, %350 : vector<2x128xf32>
    %353 = arith.divf %351, %352 : vector<2x128xf32>
    %354 = vector.extract_strided_slice %347 {offsets = [0, 128], sizes = [2, 128], strides = [1, 1]} : vector<2x512xf32> to vector<2x128xf32>
    %355 = arith.negf %354 : vector<2x128xf32>
    %356 = math.exp %355 : vector<2x128xf32>
    %cst_197 = arith.constant 1.000000e+00 : f32
    %357 = vector.broadcast %cst_197 : f32 to vector<2x128xf32>
    %358 = arith.addf %357, %356 : vector<2x128xf32>
    %359 = arith.divf %357, %358 : vector<2x128xf32>
    %360 = vector.extract_strided_slice %347 {offsets = [0, 256], sizes = [2, 128], strides = [1, 1]} : vector<2x512xf32> to vector<2x128xf32>
    %361 = math.tanh %360 : vector<2x128xf32>
    %362 = vector.extract_strided_slice %347 {offsets = [0, 384], sizes = [2, 128], strides = [1, 1]} : vector<2x512xf32> to vector<2x128xf32>
    %363 = arith.negf %362 : vector<2x128xf32>
    %364 = math.exp %363 : vector<2x128xf32>
    %cst_198 = arith.constant 1.000000e+00 : f32
    %365 = vector.broadcast %cst_198 : f32 to vector<2x128xf32>
    %366 = arith.addf %365, %364 : vector<2x128xf32>
    %367 = arith.divf %365, %366 : vector<2x128xf32>
    %368 = arith.mulf %359, %334 : vector<2x128xf32>
    %369 = arith.mulf %353, %361 : vector<2x128xf32>
    %370 = arith.addf %368, %369 : vector<2x128xf32>
    %371 = math.tanh %370 : vector<2x128xf32>
    %372 = arith.mulf %367, %371 : vector<2x128xf32>
    %373 = vector.extract_strided_slice %372 {offsets = [0, 0], sizes = [1, 128], strides = [1, 1]} : vector<2x128xf32> to vector<1x128xf32>
    %c7_199 = arith.constant 7 : index
    %c0_200 = arith.constant 0 : index
    %374 = vector.load %arg14[%c7_199, %c0_200] : memref<16x128xf32, #tpu.memory_space<vmem>>, vector<1x128xf32>
    tpu.vector_store %arg14[%c7_199, %c0_200], %373 {strides = array<i32>} : memref<16x128xf32, #tpu.memory_space<vmem>>, vector<1x128xf32>,
    %375 = vector.extract_strided_slice %372 {offsets = [0, 0], sizes = [1, 128], strides = [1, 1]} : vector<2x128xf32> to vector<1x128xf32>
    %c0_201 = arith.constant 0 : index
    %c0_202 = arith.constant 0 : index
    %376 = vector.load %arg15[%c0_201, %c0_202] : memref<16x128xf32, #tpu.memory_space<vmem>>, vector<1x128xf32>
    tpu.vector_store %arg15[%c0_201, %c0_202], %375 {strides = array<i32>} : memref<16x128xf32, #tpu.memory_space<vmem>>, vector<1x128xf32>,
    %377 = vector.extract_strided_slice %372 {offsets = [1, 0], sizes = [1, 128], strides = [1, 1]} : vector<2x128xf32> to vector<1x128xf32>
    %c15_203 = arith.constant 15 : index
    %c0_204 = arith.constant 0 : index
    %378 = vector.load %arg14[%c15_203, %c0_204] : memref<16x128xf32, #tpu.memory_space<vmem>>, vector<1x128xf32>
    tpu.vector_store %arg14[%c15_203, %c0_204], %377 {strides = array<i32>} : memref<16x128xf32, #tpu.memory_space<vmem>>, vector<1x128xf32>,
    %379 = vector.extract_strided_slice %372 {offsets = [1, 0], sizes = [1, 128], strides = [1, 1]} : vector<2x128xf32> to vector<1x128xf32>
    %c8_205 = arith.constant 8 : index
    %c0_206 = arith.constant 0 : index
    %380 = vector.load %arg15[%c8_205, %c0_206] : memref<16x128xf32, #tpu.memory_space<vmem>>, vector<1x128xf32>
    tpu.vector_store %arg15[%c8_205, %c0_206], %379 {strides = array<i32>} : memref<16x128xf32, #tpu.memory_space<vmem>>, vector<1x128xf32>,
    %c0_207 = arith.constant 0 : index
    %c0_208 = arith.constant 0 : index
    %381 = vector.load %arg14[%c0_207, %c0_208] : memref<16x128xf32, #tpu.memory_space<vmem>>, vector<16x128xf32>
    %c0_209 = arith.constant 0 : index
    %c0_210 = arith.constant 0 : index
    %382 = vector.load %arg6[%c0_209, %c0_210] : memref<128x128xf32, #tpu.memory_space<vmem>>, vector<128x128xf32>
    %cst_211 = arith.constant dense<0.000000e+00> : vector<16x128xf32>
    %383 = tpu.matmul %381, %382, %cst_211 {dimension_numbers = #tpu.dot_dimension_numbers<[1], [0], [0], [1], [0, 0, 1, 1], [], []>} : vector<16x128xf32>, vector<128x128xf32>, vector<16x128xf32> -> vector<16x128xf32>
    %c0_212 = arith.constant 0 : index
    %c0_213 = arith.constant 0 : index
    %384 = vector.load %arg15[%c0_212, %c0_213] : memref<16x128xf32, #tpu.memory_space<vmem>>, vector<16x128xf32>
    %c0_214 = arith.constant 0 : index
    %c0_215 = arith.constant 0 : index
    %385 = vector.load %arg7[%c0_214, %c0_215] : memref<128x128xf32, #tpu.memory_space<vmem>>, vector<128x128xf32>
    %cst_216 = arith.constant dense<0.000000e+00> : vector<16x128xf32>
    %386 = tpu.matmul %384, %385, %cst_216 {dimension_numbers = #tpu.dot_dimension_numbers<[1], [0], [0], [1], [0, 0, 1, 1], [], []>} : vector<16x128xf32>, vector<128x128xf32>, vector<16x128xf32> -> vector<16x128xf32>
    %387 = arith.addf %383, %386 : vector<16x128xf32>
    %c0_217 = arith.constant 0 : index
    %c0_218 = arith.constant 0 : index
    %388 = vector.load %arg8[%c0_217, %c0_218] : memref<1x128xf32, #tpu.memory_space<vmem>>, vector<1x128xf32>
    %389 = vector.broadcast %388 : vector<1x128xf32> to vector<16x128xf32>
    %390 = arith.addf %387, %389 : vector<16x128xf32>
    %cst_219 = arith.constant 0.000000e+00 : f32
    %391 = vector.broadcast %cst_219 : f32 to vector<16x128xf32>
    %392 = arith.cmpf ogt, %390, %391 : vector<16x128xf32>
    %cst_220 = arith.constant 3.000000e-01 : f32
    %393 = vector.broadcast %cst_220 : f32 to vector<16x128xf32>
    %394 = arith.mulf %393, %390 : vector<16x128xf32>
    %395 = arith.select %392, %390, %394 : vector<16x128xi1>, vector<16x128xf32>
    %c0_221 = arith.constant 0 : index
    %c0_222 = arith.constant 0 : index
    %396 = vector.load %arg9[%c0_221, %c0_222] : memref<128x128xf32, #tpu.memory_space<vmem>>, vector<128x128xf32>
    %cst_223 = arith.constant dense<0.000000e+00> : vector<16x128xf32>
    %397 = tpu.matmul %395, %396, %cst_223 {dimension_numbers = #tpu.dot_dimension_numbers<[1], [0], [0], [1], [0, 0, 1, 1], [], []>} : vector<16x128xf32>, vector<128x128xf32>, vector<16x128xf32> -> vector<16x128xf32>
    %c0_224 = arith.constant 0 : index
    %c0_225 = arith.constant 0 : index
    %398 = vector.load %arg10[%c0_224, %c0_225] : memref<1x128xf32, #tpu.memory_space<vmem>>, vector<1x128xf32>
    %399 = vector.broadcast %398 : vector<1x128xf32> to vector<16x128xf32>
    %400 = arith.addf %397, %399 : vector<16x128xf32>
    %c0_226 = arith.constant 0 : index
    %c0_227 = arith.constant 0 : index
    %401 = vector.load %arg11[%c0_226, %c0_227] : memref<16x128xf32, #tpu.memory_space<vmem>>, vector<16x128xf32>
    tpu.vector_store %arg11[%c0_226, %c0_227], %400 {strides = array<i32>} : memref<16x128xf32, #tpu.memory_space<vmem>>, vector<16x128xf32>,
    return
  }
}

</mosaic_0001>

<llo_original>
// kernel: seq_tagger_forward.1
$region0: #{seq_tagger_forward.1}
  #allocation0 [shape = 'u32[]', space=smem, size = 0x4, offset = 0x4, fixed_abs, tag = 'smem constant byte address 0x4 - core index']
  #allocation1 [shape = 'u32[72,128]{1,0:T(1,128)}', space=vmem, size = 0x9000, scoped, tag = 'internal scratch']
  #allocation2 [shape = 'f32[16,32]{1,0:T(8,128)}', space=vmem, size = 0x2000, scoped, tag = 'scratch operand']
  #allocation3 [shape = 'f32[16,32]{1,0:T(8,128)}', space=vmem, size = 0x2000, scoped, tag = 'scratch operand']
  #allocation4 [shape = 'f32[16,128]{1,0:T(8,128)}', space=vmem, size = 0x2000, scoped, tag = 'scratch operand']
  #allocation5 [shape = 'f32[16,128]{1,0:T(8,128)}', space=vmem, size = 0x2000, scoped, tag = 'scratch operand']
  %s0 = inlined_call_operand.vmem [shape: s32[2,8], index: 0, kind: input, shape index: {}]
  %s1 = inlined_call_operand.vmem [shape: f32[50,32], index: 1, kind: input, shape index: {}]
  %s2 = inlined_call_operand.hbm [shape: f32[32,512], index: 2, kind: input, shape index: {}]
  %s3 = inlined_call_operand.hbm [shape: f32[32,512], index: 3, kind: input, shape index: {}]
  %s4 = inlined_call_operand.vmem [shape: f32[1,512], index: 4, kind: input, shape index: {}]
  %s5 = inlined_call_operand.hbm [shape: f32[128,512], index: 5, kind: input, shape index: {}]
  %s6 = inlined_call_operand.hbm [shape: f32[128,128], index: 6, kind: input, shape index: {}]
  %s7 = inlined_call_operand.hbm [shape: f32[128,128], index: 7, kind: input, shape index: {}]
  %s8 = inlined_call_operand.vmem [shape: f32[1,128], index: 8, kind: input, shape index: {}]
  %s9 = inlined_call_operand.hbm [shape: f32[128,128], index: 9, kind: input, shape index: {}]
  %s10 = inlined_call_operand.vmem [shape: f32[1,128], index: 10, kind: input, shape index: {}]
  %s11 = inlined_call_operand.hbm [shape: f32[16,128], index: 11, kind: output, shape index: {}]
  %s12 = sld [smem:[#allocation0]]
  $region82: #{seq_tagger_forward.1} parent=0
    _
  %s14 = ssub.s32 1, %s12
  %s15 = scalar_select 0, %s14, %s12
  $region1: #{seq_tagger_forward.1} parent=0
    #allocation6 [shape = 'u8[1024]{0}', space=smem, size = 0x400, scoped, tag = 'input window, operand 0, single buffered']
    #allocation7 [shape = 's32[1]{0}', space=sflag, size = 0x4, scoped, tag = 'scoped memory for seq_tagger_forward.1']
    #allocation8 [shape = 's32[1]{0}', space=sflag, size = 0x4, scoped, tag = 'scoped memory for seq_tagger_forward.1']
    #allocation9 [shape = 's32[1]{0}', space=sflag, size = 0x4, scoped, tag = 'scoped memory for seq_tagger_forward.1']
    #allocation10 [shape = 'u8[65536]{0}', space=vmem, size = 0x10000, scoped, tag = 'input window, operand 2, single buffered']
    #allocation11 [shape = 'u8[65536]{0}', space=vmem, size = 0x10000, scoped, tag = 'input window, operand 3, single buffered']
    #allocation12 [shape = 's32[1]{0}', space=sflag, size = 0x4, scoped, tag = 'scoped memory for seq_tagger_forward.1']
    #allocation13 [shape = 'u8[262144]{0}', space=vmem, size = 0x40000, scoped, tag = 'input window, operand 5, single buffered']
    #allocation14 [shape = 'u8[65536]{0}', space=vmem, size = 0x10000, scoped, tag = 'input window, operand 6, single buffered']
    #allocation15 [shape = 's32[1]{0}', space=sflag, size = 0x4, scoped, tag = 'scoped memory for seq_tagger_forward.1']
    #allocation16 [shape = 'u8[65536]{0}', space=vmem, size = 0x10000, scoped, tag = 'input window, operand 7, single buffered']
    #allocation17 [shape = 'u8[65536]{0}', space=vmem, size = 0x10000, scoped, tag = 'input window, operand 9, single buffered']
    #allocation18 [shape = 's32[1]{0}', space=sflag, size = 0x4, scoped, tag = 'scoped memory for seq_tagger_forward.1']
    #allocation19 [shape = 'u8[8192]{0}', space=vmem, size = 0x2000, scoped, tag = 'output window, operand 0, single buffered']
    %16 = vsyncpa [#allocation9], 0
    %17 = vsyncpa [#allocation7], 0
    %18 = vsyncpa [#allocation12], 0
    %19 = vsyncpa [#allocation15], 0
    %20 = vsyncpa [#allocation18], 0
    %21 = vsyncpa [#allocation8], 0
    // Predicated region
    $region2: #{seq_tagger_forward.1} parent=1 // pred_check
      _
    $region3: #{seq_tagger_forward.1} parent=1 // pred_check_branch
      %23 = sbr.rel (0) target = $region5
    $region4: #{seq_tagger_forward.1} parent=1 // pred_region
      %25 = vsyncadd [#allocation9], 0
      %s27 = sshll.u32 %s0, 4
      %s28 = int_to_ptr.vmem [resolvable:$true] %s27
      %30 = dma.vmem_to_smem %s28, 32, [#allocation6], [#allocation9]
    $region5: #{seq_tagger_forward.1} parent=1 // pred_fallthru
      _
    // Predicated region
    $region6: #{seq_tagger_forward.1} parent=1 // pred_check
      _
    $region7: #{seq_tagger_forward.1} parent=1 // pred_check_branch
      %32 = sbr.rel (0) target = $region9
    $region8: #{seq_tagger_forward.1} parent=1 // pred_region
      _
    $region9: #{seq_tagger_forward.1} parent=1 // pred_fallthru
      _
    // Predicated region
    $region10: #{seq_tagger_forward.1} parent=1 // pred_check
      _
    $region11: #{seq_tagger_forward.1} parent=1 // pred_check_branch
      %34 = sbr.rel (0) target = $region13
    $region12: #{seq_tagger_forward.1} parent=1 // pred_region
      %36 = vsyncadd [#allocation7], 0
      %s37 = sshll.u32 %s2, 4
      %s38 = int_to_ptr.hbm [resolvable:$true] %s37
      %s39 = sshll.u32 [#allocation10], 4
      %s40 = int_to_ptr.vmem [resolvable:$true] %s39
      %45 = dma.hbm_to_vmem [thread:$0]  %s38, 2048, %s40, [#allocation7], 512, 512, 32
    $region13: #{seq_tagger_forward.1} parent=1 // pred_fallthru
      _
    // Predicated region
    $region14: #{seq_tagger_forward.1} parent=1 // pred_check
      _
    $region15: #{seq_tagger_forward.1} parent=1 // pred_check_branch
      %47 = sbr.rel (0) target = $region17
    $region16: #{seq_tagger_forward.1} parent=1 // pred_region
      %49 = vsyncadd [#allocation12], 0
      %s50 = sshll.u32 %s3, 4
      %s51 = int_to_ptr.hbm [resolvable:$true] %s50
      %s52 = sshll.u32 [#allocation11], 4
      %s53 = int_to_ptr.vmem [resolvable:$true] %s52
      %58 = dma.hbm_to_vmem [thread:$0]  %s51, 2048, %s53, [#allocation12], 512, 512, 32
    $region17: #{seq_tagger_forward.1} parent=1 // pred_fallthru
      _
    // Predicated region
    $region18: #{seq_tagger_forward.1} parent=1 // pred_check
      _
    $region19: #{seq_tagger_forward.1} parent=1 // pred_check_branch
      %60 = sbr.rel (0) target = $region21
    $region20: #{seq_tagger_forward.1} parent=1 // pred_region
      _
    $region21: #{seq_tagger_forward.1} parent=1 // pred_fallthru
      _
    // Predicated region
    $region22: #{seq_tagger_forward.1} parent=1 // pred_check
      _
    $region23: #{seq_tagger_forward.1} parent=1 // pred_check_branch
      %62 = sbr.rel (0) target = $region25
    $region24: #{seq_tagger_forward.1} parent=1 // pred_region
      %64 = vsyncadd [#allocation12], 0
      %s65 = sshll.u32 %s5, 4
      %s66 = int_to_ptr.hbm [resolvable:$true] %s65
      %s67 = sshll.u32 [#allocation13], 4
      %s68 = int_to_ptr.vmem [resolvable:$true] %s67
      %73 = dma.hbm_to_vmem [thread:$0]  %s66, 8192, %s68, [#allocation12], 512, 512, 32
    $region25: #{seq_tagger_forward.1} parent=1 // pred_fallthru
      _
    // Predicated region
    $region26: #{seq_tagger_forward.1} parent=1 // pred_check
      _
    $region27: #{seq_tagger_forward.1} parent=1 // pred_check_branch
      %75 = sbr.rel (0) target = $region29
    $region28: #{seq_tagger_forward.1} parent=1 // pred_region
      %77 = vsyncadd [#allocation15], 0
      %s78 = sshll.u32 %s6, 4
      %s79 = int_to_ptr.hbm [resolvable:$true] %s78
      %s80 = sshll.u32 [#allocation14], 4
      %s81 = int_to_ptr.vmem [resolvable:$true] %s80
      %86 = dma.hbm_to_vmem [thread:$0]  %s79, 2048, %s81, [#allocation15], 128, 128, 8
    $region29: #{seq_tagger_forward.1} parent=1 // pred_fallthru
      _
    // Predicated region
    $region30: #{seq_tagger_forward.1} parent=1 // pred_check
      _
    $region31: #{seq_tagger_forward.1} parent=1 // pred_check_branch
      %88 = sbr.rel (0) target = $region33
    $region32: #{seq_tagger_forward.1} parent=1 // pred_region
      %90 = vsyncadd [#allocation15], 0
      %s91 = sshll.u32 %s7, 4
      %s92 = int_to_ptr.hbm [resolvable:$true] %s91
      %s93 = sshll.u32 [#allocation16], 4
      %s94 = int_to_ptr.vmem [resolvable:$true] %s93
      %99 = dma.hbm_to_vmem [thread:$0]  %s92, 2048, %s94, [#allocation15], 128, 128, 8
    $region33: #{seq_tagger_forward.1} parent=1 // pred_fallthru
      _
    // Predicated region
    $region34: #{seq_tagger_forward.1} parent=1 // pred_check
      _
    $region35: #{seq_tagger_forward.1} parent=1 // pred_check_branch
      %101 = sbr.rel (0) target = $region37
    $region36: #{seq_tagger_forward.1} parent=1 // pred_region
      _
    $region37: #{seq_tagger_forward.1} parent=1 // pred_fallthru
      _
    // Predicated region
    $region38: #{seq_tagger_forward.1} parent=1 // pred_check
      _
    $region39: #{seq_tagger_forward.1} parent=1 // pred_check_branch
      %103 = sbr.rel (0) target = $region41
    $region40: #{seq_tagger_forward.1} parent=1 // pred_region
      %105 = vsyncadd [#allocation18], 0
      %s106 = sshll.u32 %s9, 4
      %s107 = int_to_ptr.hbm [resolvable:$true] %s106
      %s108 = sshll.u32 [#allocation17], 4
      %s109 = int_to_ptr.vmem [resolvable:$true] %s108
      %114 = dma.hbm_to_vmem [thread:$0]  %s107, 2048, %s109, [#allocation18], 128, 128, 8
    $region41: #{seq_tagger_forward.1} parent=1 // pred_fallthru
      _
    // Predicated region
    $region42: #{seq_tagger_forward.1} parent=1 // pred_check
      _
    $region43: #{seq_tagger_forward.1} parent=1 // pred_check_branch
      %116 = sbr.rel (0) target = $region45
    $region44: #{seq_tagger_forward.1} parent=1 // pred_region
      _
    $region45: #{seq_tagger_forward.1} parent=1 // pred_fallthru
      _
    // Predicated region
    $region46: #{seq_tagger_forward.1} parent=1 // pred_check
      _
    $region47: #{seq_tagger_forward.1} parent=1 // pred_check_branch
      %118 = sbr.rel (0) target = $region49
    $region48: #{seq_tagger_forward.1} parent=1 // pred_region
      %120 = dma.done [#allocation9], 32
    $region49: #{seq_tagger_forward.1} parent=1 // pred_fallthru
      _
    // Predicated region
    $region50: #{seq_tagger_forward.1} parent=1 // pred_check
      _
    $region51: #{seq_tagger_forward.1} parent=1 // pred_check_branch
      %122 = sbr.rel (0) target = $region53
    $region52: #{seq_tagger_forward.1} parent=1 // pred_region
      %124 = dma.done [#allocation7], 2048
    $region53: #{seq_tagger_forward.1} parent=1 // pred_fallthru
      _
    // Predicated region
    $region54: #{seq_tagger_forward.1} parent=1 // pred_check
      _
    $region55: #{seq_tagger_forward.1} parent=1 // pred_check_branch
      %126 = sbr.rel (0) target = $region57
    $region56: #{seq_tagger_forward.1} parent=1 // pred_region
      %128 = dma.done [#allocation12], 2048
    $region57: #{seq_tagger_forward.1} parent=1 // pred_fallthru
      _
    // Predicated region
    $region58: #{seq_tagger_forward.1} parent=1 // pred_check
      _
    $region59: #{seq_tagger_forward.1} parent=1 // pred_check_branch
      %130 = sbr.rel (0) target = $region61
    $region60: #{seq_tagger_forward.1} parent=1 // pred_region
      %132 = dma.done [#allocation12], 8192
    $region61: #{seq_tagger_forward.1} parent=1 // pred_fallthru
      _
    // Predicated region
    $region62: #{seq_tagger_forward.1} parent=1 // pred_check
      _
    $region63: #{seq_tagger_forward.1} parent=1 // pred_check_branch
      %134 = sbr.rel (0) target = $region65
    $region64: #{seq_tagger_forward.1} parent=1 // pred_region
      %136 = dma.done [#allocation15], 2048
    $region65: #{seq_tagger_forward.1} parent=1 // pred_fallthru
      _
    // Predicated region
    $region66: #{seq_tagger_forward.1} parent=1 // pred_check
      _
    $region67: #{seq_tagger_forward.1} parent=1 // pred_check_branch
      %138 = sbr.rel (0) target = $region69
    $region68: #{seq_tagger_forward.1} parent=1 // pred_region
      %140 = dma.done [#allocation15], 2048
    $region69: #{seq_tagger_forward.1} parent=1 // pred_fallthru
      _
    // Predicated region
    $region70: #{seq_tagger_forward.1} parent=1 // pred_check
      _
    $region71: #{seq_tagger_forward.1} parent=1 // pred_check_branch
      %142 = sbr.rel (0) target = $region73
    $region72: #{seq_tagger_forward.1} parent=1 // pred_region
      %144 = dma.done [#allocation18], 2048
    $region73: #{seq_tagger_forward.1} parent=1 // pred_fallthru
      _
    %145 = sfence
    %s146 = sld [smem:[#allocation6]]
    %s147 = scalar_lea.vmem %s1, %s146
    %v148 = vld [vmem:[%s147] sm:$0x1]
    %vm149 = vcmask 253952
    %150 = vst.msk [vmem:[#allocation2] sm:$0x1] %vm149, %v148
    %151 = vst.msk [vmem:[#allocation3 + $0xe] sm:$0x1] %vm149, %v148
    %s152 = sld [smem:[#allocation6 + $0x80]]
    %s153 = scalar_lea.vmem %s1, %s152
    %v154 = vld [vmem:[%s153] sm:$0x1]
    %155 = vst.msk [vmem:[#allocation2 + $0x1] sm:$0x1] %vm149, %v154
    %156 = vst.msk [vmem:[#allocation3 + $0xf] sm:$0x1] %vm149, %v154
    %s157 = sld [smem:[#allocation6 + $0x1]]
    %s158 = scalar_lea.vmem %s1, %s157
    %v159 = vld [vmem:[%s158] sm:$0x1]
    %160 = vst.msk [vmem:[#allocation2 + $0x2] sm:$0x1] %vm149, %v159
    %161 = vst.msk [vmem:[#allocation3 + $0xc] sm:$0x1] %vm149, %v159
    %s162 = sld [smem:[#allocation6 + $0x81]]
    %s163 = scalar_lea.vmem %s1, %s162
    %v164 = vld [vmem:[%s163] sm:$0x1]
    %165 = vst.msk [vmem:[#allocation2 + $0x3] sm:$0x1] %vm149, %v164
    %166 = vst.msk [vmem:[#allocation3 + $0xd] sm:$0x1] %vm149, %v164
    %s167 = sld [smem:[#allocation6 + $0x2]]
    %s168 = scalar_lea.vmem %s1, %s167
    %v169 = vld [vmem:[%s168] sm:$0x1]
    %170 = vst.msk [vmem:[#allocation2 + $0x4] sm:$0x1] %vm149, %v169
    %171 = vst.msk [vmem:[#allocation3 + $0xa] sm:$0x1] %vm149, %v169
    %s172 = sld [smem:[#allocation6 + $0x82]]
    %s173 = scalar_lea.vmem %s1, %s172
    %v174 = vld [vmem:[%s173] sm:$0x1]
    %175 = vst.msk [vmem:[#allocation2 + $0x5] sm:$0x1] %vm149, %v174
    %176 = vst.msk [vmem:[#allocation3 + $0xb] sm:$0x1] %vm149, %v174
    %s177 = sld [smem:[#allocation6 + $0x3]]
    %s178 = scalar_lea.vmem %s1, %s177
    %v179 = vld [vmem:[%s178] sm:$0x1]
    %180 = vst.msk [vmem:[#allocation2 + $0x6] sm:$0x1] %vm149, %v179
    %181 = vst.msk [vmem:[#allocation3 + $0x8] sm:$0x1] %vm149, %v179
    %s182 = sld [smem:[#allocation6 + $0x83]]
    %s183 = scalar_lea.vmem %s1, %s182
    %v184 = vld [vmem:[%s183] sm:$0x1]
    %185 = vst.msk [vmem:[#allocation2 + $0x7] sm:$0x1] %vm149, %v184
    %186 = vst.msk [vmem:[#allocation3 + $0x9] sm:$0x1] %vm149, %v184
    %s187 = sld [smem:[#allocation6 + $0x4]]
    %s188 = scalar_lea.vmem %s1, %s187
    %v189 = vld [vmem:[%s188] sm:$0x1]
    %190 = vst.msk [vmem:[#allocation2 + $0x8] sm:$0x1] %vm149, %v189
    %191 = vst.msk [vmem:[#allocation3 + $0x6] sm:$0x1] %vm149, %v189
    %s192 = sld [smem:[#allocation6 + $0x84]]
    %s193 = scalar_lea.vmem %s1, %s192
    %v194 = vld [vmem:[%s193] sm:$0x1]
    %195 = vst.msk [vmem:[#allocation2 + $0x9] sm:$0x1] %vm149, %v194
    %196 = vst.msk [vmem:[#allocation3 + $0x7] sm:$0x1] %vm149, %v194
    %s197 = sld [smem:[#allocation6 + $0x5]]
    %s198 = scalar_lea.vmem %s1, %s197
    %v199 = vld [vmem:[%s198] sm:$0x1]
    %200 = vst.msk [vmem:[#allocation2 + $0xa] sm:$0x1] %vm149, %v199
    %201 = vst.msk [vmem:[#allocation3 + $0x4] sm:$0x1] %vm149, %v199
    %s202 = sld [smem:[#allocation6 + $0x85]]
    %s203 = scalar_lea.vmem %s1, %s202
    %v204 = vld [vmem:[%s203] sm:$0x1]
    %205 = vst.msk [vmem:[#allocation2 + $0xb] sm:$0x1] %vm149, %v204
    %206 = vst.msk [vmem:[#allocation3 + $0x5] sm:$0x1] %vm149, %v204
    %s207 = sld [smem:[#allocation6 + $0x6]]
    %s208 = scalar_lea.vmem %s1, %s207
    %v209 = vld [vmem:[%s208] sm:$0x1]
    %210 = vst.msk [vmem:[#allocation2 + $0xc] sm:$0x1] %vm149, %v209
    %211 = vst.msk [vmem:[#allocation3 + $0x2] sm:$0x1] %vm149, %v209
    %s212 = sld [smem:[#allocation6 + $0x86]]
    %s213 = scalar_lea.vmem %s1, %s212
    %v214 = vld [vmem:[%s213] sm:$0x1]
    %215 = vst.msk [vmem:[#allocation2 + $0xd] sm:$0x1] %vm149, %v214
    %216 = vst.msk [vmem:[#allocation3 + $0x3] sm:$0x1] %vm149, %v214
    %s217 = sld [smem:[#allocation6 + $0x7]]
    %s218 = scalar_lea.vmem %s1, %s217
    %v219 = vld [vmem:[%s218] sm:$0x1]
    %220 = vst.msk [vmem:[#allocation2 + $0xe] sm:$0x1] %vm149, %v219
    %221 = vst.msk [vmem:[#allocation3] sm:$0x1] %vm149, %v219
    %s222 = sld [smem:[#allocation6 + $0x87]]
    %s223 = scalar_lea.vmem %s1, %s222
    %v224 = vld [vmem:[%s223] sm:$0x1]
    %225 = vst.msk [vmem:[#allocation2 + $0xf] sm:$0x1] %vm149, %v224
    %226 = vst.msk [vmem:[#allocation3 + $0x1] sm:$0x1] %vm149, %v224
    %v227 = vld [vmem:[#allocation2] sm:$0xff]
    %v228 = vld [vmem:[#allocation2 + $0x8] sm:$0xff]
    %v229 = vld [vmem:[#allocation10] sm:$0xff]
    %v230 = vld [vmem:[#allocation10 + $0x8] sm:$0xff]
    %v231 = vld [vmem:[#allocation10 + $0x10] sm:$0xff]
    %v232 = vld [vmem:[#allocation10 + $0x18] sm:$0xff]
    %v233 = vld [vmem:[#allocation10 + $0x20] sm:$0xff]
    %v234 = vld [vmem:[#allocation10 + $0x28] sm:$0xff]
    %v235 = vld [vmem:[#allocation10 + $0x30] sm:$0xff]
    %v236 = vld [vmem:[#allocation10 + $0x38] sm:$0xff]
    %v237 = vld [vmem:[#allocation10 + $0x40] sm:$0xff]
    %v238 = vld [vmem:[#allocation10 + $0x48] sm:$0xff]
    %v239 = vld [vmem:[#allocation10 + $0x50] sm:$0xff]
    %v240 = vld [vmem:[#allocation10 + $0x58] sm:$0xff]
    %v241 = vld [vmem:[#allocation10 + $0x60] sm:$0xff]
    %v242 = vld [vmem:[#allocation10 + $0x68] sm:$0xff]
    %v243 = vld [vmem:[#allocation10 + $0x70] sm:$0xff]
    %v244 = vld [vmem:[#allocation10 + $0x78] sm:$0xff]
    %v245 = vld [vmem:[#allocation3] sm:$0xff]
    %v246 = vld [vmem:[#allocation3 + $0x8] sm:$0xff]
    %v247 = vld [vmem:[#allocation11] sm:$0xff]
    %v248 = vld [vmem:[#allocation11 + $0x8] sm:$0xff]
    %v249 = vld [vmem:[#allocation11 + $0x10] sm:$0xff]
    %v250 = vld [vmem:[#allocation11 + $0x18] sm:$0xff]
    %v251 = vld [vmem:[#allocation11 + $0x20] sm:$0xff]
    %v252 = vld [vmem:[#allocation11 + $0x28] sm:$0xff]
    %v253 = vld [vmem:[#allocation11 + $0x30] sm:$0xff]
    %v254 = vld [vmem:[#allocation11 + $0x38] sm:$0xff]
    %v255 = vld [vmem:[#allocation11 + $0x40] sm:$0xff]
    %v256 = vld [vmem:[#allocation11 + $0x48] sm:$0xff]
    %v257 = vld [vmem:[#allocation11 + $0x50] sm:$0xff]
    %v258 = vld [vmem:[#allocation11 + $0x58] sm:$0xff]
    %v259 = vld [vmem:[#allocation11 + $0x60] sm:$0xff]
    %v260 = vld [vmem:[#allocation11 + $0x68] sm:$0xff]
    %v261 = vld [vmem:[#allocation11 + $0x70] sm:$0xff]
    %v262 = vld [vmem:[#allocation11 + $0x78] sm:$0xff]
    %vm263 = vcmask 261120
    %v265 = vsel %vm263, %v245, 0
    %v268 = vsel %vm263, %v246, 0
    %270 = vmatpush.msra.mxu0 0.0
    %271 = vmatpush.msra.mxu0 0.0
    %272 = vmatpush.msra.mxu0 0.0
    %273 = vmatpush.msra.mxu0 0.0
    %274 = vmatpush.msra.mxu0 0.0
    %275 = vmatpush.msra.mxu0 0.0
    %276 = vmatpush.msra.mxu0 0.0
    %277 = vmatpush.msra.mxu0 0.0
    %278 = vmatpush.msra.mxu0 0.0
    %279 = vmatpush.msra.mxu0 0.0
    %280 = vmatpush.msra.mxu0 0.0
    %281 = vmatpush.msra.mxu0 0.0
    %282 = vmatpush.msra.mxu0 %v259
    %283 = vmatpush.msra.mxu0 %v255
    %284 = vmatpush.msra.mxu0 %v251
    %285 = vmatpush.msra.mxu0 %v247
    %286 = vmatmul.f32.gmra.mxu0 %v265
    %v287 = vpop.f32.mrf.mxu0
    %v288 = vadd.f32 0.0, %v287
    %289 = vmatmul.f32.gmra.mxu0 %v268
    %v290 = vpop.f32.mrf.mxu0
    %v291 = vadd.f32 0.0, %v290
    %292 = vdwg.mxu0
    %293 = vmatpush.msra.mxu0 0.0
    %294 = vmatpush.msra.mxu0 0.0
    %295 = vmatpush.msra.mxu0 0.0
    %296 = vmatpush.msra.mxu0 0.0
    %297 = vmatpush.msra.mxu0 0.0
    %298 = vmatpush.msra.mxu0 0.0
    %299 = vmatpush.msra.mxu0 0.0
    %300 = vmatpush.msra.mxu0 0.0
    %301 = vmatpush.msra.mxu0 0.0
    %302 = vmatpush.msra.mxu0 0.0
    %303 = vmatpush.msra.mxu0 0.0
    %304 = vmatpush.msra.mxu0 0.0
    %305 = vmatpush.msra.mxu0 %v260
    %306 = vmatpush.msra.mxu0 %v256
    %307 = vmatpush.msra.mxu0 %v252
    %308 = vmatpush.msra.mxu0 %v248
    %309 = vmatmul.f32.gmra.mxu0 %v265
    %v310 = vpop.f32.mrf.mxu0
    %v311 = vadd.f32 0.0, %v310
    %312 = vmatmul.f32.gmra.mxu0 %v268
    %v313 = vpop.f32.mrf.mxu0
    %v314 = vadd.f32 0.0, %v313
    %315 = vdwg.mxu0
    %316 = vmatpush.msra.mxu0 0.0
    %317 = vmatpush.msra.mxu0 0.0
    %318 = vmatpush.msra.mxu0 0.0
    %319 = vmatpush.msra.mxu0 0.0
    %320 = vmatpush.msra.mxu0 0.0
    %321 = vmatpush.msra.mxu0 0.0
    %322 = vmatpush.msra.mxu0 0.0
    %323 = vmatpush.msra.mxu0 0.0
    %324 = vmatpush.msra.mxu0 0.0
    %325 = vmatpush.msra.mxu0 0.0
    %326 = vmatpush.msra.mxu0 0.0
    %327 = vmatpush.msra.mxu0 0.0
    %328 = vmatpush.msra.mxu0 %v261
    %329 = vmatpush.msra.mxu0 %v257
    %330 = vmatpush.msra.mxu0 %v253
    %331 = vmatpush.msra.mxu0 %v249
    %332 = vmatmul.f32.gmra.mxu0 %v265
    %v333 = vpop.f32.mrf.mxu0
    %v334 = vadd.f32 0.0, %v333
    %335 = vmatmul.f32.gmra.mxu0 %v268
    %v336 = vpop.f32.mrf.mxu0
    %v337 = vadd.f32 0.0, %v336
    %338 = vdwg.mxu0
    %339 = vmatpush.msra.mxu0 0.0
    %340 = vmatpush.msra.mxu0 0.0
    %341 = vmatpush.msra.mxu0 0.0
    %342 = vmatpush.msra.mxu0 0.0
    %343 = vmatpush.msra.mxu0 0.0
    %344 = vmatpush.msra.mxu0 0.0
    %345 = vmatpush.msra.mxu0 0.0
    %346 = vmatpush.msra.mxu0 0.0
    %347 = vmatpush.msra.mxu0 0.0
    %348 = vmatpush.msra.mxu0 0.0
    %349 = vmatpush.msra.mxu0 0.0
    %350 = vmatpush.msra.mxu0 0.0
    %351 = vmatpush.msra.mxu0 %v262
    %352 = vmatpush.msra.mxu0 %v258
    %353 = vmatpush.msra.mxu0 %v254
    %354 = vmatpush.msra.mxu0 %v250
    %355 = vmatmul.f32.gmra.mxu0 %v265
    %v356 = vpop.f32.mrf.mxu0
    %v357 = vadd.f32 0.0, %v356
    %358 = vmatmul.f32.gmra.mxu0 %v268
    %v359 = vpop.f32.mrf.mxu0
    %v360 = vadd.f32 0.0, %v359
    %361 = vdwg.mxu0
    %v363 = vsel %vm263, %v227, 0
    %v366 = vsel %vm263, %v228, 0
    %368 = vmatpush.msra.mxu0 0.0
    %369 = vmatpush.msra.mxu0 0.0
    %370 = vmatpush.msra.mxu0 0.0
    %371 = vmatpush.msra.mxu0 0.0
    %372 = vmatpush.msra.mxu0 0.0
    %373 = vmatpush.msra.mxu0 0.0
    %374 = vmatpush.msra.mxu0 0.0
    %375 = vmatpush.msra.mxu0 0.0
    %376 = vmatpush.msra.mxu0 0.0
    %377 = vmatpush.msra.mxu0 0.0
    %378 = vmatpush.msra.mxu0 0.0
    %379 = vmatpush.msra.mxu0 0.0
    %380 = vmatpush.msra.mxu0 %v241
    %381 = vmatpush.msra.mxu0 %v237
    %382 = vmatpush.msra.mxu0 %v233
    %383 = vmatpush.msra.mxu0 %v229
    %384 = vmatmul.f32.gmra.mxu0 %v363
    %v385 = vpop.f32.mrf.mxu0
    %v386 = vadd.f32 %v288, %v385
    %387 = vmatmul.f32.gmra.mxu0 %v366
    %v388 = vpop.f32.mrf.mxu0
    %v389 = vadd.f32 %v291, %v388
    %390 = vdwg.mxu0
    %391 = vmatpush.msra.mxu0 0.0
    %392 = vmatpush.msra.mxu0 0.0
    %393 = vmatpush.msra.mxu0 0.0
    %394 = vmatpush.msra.mxu0 0.0
    %395 = vmatpush.msra.mxu0 0.0
    %396 = vmatpush.msra.mxu0 0.0
    %397 = vmatpush.msra.mxu0 0.0
    %398 = vmatpush.msra.mxu0 0.0
    %399 = vmatpush.msra.mxu0 0.0
    %400 = vmatpush.msra.mxu0 0.0
    %401 = vmatpush.msra.mxu0 0.0
    %402 = vmatpush.msra.mxu0 0.0
    %403 = vmatpush.msra.mxu0 %v242
    %404 = vmatpush.msra.mxu0 %v238
    %405 = vmatpush.msra.mxu0 %v234
    %406 = vmatpush.msra.mxu0 %v230
    %407 = vmatmul.f32.gmra.mxu0 %v363
    %v408 = vpop.f32.mrf.mxu0
    %v409 = vadd.f32 %v311, %v408
    %410 = vmatmul.f32.gmra.mxu0 %v366
    %v411 = vpop.f32.mrf.mxu0
    %v412 = vadd.f32 %v314, %v411
    %413 = vdwg.mxu0
    %414 = vmatpush.msra.mxu0 0.0
    %415 = vmatpush.msra.mxu0 0.0
    %416 = vmatpush.msra.mxu0 0.0
    %417 = vmatpush.msra.mxu0 0.0
    %418 = vmatpush.msra.mxu0 0.0
    %419 = vmatpush.msra.mxu0 0.0
    %420 = vmatpush.msra.mxu0 0.0
    %421 = vmatpush.msra.mxu0 0.0
    %422 = vmatpush.msra.mxu0 0.0
    %423 = vmatpush.msra.mxu0 0.0
    %424 = vmatpush.msra.mxu0 0.0
    %425 = vmatpush.msra.mxu0 0.0
    %426 = vmatpush.msra.mxu0 %v243
    %427 = vmatpush.msra.mxu0 %v239
    %428 = vmatpush.msra.mxu0 %v235
    %429 = vmatpush.msra.mxu0 %v231
    %430 = vmatmul.f32.gmra.mxu0 %v363
    %v431 = vpop.f32.mrf.mxu0
    %v432 = vadd.f32 %v334, %v431
    %433 = vmatmul.f32.gmra.mxu0 %v366
    %v434 = vpop.f32.mrf.mxu0
    %v435 = vadd.f32 %v337, %v434
    %436 = vdwg.mxu0
    %437 = vmatpush.msra.mxu0 0.0
    %438 = vmatpush.msra.mxu0 0.0
    %439 = vmatpush.msra.mxu0 0.0
    %440 = vmatpush.msra.mxu0 0.0
    %441 = vmatpush.msra.mxu0 0.0
    %442 = vmatpush.msra.mxu0 0.0
    %443 = vmatpush.msra.mxu0 0.0
    %444 = vmatpush.msra.mxu0 0.0
    %445 = vmatpush.msra.mxu0 0.0
    %446 = vmatpush.msra.mxu0 0.0
    %447 = vmatpush.msra.mxu0 0.0
    %448 = vmatpush.msra.mxu0 0.0
    %449 = vmatpush.msra.mxu0 %v244
    %450 = vmatpush.msra.mxu0 %v240
    %451 = vmatpush.msra.mxu0 %v236
    %452 = vmatpush.msra.mxu0 %v232
    %453 = vmatmul.f32.gmra.mxu0 %v363
    %v454 = vpop.f32.mrf.mxu0
    %v455 = vadd.f32 %v357, %v454
    %456 = vmatmul.f32.gmra.mxu0 %v366
    %v457 = vpop.f32.mrf.mxu0
    %v458 = vadd.f32 %v360, %v457
    %459 = vdwg.mxu0
    %v460 = vld [vmem:[%s4] sm:$0xf]
    %v462 = vperm.slane %v460, 0
    %v463 = vperm.slane %v460, 1
    %v464 = vperm.slane %v460, 2
    %v465 = vperm.slane %v460, 3
    %v470 = vadd.f32 %v386, %v462
    %v471 = vadd.f32 %v409, %v463
    %v472 = vadd.f32 %v432, %v464
    %v473 = vadd.f32 %v455, %v465
    %v474 = vadd.f32 %v389, %v462
    %v475 = vadd.f32 %v412, %v463
    %v476 = vadd.f32 %v435, %v464
    %v477 = vadd.f32 %v458, %v465
    %v478 = vld [vmem:[#allocation13] sm:$0xff]
    %v479 = vld [vmem:[#allocation13 + $0x8] sm:$0xff]
    %v480 = vld [vmem:[#allocation13 + $0x10] sm:$0xff]
    %v481 = vld [vmem:[#allocation13 + $0x18] sm:$0xff]
    %v482 = vld [vmem:[#allocation13 + $0x20] sm:$0xff]
    %v483 = vld [vmem:[#allocation13 + $0x28] sm:$0xff]
    %v484 = vld [vmem:[#allocation13 + $0x30] sm:$0xff]
    %v485 = vld [vmem:[#allocation13 + $0x38] sm:$0xff]
    %v486 = vld [vmem:[#allocation13 + $0x40] sm:$0xff]
    %v487 = vld [vmem:[#allocation13 + $0x48] sm:$0xff]
    %v488 = vld [vmem:[#allocation13 + $0x50] sm:$0xff]
    %v489 = vld [vmem:[#allocation13 + $0x58] sm:$0xff]
    %v490 = vld [vmem:[#allocation13 + $0x60] sm:$0xff]
    %v491 = vld [vmem:[#allocation13 + $0x68] sm:$0xff]
    %v492 = vld [vmem:[#allocation13 + $0x70] sm:$0xff]
    %v493 = vld [vmem:[#allocation13 + $0x78] sm:$0xff]
    %v494 = vld [vmem:[#allocation13 + $0x80] sm:$0xff]
    %v495 = vld [vmem:[#allocation13 + $0x88] sm:$0xff]
    %v496 = vld [vmem:[#allocation13 + $0x90] sm:$0xff]
    %v497 = vld [vmem:[#allocation13 + $0x98] sm:$0xff]
    %v498 = vld [vmem:[#allocation13 + $0xa0] sm:$0xff]
    %v499 = vld [vmem:[#allocation13 + $0xa8] sm:$0xff]
    %v500 = vld [vmem:[#allocation13 + $0xb0] sm:$0xff]
    %v501 = vld [vmem:[#allocation13 + $0xb8] sm:$0xff]
    %v502 = vld [vmem:[#allocation13 + $0xc0] sm:$0xff]
    %v503 = vld [vmem:[#allocation13 + $0xc8] sm:$0xff]
    %v504 = vld [vmem:[#allocation13 + $0xd0] sm:$0xff]
    %v505 = vld [vmem:[#allocation13 + $0xd8] sm:$0xff]
    %v506 = vld [vmem:[#allocation13 + $0xe0] sm:$0xff]
    %v507 = vld [vmem:[#allocation13 + $0xe8] sm:$0xff]
    %v508 = vld [vmem:[#allocation13 + $0xf0] sm:$0xff]
    %v509 = vld [vmem:[#allocation13 + $0xf8] sm:$0xff]
    %v510 = vld [vmem:[#allocation13 + $0x100] sm:$0xff]
    %v511 = vld [vmem:[#allocation13 + $0x108] sm:$0xff]
    %v512 = vld [vmem:[#allocation13 + $0x110] sm:$0xff]
    %v513 = vld [vmem:[#allocation13 + $0x118] sm:$0xff]
    %v514 = vld [vmem:[#allocation13 + $0x120] sm:$0xff]
    %v515 = vld [vmem:[#allocation13 + $0x128] sm:$0xff]
    %v516 = vld [vmem:[#allocation13 + $0x130] sm:$0xff]
    %v517 = vld [vmem:[#allocation13 + $0x138] sm:$0xff]
    %v518 = vld [vmem:[#allocation13 + $0x140] sm:$0xff]
    %v519 = vld [vmem:[#allocation13 + $0x148] sm:$0xff]
    %v520 = vld [vmem:[#allocation13 + $0x150] sm:$0xff]
    %v521 = vld [vmem:[#allocation13 + $0x158] sm:$0xff]
    %v522 = vld [vmem:[#allocation13 + $0x160] sm:$0xff]
    %v523 = vld [vmem:[#allocation13 + $0x168] sm:$0xff]
    %v524 = vld [vmem:[#allocation13 + $0x170] sm:$0xff]
    %v525 = vld [vmem:[#allocation13 + $0x178] sm:$0xff]
    %v526 = vld [vmem:[#allocation13 + $0x180] sm:$0xff]
    %v527 = vld [vmem:[#allocation13 + $0x188] sm:$0xff]
    %v528 = vld [vmem:[#allocation13 + $0x190] sm:$0xff]
    %v529 = vld [vmem:[#allocation13 + $0x198] sm:$0xff]
    %v530 = vld [vmem:[#allocation13 + $0x1a0] sm:$0xff]
    %v531 = vld [vmem:[#allocation13 + $0x1a8] sm:$0xff]
    %v532 = vld [vmem:[#allocation13 + $0x1b0] sm:$0xff]
    %v533 = vld [vmem:[#allocation13 + $0x1b8] sm:$0xff]
    %v534 = vld [vmem:[#allocation13 + $0x1c0] sm:$0xff]
    %v535 = vld [vmem:[#allocation13 + $0x1c8] sm:$0xff]
    %v536 = vld [vmem:[#allocation13 + $0x1d0] sm:$0xff]
    %v537 = vld [vmem:[#allocation13 + $0x1d8] sm:$0xff]
    %v538 = vld [vmem:[#allocation13 + $0x1e0] sm:$0xff]
    %v539 = vld [vmem:[#allocation13 + $0x1e8] sm:$0xff]
    %v540 = vld [vmem:[#allocation13 + $0x1f0] sm:$0xff]
    %v541 = vld [vmem:[#allocation13 + $0x1f8] sm:$0xff]
    %542 = vmatpush.msra.mxu0 %v538
    %543 = vmatpush.msra.mxu0 %v534
    %544 = vmatpush.msra.mxu0 %v530
    %545 = vmatpush.msra.mxu0 %v526
    %546 = vmatpush.msra.mxu0 %v522
    %547 = vmatpush.msra.mxu0 %v518
    %548 = vmatpush.msra.mxu0 %v514
    %549 = vmatpush.msra.mxu0 %v510
    %550 = vmatpush.msra.mxu0 %v506
    %551 = vmatpush.msra.mxu0 %v502
    %552 = vmatpush.msra.mxu0 %v498
    %553 = vmatpush.msra.mxu0 %v494
    %554 = vmatpush.msra.mxu0 %v490
    %555 = vmatpush.msra.mxu0 %v486
    %556 = vmatpush.msra.mxu0 %v482
    %557 = vmatpush.msra.mxu0 %v478
    %558 = vmatmul.f32.gmra.mxu0 0.0
    %v559 = vpop.f32.mrf.mxu0
    %v560 = vadd.f32 %v470, %v559
    %561 = vdwg.mxu0
    %562 = vmatpush.msra.mxu0 %v539
    %563 = vmatpush.msra.mxu0 %v535
    %564 = vmatpush.msra.mxu0 %v531
    %565 = vmatpush.msra.mxu0 %v527
    %566 = vmatpush.msra.mxu0 %v523
    %567 = vmatpush.msra.mxu0 %v519
    %568 = vmatpush.msra.mxu0 %v515
    %569 = vmatpush.msra.mxu0 %v511
    %570 = vmatpush.msra.mxu0 %v507
    %571 = vmatpush.msra.mxu0 %v503
    %572 = vmatpush.msra.mxu0 %v499
    %573 = vmatpush.msra.mxu0 %v495
    %574 = vmatpush.msra.mxu0 %v491
    %575 = vmatpush.msra.mxu0 %v487
    %576 = vmatpush.msra.mxu0 %v483
    %577 = vmatpush.msra.mxu0 %v479
    %578 = vmatmul.f32.gmra.mxu0 0.0
    %v579 = vpop.f32.mrf.mxu0
    %v580 = vadd.f32 %v471, %v579
    %581 = vdwg.mxu0
    %582 = vmatpush.msra.mxu0 %v540
    %583 = vmatpush.msra.mxu0 %v536
    %584 = vmatpush.msra.mxu0 %v532
    %585 = vmatpush.msra.mxu0 %v528
    %586 = vmatpush.msra.mxu0 %v524
    %587 = vmatpush.msra.mxu0 %v520
    %588 = vmatpush.msra.mxu0 %v516
    %589 = vmatpush.msra.mxu0 %v512
    %590 = vmatpush.msra.mxu0 %v508
    %591 = vmatpush.msra.mxu0 %v504
    %592 = vmatpush.msra.mxu0 %v500
    %593 = vmatpush.msra.mxu0 %v496
    %594 = vmatpush.msra.mxu0 %v492
    %595 = vmatpush.msra.mxu0 %v488
    %596 = vmatpush.msra.mxu0 %v484
    %597 = vmatpush.msra.mxu0 %v480
    %598 = vmatmul.f32.gmra.mxu0 0.0
    %v599 = vpop.f32.mrf.mxu0
    %v600 = vadd.f32 %v472, %v599
    %601 = vdwg.mxu0
    %602 = vmatpush.msra.mxu0 %v541
    %603 = vmatpush.msra.mxu0 %v537
    %604 = vmatpush.msra.mxu0 %v533
    %605 = vmatpush.msra.mxu0 %v529
    %606 = vmatpush.msra.mxu0 %v525
    %607 = vmatpush.msra.mxu0 %v521
    %608 = vmatpush.msra.mxu0 %v517
    %609 = vmatpush.msra.mxu0 %v513
    %610 = vmatpush.msra.mxu0 %v509
    %611 = vmatpush.msra.mxu0 %v505
    %612 = vmatpush.msra.mxu0 %v501
    %613 = vmatpush.msra.mxu0 %v497
    %614 = vmatpush.msra.mxu0 %v493
    %615 = vmatpush.msra.mxu0 %v489
    %616 = vmatpush.msra.mxu0 %v485
    %617 = vmatpush.msra.mxu0 %v481
    %618 = vmatmul.f32.gmra.mxu0 0.0
    %v619 = vpop.f32.mrf.mxu0
    %v620 = vadd.f32 %v473, %v619
    %621 = vdwg.mxu0
    %v622 = vxor.u32 %v560, 2147483648
    %v623 = vmul.f32 %v622, 1.442695
    %v624 = vpow.pop %v623
    %v625 = vadd.f32 %v624, 1.0
    %v626 = vrcp.pop %v625
    %v627 = vmul.f32 %v625, %v626
    %v628 = vsub.f32 1.0, %v627
    %v629 = vmul.f32 %v626, %v628
    %v630 = vadd.f32 %v626, %v629
    %vm631 = vweird.f32 %v625
    %vm632 = vweird.f32 %v626
    %vm633 = vmor %vm631, %vm632
    %v634 = vsel %vm633, %v626, %v630
    %v635 = vand.u32 2147483647, %v625
    %vm636 = vcmp.eq.f32.partialorder %v635, 8.507059e+37
    %v637 = vand.u32 %v625, 2147483648
    %v638 = vor.u32 1.1754944e-38, %v637
    %v639 = vsel %vm636, %v638, %v634
    %v640 = vmul.f32 1.0, %v639
    %v641 = vxor.u32 %v580, 2147483648
    %v642 = vmul.f32 %v641, 1.442695
    %v643 = vpow.pop %v642
    %v644 = vadd.f32 %v643, 1.0
    %v645 = vrcp.pop %v644
    %v646 = vmul.f32 %v644, %v645
    %v647 = vsub.f32 1.0, %v646
    %v648 = vmul.f32 %v645, %v647
    %v649 = vadd.f32 %v645, %v648
    %vm650 = vweird.f32 %v644
    %vm651 = vweird.f32 %v645
    %vm652 = vmor %vm650, %vm651
    %v653 = vsel %vm652, %v645, %v649
    %v654 = vand.u32 2147483647, %v644
    %vm655 = vcmp.eq.f32.partialorder %v654, 8.507059e+37
    %v656 = vand.u32 %v644, 2147483648
    %v657 = vor.u32 1.1754944e-38, %v656
    %v658 = vsel %vm655, %v657, %v653
    %v659 = vmul.f32 1.0, %v658
    %v660 = vtanh.pop %v600
    %v661 = vxor.u32 %v620, 2147483648
    %v662 = vmul.f32 %v661, 1.442695
    %v663 = vpow.pop %v662
    %v664 = vadd.f32 %v663, 1.0
    %v665 = vrcp.pop %v664
    %v666 = vmul.f32 %v664, %v665
    %v667 = vsub.f32 1.0, %v666
    %v668 = vmul.f32 %v665, %v667
    %v669 = vadd.f32 %v665, %v668
    %vm670 = vweird.f32 %v664
    %vm671 = vweird.f32 %v665
    %vm672 = vmor %vm670, %vm671
    %v673 = vsel %vm672, %v665, %v669
    %v674 = vand.u32 2147483647, %v664
    %vm675 = vcmp.eq.f32.partialorder %v674, 8.507059e+37
    %v676 = vand.u32 %v664, 2147483648
    %v677 = vor.u32 1.1754944e-38, %v676
    %v678 = vsel %vm675, %v677, %v673
    %v679 = vmul.f32 1.0, %v678
    %v680 = vmul.f32 %v659, 0.0
    %v681 = vmul.f32 %v640, %v660
    %v682 = vadd.f32 %v680, %v681
    %v683 = vtanh.pop %v682
    %v684 = vmul.f32 %v679, %v683
    %685 = vst [vmem:[#allocation4] sm:$0x1] %v684
    %686 = vst [vmem:[#allocation5 + $0x7] sm:$0x1] %v684
    %687 = vst [vmem:[#allocation4 + $0x7] sm:$0x2] %v684
    %688 = vst [vmem:[#allocation5 + $0xe] sm:$0x2] %v684
    %v693 = vrot.slane %v470, 2
    %v694 = vrot.slane %v471, 2
    %v695 = vrot.slane %v472, 2
    %v696 = vrot.slane %v473, 2
    %701 = vmatpush.msra.mxu0 %v538
    %702 = vmatpush.msra.mxu0 %v534
    %703 = vmatpush.msra.mxu0 %v530
    %704 = vmatpush.msra.mxu0 %v526
    %705 = vmatpush.msra.mxu0 %v522
    %706 = vmatpush.msra.mxu0 %v518
    %707 = vmatpush.msra.mxu0 %v514
    %708 = vmatpush.msra.mxu0 %v510
    %709 = vmatpush.msra.mxu0 %v506
    %710 = vmatpush.msra.mxu0 %v502
    %711 = vmatpush.msra.mxu0 %v498
    %712 = vmatpush.msra.mxu0 %v494
    %713 = vmatpush.msra.mxu0 %v490
    %714 = vmatpush.msra.mxu0 %v486
    %715 = vmatpush.msra.mxu0 %v482
    %716 = vmatpush.msra.mxu0 %v478
    %717 = vmatmul.f32.gmra.mxu0 %v684
    %v718 = vpop.f32.mrf.mxu0
    %v719 = vadd.f32 %v693, %v718
    %720 = vdwg.mxu0
    %721 = vmatpush.msra.mxu0 %v539
    %722 = vmatpush.msra.mxu0 %v535
    %723 = vmatpush.msra.mxu0 %v531
    %724 = vmatpush.msra.mxu0 %v527
    %725 = vmatpush.msra.mxu0 %v523
    %726 = vmatpush.msra.mxu0 %v519
    %727 = vmatpush.msra.mxu0 %v515
    %728 = vmatpush.msra.mxu0 %v511
    %729 = vmatpush.msra.mxu0 %v507
    %730 = vmatpush.msra.mxu0 %v503
    %731 = vmatpush.msra.mxu0 %v499
    %732 = vmatpush.msra.mxu0 %v495
    %733 = vmatpush.msra.mxu0 %v491
    %734 = vmatpush.msra.mxu0 %v487
    %735 = vmatpush.msra.mxu0 %v483
    %736 = vmatpush.msra.mxu0 %v479
    %737 = vmatmul.f32.gmra.mxu0 %v684
    %v738 = vpop.f32.mrf.mxu0
    %v739 = vadd.f32 %v694, %v738
    %740 = vdwg.mxu0
    %741 = vmatpush.msra.mxu0 %v540
    %742 = vmatpush.msra.mxu0 %v536
    %743 = vmatpush.msra.mxu0 %v532
    %744 = vmatpush.msra.mxu0 %v528
    %745 = vmatpush.msra.mxu0 %v524
    %746 = vmatpush.msra.mxu0 %v520
    %747 = vmatpush.msra.mxu0 %v516
    %748 = vmatpush.msra.mxu0 %v512
    %749 = vmatpush.msra.mxu0 %v508
    %750 = vmatpush.msra.mxu0 %v504
    %751 = vmatpush.msra.mxu0 %v500
    %752 = vmatpush.msra.mxu0 %v496
    %753 = vmatpush.msra.mxu0 %v492
    %754 = vmatpush.msra.mxu0 %v488
    %755 = vmatpush.msra.mxu0 %v484
    %756 = vmatpush.msra.mxu0 %v480
    %757 = vmatmul.f32.gmra.mxu0 %v684
    %v758 = vpop.f32.mrf.mxu0
    %v759 = vadd.f32 %v695, %v758
    %760 = vdwg.mxu0
    %761 = vmatpush.msra.mxu0 %v541
    %762 = vmatpush.msra.mxu0 %v537
    %763 = vmatpush.msra.mxu0 %v533
    %764 = vmatpush.msra.mxu0 %v529
    %765 = vmatpush.msra.mxu0 %v525
    %766 = vmatpush.msra.mxu0 %v521
    %767 = vmatpush.msra.mxu0 %v517
    %768 = vmatpush.msra.mxu0 %v513
    %769 = vmatpush.msra.mxu0 %v509
    %770 = vmatpush.msra.mxu0 %v505
    %771 = vmatpush.msra.mxu0 %v501
    %772 = vmatpush.msra.mxu0 %v497
    %773 = vmatpush.msra.mxu0 %v493
    %774 = vmatpush.msra.mxu0 %v489
    %775 = vmatpush.msra.mxu0 %v485
    %776 = vmatpush.msra.mxu0 %v481
    %777 = vmatmul.f32.gmra.mxu0 %v684
    %v778 = vpop.f32.mrf.mxu0
    %v779 = vadd.f32 %v696, %v778
    %780 = vdwg.mxu0
    %v781 = vxor.u32 %v719, 2147483648
    %v782 = vmul.f32 %v781, 1.442695
    %v783 = vpow.pop %v782
    %v784 = vadd.f32 %v783, 1.0
    %v785 = vrcp.pop %v784
    %v786 = vmul.f32 %v784, %v785
    %v787 = vsub.f32 1.0, %v786
    %v788 = vmul.f32 %v785, %v787
    %v789 = vadd.f32 %v785, %v788
    %vm790 = vweird.f32 %v784
    %vm791 = vweird.f32 %v785
    %vm792 = vmor %vm790, %vm791
    %v793 = vsel %vm792, %v785, %v789
    %v794 = vand.u32 2147483647, %v784
    %vm795 = vcmp.eq.f32.partialorder %v794, 8.507059e+37
    %v796 = vand.u32 %v784, 2147483648
    %v797 = vor.u32 1.1754944e-38, %v796
    %v798 = vsel %vm795, %v797, %v793
    %v799 = vmul.f32 1.0, %v798
    %v800 = vxor.u32 %v739, 2147483648
    %v801 = vmul.f32 %v800, 1.442695
    %v802 = vpow.pop %v801
    %v803 = vadd.f32 %v802, 1.0
    %v804 = vrcp.pop %v803
    %v805 = vmul.f32 %v803, %v804
    %v806 = vsub.f32 1.0, %v805
    %v807 = vmul.f32 %v804, %v806
    %v808 = vadd.f32 %v804, %v807
    %vm809 = vweird.f32 %v803
    %vm810 = vweird.f32 %v804
    %vm811 = vmor %vm809, %vm810
    %v812 = vsel %vm811, %v804, %v808
    %v813 = vand.u32 2147483647, %v803
    %vm814 = vcmp.eq.f32.partialorder %v813, 8.507059e+37
    %v815 = vand.u32 %v803, 2147483648
    %v816 = vor.u32 1.1754944e-38, %v815
    %v817 = vsel %vm814, %v816, %v812
    %v818 = vmul.f32 1.0, %v817
    %v819 = vtanh.pop %v759
    %v820 = vxor.u32 %v779, 2147483648
    %v821 = vmul.f32 %v820, 1.442695
    %v822 = vpow.pop %v821
    %v823 = vadd.f32 %v822, 1.0
    %v824 = vrcp.pop %v823
    %v825 = vmul.f32 %v823, %v824
    %v826 = vsub.f32 1.0, %v825
    %v827 = vmul.f32 %v824, %v826
    %v828 = vadd.f32 %v824, %v827
    %vm829 = vweird.f32 %v823
    %vm830 = vweird.f32 %v824
    %vm831 = vmor %vm829, %vm830
    %v832 = vsel %vm831, %v824, %v828
    %v833 = vand.u32 2147483647, %v823
    %vm834 = vcmp.eq.f32.partialorder %v833, 8.507059e+37
    %v835 = vand.u32 %v823, 2147483648
    %v836 = vor.u32 1.1754944e-38, %v835
    %v837 = vsel %vm834, %v836, %v832
    %v838 = vmul.f32 1.0, %v837
    %v839 = vmul.f32 %v818, %v682
    %v840 = vmul.f32 %v799, %v819
    %v841 = vadd.f32 %v839, %v840
    %v842 = vtanh.pop %v841
    %v843 = vmul.f32 %v838, %v842
    %844 = vst [vmem:[#allocation4 + $0x1] sm:$0x1] %v843
    %845 = vst [vmem:[#allocation5 + $0x6] sm:$0x1] %v843
    %846 = vst [vmem:[#allocation4 + $0x8] sm:$0x2] %v843
    %847 = vst [vmem:[#allocation5 + $0xd] sm:$0x2] %v843
    %v848 = vrot.slane %v470, 4
    %v849 = vrot.slane %v471, 4
    %v850 = vrot.slane %v472, 4
    %v851 = vrot.slane %v473, 4
    %856 = vmatpush.msra.mxu0 %v538
    %857 = vmatpush.msra.mxu0 %v534
    %858 = vmatpush.msra.mxu0 %v530
    %859 = vmatpush.msra.mxu0 %v526
    %860 = vmatpush.msra.mxu0 %v522
    %861 = vmatpush.msra.mxu0 %v518
    %862 = vmatpush.msra.mxu0 %v514
    %863 = vmatpush.msra.mxu0 %v510
    %864 = vmatpush.msra.mxu0 %v506
    %865 = vmatpush.msra.mxu0 %v502
    %866 = vmatpush.msra.mxu0 %v498
    %867 = vmatpush.msra.mxu0 %v494
    %868 = vmatpush.msra.mxu0 %v490
    %869 = vmatpush.msra.mxu0 %v486
    %870 = vmatpush.msra.mxu0 %v482
    %871 = vmatpush.msra.mxu0 %v478
    %872 = vmatmul.f32.gmra.mxu0 %v843
    %v873 = vpop.f32.mrf.mxu0
    %v874 = vadd.f32 %v848, %v873
    %875 = vdwg.mxu0
    %876 = vmatpush.msra.mxu0 %v539
    %877 = vmatpush.msra.mxu0 %v535
    %878 = vmatpush.msra.mxu0 %v531
    %879 = vmatpush.msra.mxu0 %v527
    %880 = vmatpush.msra.mxu0 %v523
    %881 = vmatpush.msra.mxu0 %v519
    %882 = vmatpush.msra.mxu0 %v515
    %883 = vmatpush.msra.mxu0 %v511
    %884 = vmatpush.msra.mxu0 %v507
    %885 = vmatpush.msra.mxu0 %v503
    %886 = vmatpush.msra.mxu0 %v499
    %887 = vmatpush.msra.mxu0 %v495
    %888 = vmatpush.msra.mxu0 %v491
    %889 = vmatpush.msra.mxu0 %v487
    %890 = vmatpush.msra.mxu0 %v483
    %891 = vmatpush.msra.mxu0 %v479
    %892 = vmatmul.f32.gmra.mxu0 %v843
    %v893 = vpop.f32.mrf.mxu0
    %v894 = vadd.f32 %v849, %v893
    %895 = vdwg.mxu0
    %896 = vmatpush.msra.mxu0 %v540
    %897 = vmatpush.msra.mxu0 %v536
    %898 = vmatpush.msra.mxu0 %v532
    %899 = vmatpush.msra.mxu0 %v528
    %900 = vmatpush.msra.mxu0 %v524
    %901 = vmatpush.msra.mxu0 %v520
    %902 = vmatpush.msra.mxu0 %v516
    %903 = vmatpush.msra.mxu0 %v512
    %904 = vmatpush.msra.mxu0 %v508
    %905 = vmatpush.msra.mxu0 %v504
    %906 = vmatpush.msra.mxu0 %v500
    %907 = vmatpush.msra.mxu0 %v496
    %908 = vmatpush.msra.mxu0 %v492
    %909 = vmatpush.msra.mxu0 %v488
    %910 = vmatpush.msra.mxu0 %v484
    %911 = vmatpush.msra.mxu0 %v480
    %912 = vmatmul.f32.gmra.mxu0 %v843
    %v913 = vpop.f32.mrf.mxu0
    %v914 = vadd.f32 %v850, %v913
    %915 = vdwg.mxu0
    %916 = vmatpush.msra.mxu0 %v541
    %917 = vmatpush.msra.mxu0 %v537
    %918 = vmatpush.msra.mxu0 %v533
    %919 = vmatpush.msra.mxu0 %v529
    %920 = vmatpush.msra.mxu0 %v525
    %921 = vmatpush.msra.mxu0 %v521
    %922 = vmatpush.msra.mxu0 %v517
    %923 = vmatpush.msra.mxu0 %v513
    %924 = vmatpush.msra.mxu0 %v509
    %925 = vmatpush.msra.mxu0 %v505
    %926 = vmatpush.msra.mxu0 %v501
    %927 = vmatpush.msra.mxu0 %v497
    %928 = vmatpush.msra.mxu0 %v493
    %929 = vmatpush.msra.mxu0 %v489
    %930 = vmatpush.msra.mxu0 %v485
    %931 = vmatpush.msra.mxu0 %v481
    %932 = vmatmul.f32.gmra.mxu0 %v843
    %v933 = vpop.f32.mrf.mxu0
    %v934 = vadd.f32 %v851, %v933
    %935 = vdwg.mxu0
    %v936 = vxor.u32 %v874, 2147483648
    %v937 = vmul.f32 %v936, 1.442695
    %v938 = vpow.pop %v937
    %v939 = vadd.f32 %v938, 1.0
    %v940 = vrcp.pop %v939
    %v941 = vmul.f32 %v939, %v940
    %v942 = vsub.f32 1.0, %v941
    %v943 = vmul.f32 %v940, %v942
    %v944 = vadd.f32 %v940, %v943
    %vm945 = vweird.f32 %v939
    %vm946 = vweird.f32 %v940
    %vm947 = vmor %vm945, %vm946
    %v948 = vsel %vm947, %v940, %v944
    %v949 = vand.u32 2147483647, %v939
    %vm950 = vcmp.eq.f32.partialorder %v949, 8.507059e+37
    %v951 = vand.u32 %v939, 2147483648
    %v952 = vor.u32 1.1754944e-38, %v951
    %v953 = vsel %vm950, %v952, %v948
    %v954 = vmul.f32 1.0, %v953
    %v955 = vxor.u32 %v894, 2147483648
    %v956 = vmul.f32 %v955, 1.442695
    %v957 = vpow.pop %v956
    %v958 = vadd.f32 %v957, 1.0
    %v959 = vrcp.pop %v958
    %v960 = vmul.f32 %v958, %v959
    %v961 = vsub.f32 1.0, %v960
    %v962 = vmul.f32 %v959, %v961
    %v963 = vadd.f32 %v959, %v962
    %vm964 = vweird.f32 %v958
    %vm965 = vweird.f32 %v959
    %vm966 = vmor %vm964, %vm965
    %v967 = vsel %vm966, %v959, %v963
    %v968 = vand.u32 2147483647, %v958
    %vm969 = vcmp.eq.f32.partialorder %v968, 8.507059e+37
    %v970 = vand.u32 %v958, 2147483648
    %v971 = vor.u32 1.1754944e-38, %v970
    %v972 = vsel %vm969, %v971, %v967
    %v973 = vmul.f32 1.0, %v972
    %v974 = vtanh.pop %v914
    %v975 = vxor.u32 %v934, 2147483648
    %v976 = vmul.f32 %v975, 1.442695
    %v977 = vpow.pop %v976
    %v978 = vadd.f32 %v977, 1.0
    %v979 = vrcp.pop %v978
    %v980 = vmul.f32 %v978, %v979
    %v981 = vsub.f32 1.0, %v980
    %v982 = vmul.f32 %v979, %v981
    %v983 = vadd.f32 %v979, %v982
    %vm984 = vweird.f32 %v978
    %vm985 = vweird.f32 %v979
    %vm986 = vmor %vm984, %vm985
    %v987 = vsel %vm986, %v979, %v983
    %v988 = vand.u32 2147483647, %v978
    %vm989 = vcmp.eq.f32.partialorder %v988, 8.507059e+37
    %v990 = vand.u32 %v978, 2147483648
    %v991 = vor.u32 1.1754944e-38, %v990
    %v992 = vsel %vm989, %v991, %v987
    %v993 = vmul.f32 1.0, %v992
    %v994 = vmul.f32 %v973, %v841
    %v995 = vmul.f32 %v954, %v974
    %v996 = vadd.f32 %v994, %v995
    %v997 = vtanh.pop %v996
    %v998 = vmul.f32 %v993, %v997
    %999 = vst [vmem:[#allocation4 + $0x2] sm:$0x1] %v998
    %1000 = vst [vmem:[#allocation5 + $0x5] sm:$0x1] %v998
    %1001 = vst [vmem:[#allocation4 + $0x9] sm:$0x2] %v998
    %1002 = vst [vmem:[#allocation5 + $0xc] sm:$0x2] %v998
    %v1003 = vrot.slane %v470, 6
    %v1004 = vrot.slane %v471, 6
    %v1005 = vrot.slane %v472, 6
    %v1006 = vrot.slane %v473, 6
    %1011 = vmatpush.msra.mxu0 %v538
    %1012 = vmatpush.msra.mxu0 %v534
    %1013 = vmatpush.msra.mxu0 %v530
    %1014 = vmatpush.msra.mxu0 %v526
    %1015 = vmatpush.msra.mxu0 %v522
    %1016 = vmatpush.msra.mxu0 %v518
    %1017 = vmatpush.msra.mxu0 %v514
    %1018 = vmatpush.msra.mxu0 %v510
    %1019 = vmatpush.msra.mxu0 %v506
    %1020 = vmatpush.msra.mxu0 %v502
    %1021 = vmatpush.msra.mxu0 %v498
    %1022 = vmatpush.msra.mxu0 %v494
    %1023 = vmatpush.msra.mxu0 %v490
    %1024 = vmatpush.msra.mxu0 %v486
    %1025 = vmatpush.msra.mxu0 %v482
    %1026 = vmatpush.msra.mxu0 %v478
    %1027 = vmatmul.f32.gmra.mxu0 %v998
    %v1028 = vpop.f32.mrf.mxu0
    %v1029 = vadd.f32 %v1003, %v1028
    %1030 = vdwg.mxu0
    %1031 = vmatpush.msra.mxu0 %v539
    %1032 = vmatpush.msra.mxu0 %v535
    %1033 = vmatpush.msra.mxu0 %v531
    %1034 = vmatpush.msra.mxu0 %v527
    %1035 = vmatpush.msra.mxu0 %v523
    %1036 = vmatpush.msra.mxu0 %v519
    %1037 = vmatpush.msra.mxu0 %v515
    %1038 = vmatpush.msra.mxu0 %v511
    %1039 = vmatpush.msra.mxu0 %v507
    %1040 = vmatpush.msra.mxu0 %v503
    %1041 = vmatpush.msra.mxu0 %v499
    %1042 = vmatpush.msra.mxu0 %v495
    %1043 = vmatpush.msra.mxu0 %v491
    %1044 = vmatpush.msra.mxu0 %v487
    %1045 = vmatpush.msra.mxu0 %v483
    %1046 = vmatpush.msra.mxu0 %v479
    %1047 = vmatmul.f32.gmra.mxu0 %v998
    %v1048 = vpop.f32.mrf.mxu0
    %v1049 = vadd.f32 %v1004, %v1048
    %1050 = vdwg.mxu0
    %1051 = vmatpush.msra.mxu0 %v540
    %1052 = vmatpush.msra.mxu0 %v536
    %1053 = vmatpush.msra.mxu0 %v532
    %1054 = vmatpush.msra.mxu0 %v528
    %1055 = vmatpush.msra.mxu0 %v524
    %1056 = vmatpush.msra.mxu0 %v520
    %1057 = vmatpush.msra.mxu0 %v516
    %1058 = vmatpush.msra.mxu0 %v512
    %1059 = vmatpush.msra.mxu0 %v508
    %1060 = vmatpush.msra.mxu0 %v504
    %1061 = vmatpush.msra.mxu0 %v500
    %1062 = vmatpush.msra.mxu0 %v496
    %1063 = vmatpush.msra.mxu0 %v492
    %1064 = vmatpush.msra.mxu0 %v488
    %1065 = vmatpush.msra.mxu0 %v484
    %1066 = vmatpush.msra.mxu0 %v480
    %1067 = vmatmul.f32.gmra.mxu0 %v998
    %v1068 = vpop.f32.mrf.mxu0
    %v1069 = vadd.f32 %v1005, %v1068
    %1070 = vdwg.mxu0
    %1071 = vmatpush.msra.mxu0 %v541
    %1072 = vmatpush.msra.mxu0 %v537
    %1073 = vmatpush.msra.mxu0 %v533
    %1074 = vmatpush.msra.mxu0 %v529
    %1075 = vmatpush.msra.mxu0 %v525
    %1076 = vmatpush.msra.mxu0 %v521
    %1077 = vmatpush.msra.mxu0 %v517
    %1078 = vmatpush.msra.mxu0 %v513
    %1079 = vmatpush.msra.mxu0 %v509
    %1080 = vmatpush.msra.mxu0 %v505
    %1081 = vmatpush.msra.mxu0 %v501
    %1082 = vmatpush.msra.mxu0 %v497
    %1083 = vmatpush.msra.mxu0 %v493
    %1084 = vmatpush.msra.mxu0 %v489
    %1085 = vmatpush.msra.mxu0 %v485
    %1086 = vmatpush.msra.mxu0 %v481
    %1087 = vmatmul.f32.gmra.mxu0 %v998
    %v1088 = vpop.f32.mrf.mxu0
    %v1089 = vadd.f32 %v1006, %v1088
    %1090 = vdwg.mxu0
    %v1091 = vxor.u32 %v1029, 2147483648
    %v1092 = vmul.f32 %v1091, 1.442695
    %v1093 = vpow.pop %v1092
    %v1094 = vadd.f32 %v1093, 1.0
    %v1095 = vrcp.pop %v1094
    %v1096 = vmul.f32 %v1094, %v1095
    %v1097 = vsub.f32 1.0, %v1096
    %v1098 = vmul.f32 %v1095, %v1097
    %v1099 = vadd.f32 %v1095, %v1098
    %vm1100 = vweird.f32 %v1094
    %vm1101 = vweird.f32 %v1095
    %vm1102 = vmor %vm1100, %vm1101
    %v1103 = vsel %vm1102, %v1095, %v1099
    %v1104 = vand.u32 2147483647, %v1094
    %vm1105 = vcmp.eq.f32.partialorder %v1104, 8.507059e+37
    %v1106 = vand.u32 %v1094, 2147483648
    %v1107 = vor.u32 1.1754944e-38, %v1106
    %v1108 = vsel %vm1105, %v1107, %v1103
    %v1109 = vmul.f32 1.0, %v1108
    %v1110 = vxor.u32 %v1049, 2147483648
    %v1111 = vmul.f32 %v1110, 1.442695
    %v1112 = vpow.pop %v1111
    %v1113 = vadd.f32 %v1112, 1.0
    %v1114 = vrcp.pop %v1113
    %v1115 = vmul.f32 %v1113, %v1114
    %v1116 = vsub.f32 1.0, %v1115
    %v1117 = vmul.f32 %v1114, %v1116
    %v1118 = vadd.f32 %v1114, %v1117
    %vm1119 = vweird.f32 %v1113
    %vm1120 = vweird.f32 %v1114
    %vm1121 = vmor %vm1119, %vm1120
    %v1122 = vsel %vm1121, %v1114, %v1118
    %v1123 = vand.u32 2147483647, %v1113
    %vm1124 = vcmp.eq.f32.partialorder %v1123, 8.507059e+37
    %v1125 = vand.u32 %v1113, 2147483648
    %v1126 = vor.u32 1.1754944e-38, %v1125
    %v1127 = vsel %vm1124, %v1126, %v1122
    %v1128 = vmul.f32 1.0, %v1127
    %v1129 = vtanh.pop %v1069
    %v1130 = vxor.u32 %v1089, 2147483648
    %v1131 = vmul.f32 %v1130, 1.442695
    %v1132 = vpow.pop %v1131
    %v1133 = vadd.f32 %v1132, 1.0
    %v1134 = vrcp.pop %v1133
    %v1135 = vmul.f32 %v1133, %v1134
    %v1136 = vsub.f32 1.0, %v1135
    %v1137 = vmul.f32 %v1134, %v1136
    %v1138 = vadd.f32 %v1134, %v1137
    %vm1139 = vweird.f32 %v1133
    %vm1140 = vweird.f32 %v1134
    %vm1141 = vmor %vm1139, %vm1140
    %v1142 = vsel %vm1141, %v1134, %v1138
    %v1143 = vand.u32 2147483647, %v1133
    %vm1144 = vcmp.eq.f32.partialorder %v1143, 8.507059e+37
    %v1145 = vand.u32 %v1133, 2147483648
    %v1146 = vor.u32 1.1754944e-38, %v1145
    %v1147 = vsel %vm1144, %v1146, %v1142
    %v1148 = vmul.f32 1.0, %v1147
    %v1149 = vmul.f32 %v1128, %v996
    %v1150 = vmul.f32 %v1109, %v1129
    %v1151 = vadd.f32 %v1149, %v1150
    %v1152 = vtanh.pop %v1151
    %v1153 = vmul.f32 %v1148, %v1152
    %1154 = vst [vmem:[#allocation4 + $0x3] sm:$0x1] %v1153
    %1155 = vst [vmem:[#allocation5 + $0x4] sm:$0x1] %v1153
    %1156 = vst [vmem:[#allocation4 + $0xa] sm:$0x2] %v1153
    %1157 = vst [vmem:[#allocation5 + $0xb] sm:$0x2] %v1153
    %1158 = vmatpush.msra.mxu0 %v538
    %1159 = vmatpush.msra.mxu0 %v534
    %1160 = vmatpush.msra.mxu0 %v530
    %1161 = vmatpush.msra.mxu0 %v526
    %1162 = vmatpush.msra.mxu0 %v522
    %1163 = vmatpush.msra.mxu0 %v518
    %1164 = vmatpush.msra.mxu0 %v514
    %1165 = vmatpush.msra.mxu0 %v510
    %1166 = vmatpush.msra.mxu0 %v506
    %1167 = vmatpush.msra.mxu0 %v502
    %1168 = vmatpush.msra.mxu0 %v498
    %1169 = vmatpush.msra.mxu0 %v494
    %1170 = vmatpush.msra.mxu0 %v490
    %1171 = vmatpush.msra.mxu0 %v486
    %1172 = vmatpush.msra.mxu0 %v482
    %1173 = vmatpush.msra.mxu0 %v478
    %1174 = vmatmul.f32.gmra.mxu0 %v1153
    %v1175 = vpop.f32.mrf.mxu0
    %v1176 = vadd.f32 %v474, %v1175
    %1177 = vdwg.mxu0
    %1178 = vmatpush.msra.mxu0 %v539
    %1179 = vmatpush.msra.mxu0 %v535
    %1180 = vmatpush.msra.mxu0 %v531
    %1181 = vmatpush.msra.mxu0 %v527
    %1182 = vmatpush.msra.mxu0 %v523
    %1183 = vmatpush.msra.mxu0 %v519
    %1184 = vmatpush.msra.mxu0 %v515
    %1185 = vmatpush.msra.mxu0 %v511
    %1186 = vmatpush.msra.mxu0 %v507
    %1187 = vmatpush.msra.mxu0 %v503
    %1188 = vmatpush.msra.mxu0 %v499
    %1189 = vmatpush.msra.mxu0 %v495
    %1190 = vmatpush.msra.mxu0 %v491
    %1191 = vmatpush.msra.mxu0 %v487
    %1192 = vmatpush.msra.mxu0 %v483
    %1193 = vmatpush.msra.mxu0 %v479
    %1194 = vmatmul.f32.gmra.mxu0 %v1153
    %v1195 = vpop.f32.mrf.mxu0
    %v1196 = vadd.f32 %v475, %v1195
    %1197 = vdwg.mxu0
    %1198 = vmatpush.msra.mxu0 %v540
    %1199 = vmatpush.msra.mxu0 %v536
    %1200 = vmatpush.msra.mxu0 %v532
    %1201 = vmatpush.msra.mxu0 %v528
    %1202 = vmatpush.msra.mxu0 %v524
    %1203 = vmatpush.msra.mxu0 %v520
    %1204 = vmatpush.msra.mxu0 %v516
    %1205 = vmatpush.msra.mxu0 %v512
    %1206 = vmatpush.msra.mxu0 %v508
    %1207 = vmatpush.msra.mxu0 %v504
    %1208 = vmatpush.msra.mxu0 %v500
    %1209 = vmatpush.msra.mxu0 %v496
    %1210 = vmatpush.msra.mxu0 %v492
    %1211 = vmatpush.msra.mxu0 %v488
    %1212 = vmatpush.msra.mxu0 %v484
    %1213 = vmatpush.msra.mxu0 %v480
    %1214 = vmatmul.f32.gmra.mxu0 %v1153
    %v1215 = vpop.f32.mrf.mxu0
    %v1216 = vadd.f32 %v476, %v1215
    %1217 = vdwg.mxu0
    %1218 = vmatpush.msra.mxu0 %v541
    %1219 = vmatpush.msra.mxu0 %v537
    %1220 = vmatpush.msra.mxu0 %v533
    %1221 = vmatpush.msra.mxu0 %v529
    %1222 = vmatpush.msra.mxu0 %v525
    %1223 = vmatpush.msra.mxu0 %v521
    %1224 = vmatpush.msra.mxu0 %v517
    %1225 = vmatpush.msra.mxu0 %v513
    %1226 = vmatpush.msra.mxu0 %v509
    %1227 = vmatpush.msra.mxu0 %v505
    %1228 = vmatpush.msra.mxu0 %v501
    %1229 = vmatpush.msra.mxu0 %v497
    %1230 = vmatpush.msra.mxu0 %v493
    %1231 = vmatpush.msra.mxu0 %v489
    %1232 = vmatpush.msra.mxu0 %v485
    %1233 = vmatpush.msra.mxu0 %v481
    %1234 = vmatmul.f32.gmra.mxu0 %v1153
    %v1235 = vpop.f32.mrf.mxu0
    %v1236 = vadd.f32 %v477, %v1235
    %1237 = vdwg.mxu0
    %v1238 = vxor.u32 %v1176, 2147483648
    %v1239 = vmul.f32 %v1238, 1.442695
    %v1240 = vpow.pop %v1239
    %v1241 = vadd.f32 %v1240, 1.0
    %v1242 = vrcp.pop %v1241
    %v1243 = vmul.f32 %v1241, %v1242
    %v1244 = vsub.f32 1.0, %v1243
    %v1245 = vmul.f32 %v1242, %v1244
    %v1246 = vadd.f32 %v1242, %v1245
    %vm1247 = vweird.f32 %v1241
    %vm1248 = vweird.f32 %v1242
    %vm1249 = vmor %vm1247, %vm1248
    %v1250 = vsel %vm1249, %v1242, %v1246
    %v1251 = vand.u32 2147483647, %v1241
    %vm1252 = vcmp.eq.f32.partialorder %v1251, 8.507059e+37
    %v1253 = vand.u32 %v1241, 2147483648
    %v1254 = vor.u32 1.1754944e-38, %v1253
    %v1255 = vsel %vm1252, %v1254, %v1250
    %v1256 = vmul.f32 1.0, %v1255
    %v1257 = vxor.u32 %v1196, 2147483648
    %v1258 = vmul.f32 %v1257, 1.442695
    %v1259 = vpow.pop %v1258
    %v1260 = vadd.f32 %v1259, 1.0
    %v1261 = vrcp.pop %v1260
    %v1262 = vmul.f32 %v1260, %v1261
    %v1263 = vsub.f32 1.0, %v1262
    %v1264 = vmul.f32 %v1261, %v1263
    %v1265 = vadd.f32 %v1261, %v1264
    %vm1266 = vweird.f32 %v1260
    %vm1267 = vweird.f32 %v1261
    %vm1268 = vmor %vm1266, %vm1267
    %v1269 = vsel %vm1268, %v1261, %v1265
    %v1270 = vand.u32 2147483647, %v1260
    %vm1271 = vcmp.eq.f32.partialorder %v1270, 8.507059e+37
    %v1272 = vand.u32 %v1260, 2147483648
    %v1273 = vor.u32 1.1754944e-38, %v1272
    %v1274 = vsel %vm1271, %v1273, %v1269
    %v1275 = vmul.f32 1.0, %v1274
    %v1276 = vtanh.pop %v1216
    %v1277 = vxor.u32 %v1236, 2147483648
    %v1278 = vmul.f32 %v1277, 1.442695
    %v1279 = vpow.pop %v1278
    %v1280 = vadd.f32 %v1279, 1.0
    %v1281 = vrcp.pop %v1280
    %v1282 = vmul.f32 %v1280, %v1281
    %v1283 = vsub.f32 1.0, %v1282
    %v1284 = vmul.f32 %v1281, %v1283
    %v1285 = vadd.f32 %v1281, %v1284
    %vm1286 = vweird.f32 %v1280
    %vm1287 = vweird.f32 %v1281
    %vm1288 = vmor %vm1286, %vm1287
    %v1289 = vsel %vm1288, %v1281, %v1285
    %v1290 = vand.u32 2147483647, %v1280
    %vm1291 = vcmp.eq.f32.partialorder %v1290, 8.507059e+37
    %v1292 = vand.u32 %v1280, 2147483648
    %v1293 = vor.u32 1.1754944e-38, %v1292
    %v1294 = vsel %vm1291, %v1293, %v1289
    %v1295 = vmul.f32 1.0, %v1294
    %v1296 = vmul.f32 %v1275, %v1151
    %v1297 = vmul.f32 %v1256, %v1276
    %v1298 = vadd.f32 %v1296, %v1297
    %v1299 = vtanh.pop %v1298
    %v1300 = vmul.f32 %v1295, %v1299
    %1301 = vst [vmem:[#allocation4 + $0x4] sm:$0x1] %v1300
    %1302 = vst [vmem:[#allocation5 + $0x3] sm:$0x1] %v1300
    %1303 = vst [vmem:[#allocation4 + $0xb] sm:$0x2] %v1300
    %1304 = vst [vmem:[#allocation5 + $0xa] sm:$0x2] %v1300
    %v1309 = vrot.slane %v474, 2
    %v1310 = vrot.slane %v475, 2
    %v1311 = vrot.slane %v476, 2
    %v1312 = vrot.slane %v477, 2
    %1317 = vmatpush.msra.mxu0 %v538
    %1318 = vmatpush.msra.mxu0 %v534
    %1319 = vmatpush.msra.mxu0 %v530
    %1320 = vmatpush.msra.mxu0 %v526
    %1321 = vmatpush.msra.mxu0 %v522
    %1322 = vmatpush.msra.mxu0 %v518
    %1323 = vmatpush.msra.mxu0 %v514
    %1324 = vmatpush.msra.mxu0 %v510
    %1325 = vmatpush.msra.mxu0 %v506
    %1326 = vmatpush.msra.mxu0 %v502
    %1327 = vmatpush.msra.mxu0 %v498
    %1328 = vmatpush.msra.mxu0 %v494
    %1329 = vmatpush.msra.mxu0 %v490
    %1330 = vmatpush.msra.mxu0 %v486
    %1331 = vmatpush.msra.mxu0 %v482
    %1332 = vmatpush.msra.mxu0 %v478
    %1333 = vmatmul.f32.gmra.mxu0 %v1300
    %v1334 = vpop.f32.mrf.mxu0
    %v1335 = vadd.f32 %v1309, %v1334
    %1336 = vdwg.mxu0
    %1337 = vmatpush.msra.mxu0 %v539
    %1338 = vmatpush.msra.mxu0 %v535
    %1339 = vmatpush.msra.mxu0 %v531
    %1340 = vmatpush.msra.mxu0 %v527
    %1341 = vmatpush.msra.mxu0 %v523
    %1342 = vmatpush.msra.mxu0 %v519
    %1343 = vmatpush.msra.mxu0 %v515
    %1344 = vmatpush.msra.mxu0 %v511
    %1345 = vmatpush.msra.mxu0 %v507
    %1346 = vmatpush.msra.mxu0 %v503
    %1347 = vmatpush.msra.mxu0 %v499
    %1348 = vmatpush.msra.mxu0 %v495
    %1349 = vmatpush.msra.mxu0 %v491
    %1350 = vmatpush.msra.mxu0 %v487
    %1351 = vmatpush.msra.mxu0 %v483
    %1352 = vmatpush.msra.mxu0 %v479
    %1353 = vmatmul.f32.gmra.mxu0 %v1300
    %v1354 = vpop.f32.mrf.mxu0
    %v1355 = vadd.f32 %v1310, %v1354
    %1356 = vdwg.mxu0
    %1357 = vmatpush.msra.mxu0 %v540
    %1358 = vmatpush.msra.mxu0 %v536
    %1359 = vmatpush.msra.mxu0 %v532
    %1360 = vmatpush.msra.mxu0 %v528
    %1361 = vmatpush.msra.mxu0 %v524
    %1362 = vmatpush.msra.mxu0 %v520
    %1363 = vmatpush.msra.mxu0 %v516
    %1364 = vmatpush.msra.mxu0 %v512
    %1365 = vmatpush.msra.mxu0 %v508
    %1366 = vmatpush.msra.mxu0 %v504
    %1367 = vmatpush.msra.mxu0 %v500
    %1368 = vmatpush.msra.mxu0 %v496
    %1369 = vmatpush.msra.mxu0 %v492
    %1370 = vmatpush.msra.mxu0 %v488
    %1371 = vmatpush.msra.mxu0 %v484
    %1372 = vmatpush.msra.mxu0 %v480
    %1373 = vmatmul.f32.gmra.mxu0 %v1300
    %v1374 = vpop.f32.mrf.mxu0
    %v1375 = vadd.f32 %v1311, %v1374
    %1376 = vdwg.mxu0
    %1377 = vmatpush.msra.mxu0 %v541
    %1378 = vmatpush.msra.mxu0 %v537
    %1379 = vmatpush.msra.mxu0 %v533
    %1380 = vmatpush.msra.mxu0 %v529
    %1381 = vmatpush.msra.mxu0 %v525
    %1382 = vmatpush.msra.mxu0 %v521
    %1383 = vmatpush.msra.mxu0 %v517
    %1384 = vmatpush.msra.mxu0 %v513
    %1385 = vmatpush.msra.mxu0 %v509
    %1386 = vmatpush.msra.mxu0 %v505
    %1387 = vmatpush.msra.mxu0 %v501
    %1388 = vmatpush.msra.mxu0 %v497
    %1389 = vmatpush.msra.mxu0 %v493
    %1390 = vmatpush.msra.mxu0 %v489
    %1391 = vmatpush.msra.mxu0 %v485
    %1392 = vmatpush.msra.mxu0 %v481
    %1393 = vmatmul.f32.gmra.mxu0 %v1300
    %v1394 = vpop.f32.mrf.mxu0
    %v1395 = vadd.f32 %v1312, %v1394
    %1396 = vdwg.mxu0
    %v1397 = vxor.u32 %v1335, 2147483648
    %v1398 = vmul.f32 %v1397, 1.442695
    %v1399 = vpow.pop %v1398
    %v1400 = vadd.f32 %v1399, 1.0
    %v1401 = vrcp.pop %v1400
    %v1402 = vmul.f32 %v1400, %v1401
    %v1403 = vsub.f32 1.0, %v1402
    %v1404 = vmul.f32 %v1401, %v1403
    %v1405 = vadd.f32 %v1401, %v1404
    %vm1406 = vweird.f32 %v1400
    %vm1407 = vweird.f32 %v1401
    %vm1408 = vmor %vm1406, %vm1407
    %v1409 = vsel %vm1408, %v1401, %v1405
    %v1410 = vand.u32 2147483647, %v1400
    %vm1411 = vcmp.eq.f32.partialorder %v1410, 8.507059e+37
    %v1412 = vand.u32 %v1400, 2147483648
    %v1413 = vor.u32 1.1754944e-38, %v1412
    %v1414 = vsel %vm1411, %v1413, %v1409
    %v1415 = vmul.f32 1.0, %v1414
    %v1416 = vxor.u32 %v1355, 2147483648
    %v1417 = vmul.f32 %v1416, 1.442695
    %v1418 = vpow.pop %v1417
    %v1419 = vadd.f32 %v1418, 1.0
    %v1420 = vrcp.pop %v1419
    %v1421 = vmul.f32 %v1419, %v1420
    %v1422 = vsub.f32 1.0, %v1421
    %v1423 = vmul.f32 %v1420, %v1422
    %v1424 = vadd.f32 %v1420, %v1423
    %vm1425 = vweird.f32 %v1419
    %vm1426 = vweird.f32 %v1420
    %vm1427 = vmor %vm1425, %vm1426
    %v1428 = vsel %vm1427, %v1420, %v1424
    %v1429 = vand.u32 2147483647, %v1419
    %vm1430 = vcmp.eq.f32.partialorder %v1429, 8.507059e+37
    %v1431 = vand.u32 %v1419, 2147483648
    %v1432 = vor.u32 1.1754944e-38, %v1431
    %v1433 = vsel %vm1430, %v1432, %v1428
    %v1434 = vmul.f32 1.0, %v1433
    %v1435 = vtanh.pop %v1375
    %v1436 = vxor.u32 %v1395, 2147483648
    %v1437 = vmul.f32 %v1436, 1.442695
    %v1438 = vpow.pop %v1437
    %v1439 = vadd.f32 %v1438, 1.0
    %v1440 = vrcp.pop %v1439
    %v1441 = vmul.f32 %v1439, %v1440
    %v1442 = vsub.f32 1.0, %v1441
    %v1443 = vmul.f32 %v1440, %v1442
    %v1444 = vadd.f32 %v1440, %v1443
    %vm1445 = vweird.f32 %v1439
    %vm1446 = vweird.f32 %v1440
    %vm1447 = vmor %vm1445, %vm1446
    %v1448 = vsel %vm1447, %v1440, %v1444
    %v1449 = vand.u32 2147483647, %v1439
    %vm1450 = vcmp.eq.f32.partialorder %v1449, 8.507059e+37
    %v1451 = vand.u32 %v1439, 2147483648
    %v1452 = vor.u32 1.1754944e-38, %v1451
    %v1453 = vsel %vm1450, %v1452, %v1448
    %v1454 = vmul.f32 1.0, %v1453
    %v1455 = vmul.f32 %v1434, %v1298
    %v1456 = vmul.f32 %v1415, %v1435
    %v1457 = vadd.f32 %v1455, %v1456
    %v1458 = vtanh.pop %v1457
    %v1459 = vmul.f32 %v1454, %v1458
    %1460 = vst [vmem:[#allocation4 + $0x5] sm:$0x1] %v1459
    %1461 = vst [vmem:[#allocation5 + $0x2] sm:$0x1] %v1459
    %1462 = vst [vmem:[#allocation4 + $0xc] sm:$0x2] %v1459
    %1463 = vst [vmem:[#allocation5 + $0x9] sm:$0x2] %v1459
    %v1464 = vrot.slane %v474, 4
    %v1465 = vrot.slane %v475, 4
    %v1466 = vrot.slane %v476, 4
    %v1467 = vrot.slane %v477, 4
    %1472 = vmatpush.msra.mxu0 %v538
    %1473 = vmatpush.msra.mxu0 %v534
    %1474 = vmatpush.msra.mxu0 %v530
    %1475 = vmatpush.msra.mxu0 %v526
    %1476 = vmatpush.msra.mxu0 %v522
    %1477 = vmatpush.msra.mxu0 %v518
    %1478 = vmatpush.msra.mxu0 %v514
    %1479 = vmatpush.msra.mxu0 %v510
    %1480 = vmatpush.msra.mxu0 %v506
    %1481 = vmatpush.msra.mxu0 %v502
    %1482 = vmatpush.msra.mxu0 %v498
    %1483 = vmatpush.msra.mxu0 %v494
    %1484 = vmatpush.msra.mxu0 %v490
    %1485 = vmatpush.msra.mxu0 %v486
    %1486 = vmatpush.msra.mxu0 %v482
    %1487 = vmatpush.msra.mxu0 %v478
    %1488 = vmatmul.f32.gmra.mxu0 %v1459
    %v1489 = vpop.f32.mrf.mxu0
    %v1490 = vadd.f32 %v1464, %v1489
    %1491 = vdwg.mxu0
    %1492 = vmatpush.msra.mxu0 %v539
    %1493 = vmatpush.msra.mxu0 %v535
    %1494 = vmatpush.msra.mxu0 %v531
    %1495 = vmatpush.msra.mxu0 %v527
    %1496 = vmatpush.msra.mxu0 %v523
    %1497 = vmatpush.msra.mxu0 %v519
    %1498 = vmatpush.msra.mxu0 %v515
    %1499 = vmatpush.msra.mxu0 %v511
    %1500 = vmatpush.msra.mxu0 %v507
    %1501 = vmatpush.msra.mxu0 %v503
    %1502 = vmatpush.msra.mxu0 %v499
    %1503 = vmatpush.msra.mxu0 %v495
    %1504 = vmatpush.msra.mxu0 %v491
    %1505 = vmatpush.msra.mxu0 %v487
    %1506 = vmatpush.msra.mxu0 %v483
    %1507 = vmatpush.msra.mxu0 %v479
    %1508 = vmatmul.f32.gmra.mxu0 %v1459
    %v1509 = vpop.f32.mrf.mxu0
    %v1510 = vadd.f32 %v1465, %v1509
    %1511 = vdwg.mxu0
    %1512 = vmatpush.msra.mxu0 %v540
    %1513 = vmatpush.msra.mxu0 %v536
    %1514 = vmatpush.msra.mxu0 %v532
    %1515 = vmatpush.msra.mxu0 %v528
    %1516 = vmatpush.msra.mxu0 %v524
    %1517 = vmatpush.msra.mxu0 %v520
    %1518 = vmatpush.msra.mxu0 %v516
    %1519 = vmatpush.msra.mxu0 %v512
    %1520 = vmatpush.msra.mxu0 %v508
    %1521 = vmatpush.msra.mxu0 %v504
    %1522 = vmatpush.msra.mxu0 %v500
    %1523 = vmatpush.msra.mxu0 %v496
    %1524 = vmatpush.msra.mxu0 %v492
    %1525 = vmatpush.msra.mxu0 %v488
    %1526 = vmatpush.msra.mxu0 %v484
    %1527 = vmatpush.msra.mxu0 %v480
    %1528 = vmatmul.f32.gmra.mxu0 %v1459
    %v1529 = vpop.f32.mrf.mxu0
    %v1530 = vadd.f32 %v1466, %v1529
    %1531 = vdwg.mxu0
    %1532 = vmatpush.msra.mxu0 %v541
    %1533 = vmatpush.msra.mxu0 %v537
    %1534 = vmatpush.msra.mxu0 %v533
    %1535 = vmatpush.msra.mxu0 %v529
    %1536 = vmatpush.msra.mxu0 %v525
    %1537 = vmatpush.msra.mxu0 %v521
    %1538 = vmatpush.msra.mxu0 %v517
    %1539 = vmatpush.msra.mxu0 %v513
    %1540 = vmatpush.msra.mxu0 %v509
    %1541 = vmatpush.msra.mxu0 %v505
    %1542 = vmatpush.msra.mxu0 %v501
    %1543 = vmatpush.msra.mxu0 %v497
    %1544 = vmatpush.msra.mxu0 %v493
    %1545 = vmatpush.msra.mxu0 %v489
    %1546 = vmatpush.msra.mxu0 %v485
    %1547 = vmatpush.msra.mxu0 %v481
    %1548 = vmatmul.f32.gmra.mxu0 %v1459
    %v1549 = vpop.f32.mrf.mxu0
    %v1550 = vadd.f32 %v1467, %v1549
    %1551 = vdwg.mxu0
    %v1552 = vxor.u32 %v1490, 2147483648
    %v1553 = vmul.f32 %v1552, 1.442695
    %v1554 = vpow.pop %v1553
    %v1555 = vadd.f32 %v1554, 1.0
    %v1556 = vrcp.pop %v1555
    %v1557 = vmul.f32 %v1555, %v1556
    %v1558 = vsub.f32 1.0, %v1557
    %v1559 = vmul.f32 %v1556, %v1558
    %v1560 = vadd.f32 %v1556, %v1559
    %vm1561 = vweird.f32 %v1555
    %vm1562 = vweird.f32 %v1556
    %vm1563 = vmor %vm1561, %vm1562
    %v1564 = vsel %vm1563, %v1556, %v1560
    %v1565 = vand.u32 2147483647, %v1555
    %vm1566 = vcmp.eq.f32.partialorder %v1565, 8.507059e+37
    %v1567 = vand.u32 %v1555, 2147483648
    %v1568 = vor.u32 1.1754944e-38, %v1567
    %v1569 = vsel %vm1566, %v1568, %v1564
    %v1570 = vmul.f32 1.0, %v1569
    %v1571 = vxor.u32 %v1510, 2147483648
    %v1572 = vmul.f32 %v1571, 1.442695
    %v1573 = vpow.pop %v1572
    %v1574 = vadd.f32 %v1573, 1.0
    %v1575 = vrcp.pop %v1574
    %v1576 = vmul.f32 %v1574, %v1575
    %v1577 = vsub.f32 1.0, %v1576
    %v1578 = vmul.f32 %v1575, %v1577
    %v1579 = vadd.f32 %v1575, %v1578
    %vm1580 = vweird.f32 %v1574
    %vm1581 = vweird.f32 %v1575
    %vm1582 = vmor %vm1580, %vm1581
    %v1583 = vsel %vm1582, %v1575, %v1579
    %v1584 = vand.u32 2147483647, %v1574
    %vm1585 = vcmp.eq.f32.partialorder %v1584, 8.507059e+37
    %v1586 = vand.u32 %v1574, 2147483648
    %v1587 = vor.u32 1.1754944e-38, %v1586
    %v1588 = vsel %vm1585, %v1587, %v1583
    %v1589 = vmul.f32 1.0, %v1588
    %v1590 = vtanh.pop %v1530
    %v1591 = vxor.u32 %v1550, 2147483648
    %v1592 = vmul.f32 %v1591, 1.442695
    %v1593 = vpow.pop %v1592
    %v1594 = vadd.f32 %v1593, 1.0
    %v1595 = vrcp.pop %v1594
    %v1596 = vmul.f32 %v1594, %v1595
    %v1597 = vsub.f32 1.0, %v1596
    %v1598 = vmul.f32 %v1595, %v1597
    %v1599 = vadd.f32 %v1595, %v1598
    %vm1600 = vweird.f32 %v1594
    %vm1601 = vweird.f32 %v1595
    %vm1602 = vmor %vm1600, %vm1601
    %v1603 = vsel %vm1602, %v1595, %v1599
    %v1604 = vand.u32 2147483647, %v1594
    %vm1605 = vcmp.eq.f32.partialorder %v1604, 8.507059e+37
    %v1606 = vand.u32 %v1594, 2147483648
    %v1607 = vor.u32 1.1754944e-38, %v1606
    %v1608 = vsel %vm1605, %v1607, %v1603
    %v1609 = vmul.f32 1.0, %v1608
    %v1610 = vmul.f32 %v1589, %v1457
    %v1611 = vmul.f32 %v1570, %v1590
    %v1612 = vadd.f32 %v1610, %v1611
    %v1613 = vtanh.pop %v1612
    %v1614 = vmul.f32 %v1609, %v1613
    %1615 = vst [vmem:[#allocation4 + $0x6] sm:$0x1] %v1614
    %1616 = vst [vmem:[#allocation5 + $0x1] sm:$0x1] %v1614
    %1617 = vst [vmem:[#allocation4 + $0xd] sm:$0x2] %v1614
    %1618 = vst [vmem:[#allocation5 + $0x8] sm:$0x2] %v1614
    %v1619 = vrot.slane %v474, 6
    %v1620 = vrot.slane %v475, 6
    %v1621 = vrot.slane %v476, 6
    %v1622 = vrot.slane %v477, 6
    %1627 = vmatpush.msra.mxu0 %v538
    %1628 = vmatpush.msra.mxu0 %v534
    %1629 = vmatpush.msra.mxu0 %v530
    %1630 = vmatpush.msra.mxu0 %v526
    %1631 = vmatpush.msra.mxu0 %v522
    %1632 = vmatpush.msra.mxu0 %v518
    %1633 = vmatpush.msra.mxu0 %v514
    %1634 = vmatpush.msra.mxu0 %v510
    %1635 = vmatpush.msra.mxu0 %v506
    %1636 = vmatpush.msra.mxu0 %v502
    %1637 = vmatpush.msra.mxu0 %v498
    %1638 = vmatpush.msra.mxu0 %v494
    %1639 = vmatpush.msra.mxu0 %v490
    %1640 = vmatpush.msra.mxu0 %v486
    %1641 = vmatpush.msra.mxu0 %v482
    %1642 = vmatpush.msra.mxu0 %v478
    %1643 = vmatmul.f32.gmra.mxu0 %v1614
    %v1644 = vpop.f32.mrf.mxu0
    %v1645 = vadd.f32 %v1619, %v1644
    %1646 = vdwg.mxu0
    %1647 = vmatpush.msra.mxu0 %v539
    %1648 = vmatpush.msra.mxu0 %v535
    %1649 = vmatpush.msra.mxu0 %v531
    %1650 = vmatpush.msra.mxu0 %v527
    %1651 = vmatpush.msra.mxu0 %v523
    %1652 = vmatpush.msra.mxu0 %v519
    %1653 = vmatpush.msra.mxu0 %v515
    %1654 = vmatpush.msra.mxu0 %v511
    %1655 = vmatpush.msra.mxu0 %v507
    %1656 = vmatpush.msra.mxu0 %v503
    %1657 = vmatpush.msra.mxu0 %v499
    %1658 = vmatpush.msra.mxu0 %v495
    %1659 = vmatpush.msra.mxu0 %v491
    %1660 = vmatpush.msra.mxu0 %v487
    %1661 = vmatpush.msra.mxu0 %v483
    %1662 = vmatpush.msra.mxu0 %v479
    %1663 = vmatmul.f32.gmra.mxu0 %v1614
    %v1664 = vpop.f32.mrf.mxu0
    %v1665 = vadd.f32 %v1620, %v1664
    %1666 = vdwg.mxu0
    %1667 = vmatpush.msra.mxu0 %v540
    %1668 = vmatpush.msra.mxu0 %v536
    %1669 = vmatpush.msra.mxu0 %v532
    %1670 = vmatpush.msra.mxu0 %v528
    %1671 = vmatpush.msra.mxu0 %v524
    %1672 = vmatpush.msra.mxu0 %v520
    %1673 = vmatpush.msra.mxu0 %v516
    %1674 = vmatpush.msra.mxu0 %v512
    %1675 = vmatpush.msra.mxu0 %v508
    %1676 = vmatpush.msra.mxu0 %v504
    %1677 = vmatpush.msra.mxu0 %v500
    %1678 = vmatpush.msra.mxu0 %v496
    %1679 = vmatpush.msra.mxu0 %v492
    %1680 = vmatpush.msra.mxu0 %v488
    %1681 = vmatpush.msra.mxu0 %v484
    %1682 = vmatpush.msra.mxu0 %v480
    %1683 = vmatmul.f32.gmra.mxu0 %v1614
    %v1684 = vpop.f32.mrf.mxu0
    %v1685 = vadd.f32 %v1621, %v1684
    %1686 = vdwg.mxu0
    %1687 = vmatpush.msra.mxu0 %v541
    %1688 = vmatpush.msra.mxu0 %v537
    %1689 = vmatpush.msra.mxu0 %v533
    %1690 = vmatpush.msra.mxu0 %v529
    %1691 = vmatpush.msra.mxu0 %v525
    %1692 = vmatpush.msra.mxu0 %v521
    %1693 = vmatpush.msra.mxu0 %v517
    %1694 = vmatpush.msra.mxu0 %v513
    %1695 = vmatpush.msra.mxu0 %v509
    %1696 = vmatpush.msra.mxu0 %v505
    %1697 = vmatpush.msra.mxu0 %v501
    %1698 = vmatpush.msra.mxu0 %v497
    %1699 = vmatpush.msra.mxu0 %v493
    %1700 = vmatpush.msra.mxu0 %v489
    %1701 = vmatpush.msra.mxu0 %v485
    %1702 = vmatpush.msra.mxu0 %v481
    %1703 = vmatmul.f32.gmra.mxu0 %v1614
    %v1704 = vpop.f32.mrf.mxu0
    %v1705 = vadd.f32 %v1622, %v1704
    %1706 = vdwg.mxu0
    %v1707 = vxor.u32 %v1645, 2147483648
    %v1708 = vmul.f32 %v1707, 1.442695
    %v1709 = vpow.pop %v1708
    %v1710 = vadd.f32 %v1709, 1.0
    %v1711 = vrcp.pop %v1710
    %v1712 = vmul.f32 %v1710, %v1711
    %v1713 = vsub.f32 1.0, %v1712
    %v1714 = vmul.f32 %v1711, %v1713
    %v1715 = vadd.f32 %v1711, %v1714
    %vm1716 = vweird.f32 %v1710
    %vm1717 = vweird.f32 %v1711
    %vm1718 = vmor %vm1716, %vm1717
    %v1719 = vsel %vm1718, %v1711, %v1715
    %v1720 = vand.u32 2147483647, %v1710
    %vm1721 = vcmp.eq.f32.partialorder %v1720, 8.507059e+37
    %v1722 = vand.u32 %v1710, 2147483648
    %v1723 = vor.u32 1.1754944e-38, %v1722
    %v1724 = vsel %vm1721, %v1723, %v1719
    %v1725 = vmul.f32 1.0, %v1724
    %v1726 = vxor.u32 %v1665, 2147483648
    %v1727 = vmul.f32 %v1726, 1.442695
    %v1728 = vpow.pop %v1727
    %v1729 = vadd.f32 %v1728, 1.0
    %v1730 = vrcp.pop %v1729
    %v1731 = vmul.f32 %v1729, %v1730
    %v1732 = vsub.f32 1.0, %v1731
    %v1733 = vmul.f32 %v1730, %v1732
    %v1734 = vadd.f32 %v1730, %v1733
    %vm1735 = vweird.f32 %v1729
    %vm1736 = vweird.f32 %v1730
    %vm1737 = vmor %vm1735, %vm1736
    %v1738 = vsel %vm1737, %v1730, %v1734
    %v1739 = vand.u32 2147483647, %v1729
    %vm1740 = vcmp.eq.f32.partialorder %v1739, 8.507059e+37
    %v1741 = vand.u32 %v1729, 2147483648
    %v1742 = vor.u32 1.1754944e-38, %v1741
    %v1743 = vsel %vm1740, %v1742, %v1738
    %v1744 = vmul.f32 1.0, %v1743
    %v1745 = vtanh.pop %v1685
    %v1746 = vxor.u32 %v1705, 2147483648
    %v1747 = vmul.f32 %v1746, 1.442695
    %v1748 = vpow.pop %v1747
    %v1749 = vadd.f32 %v1748, 1.0
    %v1750 = vrcp.pop %v1749
    %v1751 = vmul.f32 %v1749, %v1750
    %v1752 = vsub.f32 1.0, %v1751
    %v1753 = vmul.f32 %v1750, %v1752
    %v1754 = vadd.f32 %v1750, %v1753
    %vm1755 = vweird.f32 %v1749
    %vm1756 = vweird.f32 %v1750
    %vm1757 = vmor %vm1755, %vm1756
    %v1758 = vsel %vm1757, %v1750, %v1754
    %v1759 = vand.u32 2147483647, %v1749
    %vm1760 = vcmp.eq.f32.partialorder %v1759, 8.507059e+37
    %v1761 = vand.u32 %v1749, 2147483648
    %v1762 = vor.u32 1.1754944e-38, %v1761
    %v1763 = vsel %vm1760, %v1762, %v1758
    %v1764 = vmul.f32 1.0, %v1763
    %v1765 = vmul.f32 %v1744, %v1612
    %v1766 = vmul.f32 %v1725, %v1745
    %v1767 = vadd.f32 %v1765, %v1766
    %v1768 = vtanh.pop %v1767
    %v1769 = vmul.f32 %v1764, %v1768
    %1770 = vst [vmem:[#allocation4 + $0x7] sm:$0x1] %v1769
    %1771 = vst [vmem:[#allocation5] sm:$0x1] %v1769
    %1772 = vst [vmem:[#allocation4 + $0xe] sm:$0x2] %v1769
    %1773 = vst [vmem:[#allocation5 + $0x7] sm:$0x2] %v1769
    %v1774 = vld [vmem:[#allocation4] sm:$0xff]
    %v1775 = vld [vmem:[#allocation4 + $0x8] sm:$0xff]
    %v1776 = vld [vmem:[#allocation14] sm:$0xff]
    %v1777 = vld [vmem:[#allocation14 + $0x8] sm:$0xff]
    %v1778 = vld [vmem:[#allocation14 + $0x10] sm:$0xff]
    %v1779 = vld [vmem:[#allocation14 + $0x18] sm:$0xff]
    %v1780 = vld [vmem:[#allocation14 + $0x20] sm:$0xff]
    %v1781 = vld [vmem:[#allocation14 + $0x28] sm:$0xff]
    %v1782 = vld [vmem:[#allocation14 + $0x30] sm:$0xff]
    %v1783 = vld [vmem:[#allocation14 + $0x38] sm:$0xff]
    %v1784 = vld [vmem:[#allocation14 + $0x40] sm:$0xff]
    %v1785 = vld [vmem:[#allocation14 + $0x48] sm:$0xff]
    %v1786 = vld [vmem:[#allocation14 + $0x50] sm:$0xff]
    %v1787 = vld [vmem:[#allocation14 + $0x58] sm:$0xff]
    %v1788 = vld [vmem:[#allocation14 + $0x60] sm:$0xff]
    %v1789 = vld [vmem:[#allocation14 + $0x68] sm:$0xff]
    %v1790 = vld [vmem:[#allocation14 + $0x70] sm:$0xff]
    %v1791 = vld [vmem:[#allocation14 + $0x78] sm:$0xff]
    %v1792 = vld [vmem:[#allocation5] sm:$0xff]
    %v1793 = vld [vmem:[#allocation5 + $0x8] sm:$0xff]
    %v1794 = vld [vmem:[#allocation16] sm:$0xff]
    %v1795 = vld [vmem:[#allocation16 + $0x8] sm:$0xff]
    %v1796 = vld [vmem:[#allocation16 + $0x10] sm:$0xff]
    %v1797 = vld [vmem:[#allocation16 + $0x18] sm:$0xff]
    %v1798 = vld [vmem:[#allocation16 + $0x20] sm:$0xff]
    %v1799 = vld [vmem:[#allocation16 + $0x28] sm:$0xff]
    %v1800 = vld [vmem:[#allocation16 + $0x30] sm:$0xff]
    %v1801 = vld [vmem:[#allocation16 + $0x38] sm:$0xff]
    %v1802 = vld [vmem:[#allocation16 + $0x40] sm:$0xff]
    %v1803 = vld [vmem:[#allocation16 + $0x48] sm:$0xff]
    %v1804 = vld [vmem:[#allocation16 + $0x50] sm:$0xff]
    %v1805 = vld [vmem:[#allocation16 + $0x58] sm:$0xff]
    %v1806 = vld [vmem:[#allocation16 + $0x60] sm:$0xff]
    %v1807 = vld [vmem:[#allocation16 + $0x68] sm:$0xff]
    %v1808 = vld [vmem:[#allocation16 + $0x70] sm:$0xff]
    %v1809 = vld [vmem:[#allocation16 + $0x78] sm:$0xff]
    %1810 = vmatpush.msra.mxu0 %v1809
    %1811 = vmatpush.msra.mxu0 %v1808
    %1812 = vmatpush.msra.mxu0 %v1807
    %1813 = vmatpush.msra.mxu0 %v1806
    %1814 = vmatpush.msra.mxu0 %v1805
    %1815 = vmatpush.msra.mxu0 %v1804
    %1816 = vmatpush.msra.mxu0 %v1803
    %1817 = vmatpush.msra.mxu0 %v1802
    %1818 = vmatpush.msra.mxu0 %v1801
    %1819 = vmatpush.msra.mxu0 %v1800
    %1820 = vmatpush.msra.mxu0 %v1799
    %1821 = vmatpush.msra.mxu0 %v1798
    %1822 = vmatpush.msra.mxu0 %v1797
    %1823 = vmatpush.msra.mxu0 %v1796
    %1824 = vmatpush.msra.mxu0 %v1795
    %1825 = vmatpush.msra.mxu0 %v1794
    %1826 = vmatmul.f32.gmra.mxu0 %v1792
    %v1827 = vpop.f32.mrf.mxu0
    %v1828 = vadd.f32 0.0, %v1827
    %1829 = vmatmul.f32.gmra.mxu0 %v1793
    %v1830 = vpop.f32.mrf.mxu0
    %v1831 = vadd.f32 0.0, %v1830
    %1832 = vdwg.mxu0
    %1833 = vmatpush.msra.mxu0 %v1791
    %1834 = vmatpush.msra.mxu0 %v1790
    %1835 = vmatpush.msra.mxu0 %v1789
    %1836 = vmatpush.msra.mxu0 %v1788
    %1837 = vmatpush.msra.mxu0 %v1787
    %1838 = vmatpush.msra.mxu0 %v1786
    %1839 = vmatpush.msra.mxu0 %v1785
    %1840 = vmatpush.msra.mxu0 %v1784
    %1841 = vmatpush.msra.mxu0 %v1783
    %1842 = vmatpush.msra.mxu0 %v1782
    %1843 = vmatpush.msra.mxu0 %v1781
    %1844 = vmatpush.msra.mxu0 %v1780
    %1845 = vmatpush.msra.mxu0 %v1779
    %1846 = vmatpush.msra.mxu0 %v1778
    %1847 = vmatpush.msra.mxu0 %v1777
    %1848 = vmatpush.msra.mxu0 %v1776
    %1849 = vmatmul.f32.gmra.mxu0 %v1774
    %v1850 = vpop.f32.mrf.mxu0
    %v1851 = vadd.f32 %v1828, %v1850
    %1852 = vmatmul.f32.gmra.mxu0 %v1775
    %v1853 = vpop.f32.mrf.mxu0
    %v1854 = vadd.f32 %v1831, %v1853
    %1855 = vdwg.mxu0
    %v1856 = vld [vmem:[%s8] sm:$0x1]
    %v1858 = vperm.slane %v1856, 0
    %v1860 = vadd.f32 %v1851, %v1858
    %v1861 = vadd.f32 %v1854, %v1858
    %vm1862 = vcmp.gt.f32.partialorder %v1860, 0.0
    %vm1863 = vcmp.gt.f32.partialorder %v1861, 0.0
    %v1864 = vmul.f32 %v1860, 0.3
    %v1865 = vmul.f32 %v1861, 0.3
    %v1866 = vsel %vm1862, %v1860, %v1864
    %v1867 = vsel %vm1863, %v1861, %v1865
    %v1868 = vld [vmem:[#allocation17] sm:$0xff]
    %v1869 = vld [vmem:[#allocation17 + $0x8] sm:$0xff]
    %v1870 = vld [vmem:[#allocation17 + $0x10] sm:$0xff]
    %v1871 = vld [vmem:[#allocation17 + $0x18] sm:$0xff]
    %v1872 = vld [vmem:[#allocation17 + $0x20] sm:$0xff]
    %v1873 = vld [vmem:[#allocation17 + $0x28] sm:$0xff]
    %v1874 = vld [vmem:[#allocation17 + $0x30] sm:$0xff]
    %v1875 = vld [vmem:[#allocation17 + $0x38] sm:$0xff]
    %v1876 = vld [vmem:[#allocation17 + $0x40] sm:$0xff]
    %v1877 = vld [vmem:[#allocation17 + $0x48] sm:$0xff]
    %v1878 = vld [vmem:[#allocation17 + $0x50] sm:$0xff]
    %v1879 = vld [vmem:[#allocation17 + $0x58] sm:$0xff]
    %v1880 = vld [vmem:[#allocation17 + $0x60] sm:$0xff]
    %v1881 = vld [vmem:[#allocation17 + $0x68] sm:$0xff]
    %v1882 = vld [vmem:[#allocation17 + $0x70] sm:$0xff]
    %v1883 = vld [vmem:[#allocation17 + $0x78] sm:$0xff]
    %v1884 = vld [vmem:[%s10] sm:$0x1]
    %v1886 = vperm.slane %v1884, 0
    %1888 = vmatpush.msra.mxu0 %v1883
    %1889 = vmatpush.msra.mxu0 %v1882
    %1890 = vmatpush.msra.mxu0 %v1881
    %1891 = vmatpush.msra.mxu0 %v1880
    %1892 = vmatpush.msra.mxu0 %v1879
    %1893 = vmatpush.msra.mxu0 %v1878
    %1894 = vmatpush.msra.mxu0 %v1877
    %1895 = vmatpush.msra.mxu0 %v1876
    %1896 = vmatpush.msra.mxu0 %v1875
    %1897 = vmatpush.msra.mxu0 %v1874
    %1898 = vmatpush.msra.mxu0 %v1873
    %1899 = vmatpush.msra.mxu0 %v1872
    %1900 = vmatpush.msra.mxu0 %v1871
    %1901 = vmatpush.msra.mxu0 %v1870
    %1902 = vmatpush.msra.mxu0 %v1869
    %1903 = vmatpush.msra.mxu0 %v1868
    %1904 = vmatmul.f32.gmra.mxu0 %v1866
    %v1905 = vpop.f32.mrf.mxu0
    %v1906 = vadd.f32 %v1886, %v1905
    %1907 = vmatmul.f32.gmra.mxu0 %v1867
    %v1908 = vpop.f32.mrf.mxu0
    %v1909 = vadd.f32 %v1886, %v1908
    %1910 = vdwg.mxu0
    %1911 = vst [vmem:[#allocation19] sm:$0xff] %v1906
    %1912 = vst [vmem:[#allocation19 + $0x8] sm:$0xff] %v1909
    // Predicated region
    $region74: #{seq_tagger_forward.1} parent=1 // pred_check
      _
    $region75: #{seq_tagger_forward.1} parent=1 // pred_check_branch
      %1914 = sbr.rel (0) target = $region77
    $region76: #{seq_tagger_forward.1} parent=1 // pred_region
      %1916 = vsyncadd [#allocation8], 0
      %s1917 = sshll.u32 [#allocation19], 4
      %s1918 = int_to_ptr.vmem [resolvable:$true] %s1917
      %s1919 = sshll.u32 %s11, 4
      %s1920 = int_to_ptr.hbm [resolvable:$true] %s1919
      %1925 = dma.vmem_to_hbm [thread:$0]  %s1918, 256, %s1920, [#allocation8], 128, 128, 8
    $region77: #{seq_tagger_forward.1} parent=1 // pred_fallthru
      _
    // Predicated region
    $region78: #{seq_tagger_forward.1} parent=1 // pred_check
      _
    $region79: #{seq_tagger_forward.1} parent=1 // pred_check_branch
      %1927 = sbr.rel (0) target = $region81
    $region80: #{seq_tagger_forward.1} parent=1 // pred_region
      %1929 = dma.done [#allocation8], 256
    $region81: #{seq_tagger_forward.1} parent=1 // pred_fallthru
      _
    %1930 = vsyncpa [#allocation7], 1
    %1931 = vsyncpa [#allocation12], 1
    %1932 = vsyncpa [#allocation15], 1
    %1933 = vsyncpa [#allocation18], 1
    %1934 = vsyncpa [#allocation8], 1
    %1935 = vsyncpa [#allocation9], 1

</llo_original>
